<compile_context>
chip_gen: v5e
topology: v5e:2x2
jax: 0.10.0
libtpu: 0.0.40
codegen_flags: <defaults>
</compile_context>

<pallas_src>
import jax
import jax.numpy as jnp
from jax import lax
from jax.experimental import pallas as pl
from jax.experimental.pallas import tpu as pltpu

# ---------------- scaled-down DeiT config (deit_small_patch16 style) -----------
PATCH = 16
IMG = 32
IN_CH = 3
EMBED = 64          # hidden dim (deit_small uses 384)
DEPTH = 2           # transformer blocks (deit_small uses 12)
HEADS = 2           # attention heads (deit_small uses 6)
MLP_RATIO = 4
NUM_CLASSES = 4
NUM_PATCHES = (IMG // PATCH) * (IMG // PATCH)    # 4
SEQ = NUM_PATCHES + 2                            # + cls token + dist token
HEAD_DIM = EMBED // HEADS
LN_EPS = 1e-6
HEAD_PAD = 128                                   # lane-dense classifier output width
GELU_APPROX = True                               # tanh GELU (EUP); False = exact erf
NEG_INF = -1e9


# ------------------------------ fused Pallas kernel -----------------------------
def _deit_kernel(
    patches_ref,                    # (1, BT*NP, Cpp) f32
    prefix_ref,                     # (2*BT, D) f32  : [cls+pos0]*BT ; [dist+pos1]*BT
    pos_patch_ref,                  # (BT*NP, D) f32 : patch pos-embed tiled over BT
    attn_bias_ref,                  # (M, M) f32     : 0 same-image, -1e9 otherwise
    patch_w_ref, patch_b_ref,       # (Cpp, D) bf16, (1, D) f32
    ln1_g_ref, ln1_b_ref,           # (DEPTH, 1, D) f32
    q_w_ref, q_b_ref,               # (DEPTH*HEADS, D, HD) bf16 / (DEPTH*HEADS, 1, HD)
    k_w_ref, k_b_ref,
    v_w_ref, v_b_ref,
    proj_w_ref, proj_b_ref,         # (DEPTH, D, D) bf16, (DEPTH, 1, D) f32
    ln2_g_ref, ln2_b_ref,
    fc1_w_ref, fc1_b_ref,           # (DEPTH, D, 4D) bf16, (DEPTH, 1, 4D) f32
    fc2_w_ref, fc2_b_ref,           # (DEPTH, 4D, D) bf16, (DEPTH, 1, D) f32
    lnf_g_ref, lnf_b_ref,           # (1, D) f32
    head_w_ref, head_b_ref,         # (D, HEAD_PAD) bf16, (1, HEAD_PAD) f32
    out_ref,                        # (1, 2*BT, HEAD_PAD) f32
):
    f32 = jnp.float32
    bf16 = jnp.bfloat16

    def mm(x, w):
        # bf16 MXU operands, f32 accumulation.
        return jnp.dot(x.astype(bf16), w, preferred_element_type=f32)

    def ln(x, g, b):
        mean = jnp.mean(x, axis=-1, keepdims=True)
        var = jnp.mean(jnp.square(x - mean), axis=-1, keepdims=True)
        return (x - mean) * lax.rsqrt(var + LN_EPS) * g + b

    # ---- patch embedding (strided conv == matmul) + register-resident assembly
    patches = patches_ref[0]                                    # (BT*NP, Cpp)
    tok = mm(patches, patch_w_ref[...]) + patch_b_ref[...] + pos_patch_ref[...]
    h = jnp.concatenate([prefix_ref[...], tok], axis=0)         # (M, D) f32

    bias = attn_bias_ref[...]                                   # (M, M) f32

    for d in range(DEPTH):                                      # statically unrolled
        # ------------------- multi-head self attention -------------------
        y = ln(h, ln1_g_ref[d], ln1_b_ref[d])
        head_outs = []
        for hh in range(HEADS):                                 # statically unrolled
            w = d * HEADS + hh
            # Lane-aligned per-head projections (softmax scale folded into q_w/q_b).
            qh = mm(y, q_w_ref[w]) + q_b_ref[w]                 # (M, HD)
            kh = mm(y, k_w_ref[w]) + k_b_ref[w]
            vh = mm(y, v_w_ref[w]) + v_b_ref[w]
            s = lax.dot_general(qh.astype(bf16), kh.astype(bf16),
                                (((1,), (1,)), ((), ())),
                                preferred_element_type=f32) + bias   # (M, M)
            s = s - jnp.max(s, axis=-1, keepdims=True)
            p = jnp.exp(s)
            p = p * pl.reciprocal(jnp.sum(p, axis=-1, keepdims=True), approx=True)
            head_outs.append(jnp.dot(p.astype(bf16), vh.astype(bf16),
                                     preferred_element_type=f32))    # (M, HD)
        attn = jnp.concatenate(head_outs, axis=-1)              # (M, D) register-resident
        h = h + mm(attn, proj_w_ref[d]) + proj_b_ref[d]         # residual

        # ------------------------------ MLP -------------------------------
        y = ln(h, ln2_g_ref[d], ln2_b_ref[d])
        y = mm(y, fc1_w_ref[d]) + fc1_b_ref[d]
        y = jax.nn.gelu(y, approximate=GELU_APPROX)             # tanh GELU -> EUP slot
        y = mm(y, fc2_w_ref[d]) + fc2_b_ref[d]
        h = h + y                                               # residual

    # ---- final LayerNorm (cls/dist rows only) + merged, lane-padded heads ----
    two_bt = prefix_ref.shape[0]
    feat = ln(h[0:two_bt, :], lnf_g_ref[...], lnf_b_ref[...])   # (2*BT, D)
    out_ref[0] = mm(feat, head_w_ref[...]) + head_b_ref[...]    # (2*BT, HEAD_PAD)


# ------------------------------- parameters ------------------------------------
def init_params(key):
    keys = iter(jax.random.split(key, 64))

    def nrm(shape, std=0.02):
        return jax.random.normal(next(keys), shape, jnp.float32) * std

    scale = float(HEAD_DIM) ** -0.5
    # Softmax scale folded into the Q projection (weights & bias) at init time.
    q_w = (nrm((DEPTH * HEADS, EMBED, HEAD_DIM)) * scale).astype(jnp.bfloat16)
    q_b = jnp.zeros((DEPTH * HEADS, 1, HEAD_DIM), jnp.float32) * scale

    # Merged classifier/distillation head padded to HEAD_PAD lanes:
    #   cols [:NC] = classifier, cols [NC:2NC] = distillation head, rest = 0.
    head_w = jnp.zeros((EMBED, HEAD_PAD), jnp.float32)
    head_w = head_w.at[:, :2 * NUM_CLASSES].set(nrm((EMBED, 2 * NUM_CLASSES)))

    params = {
        # patch embedding
        "patch_w": nrm((IN_CH * PATCH * PATCH, EMBED)).astype(jnp.bfloat16),
        "patch_b": jnp.zeros((1, EMBED), jnp.float32),
        # tokens / positional embedding
        "cls_token": nrm((1, EMBED)),
        "dist_token": nrm((1, EMBED)),
        "pos_embed": nrm((SEQ, EMBED)),
        # per-block parameters, stacked on a leading DEPTH (or DEPTH*HEADS) axis
        "ln1_g": jnp.ones((DEPTH, 1, EMBED), jnp.float32),
        "ln1_b": jnp.zeros((DEPTH, 1, EMBED), jnp.float32),
        "q_w": q_w, "q_b": q_b,
        "k_w": nrm((DEPTH * HEADS, EMBED, HEAD_DIM)).astype(jnp.bfloat16),
        "k_b": jnp.zeros((DEPTH * HEADS, 1, HEAD_DIM), jnp.float32),
        "v_w": nrm((DEPTH * HEADS, EMBED, HEAD_DIM)).astype(jnp.bfloat16),
        "v_b": jnp.zeros((DEPTH * HEADS, 1, HEAD_DIM), jnp.float32),
        "proj_w": nrm((DEPTH, EMBED, EMBED)).astype(jnp.bfloat16),
        "proj_b": jnp.zeros((DEPTH, 1, EMBED), jnp.float32),
        "ln2_g": jnp.ones((DEPTH, 1, EMBED), jnp.float32),
        "ln2_b": jnp.zeros((DEPTH, 1, EMBED), jnp.float32),
        "fc1_w": nrm((DEPTH, EMBED, MLP_RATIO * EMBED)).astype(jnp.bfloat16),
        "fc1_b": jnp.zeros((DEPTH, 1, MLP_RATIO * EMBED), jnp.float32),
        "fc2_w": nrm((DEPTH, MLP_RATIO * EMBED, EMBED)).astype(jnp.bfloat16),
        "fc2_b": jnp.zeros((DEPTH, 1, EMBED), jnp.float32),
        # final LN + merged classifier/distillation heads (lane-padded)
        "ln_g": jnp.ones((1, EMBED), jnp.float32),
        "ln_b": jnp.zeros((1, EMBED), jnp.float32),
        "head_w": head_w.astype(jnp.bfloat16),
        "head_b": jnp.zeros((1, HEAD_PAD), jnp.float32),
    }
    return params


def _pick_batch_tile(B, target_rows=128):
    """Images per grid step: BT*SEQ ~ target_rows, B % BT == 0, keep grid >= 2."""
    bt = max(1, min(B, target_rows // SEQ))
    if B >= 2:
        bt = min(bt, B // 2)   # >= 2 grid steps so both v7x TensorCores get work
    bt = max(bt, 1)
    while B % bt:
        bt -= 1
    return bt


# -------------------------------- forward --------------------------------------
def deit_forward(x, params, batch_tile=None):
    """x: (B, C, H, W) NCHW f32 -> (cls_logits, dist_logits), each (B, NUM_CLASSES)."""
    B, C, H, W = x.shape
    p = PATCH
    nh, nw = H // p, W // p
    n_patch = nh * nw
    cpp = C * p * p
    assert (C, n_patch) == (IN_CH, NUM_PATCHES)

    BT = _pick_batch_tile(B) if batch_tile is None else batch_tile
    assert B % BT == 0
    NT = B // BT            # grid steps
    M = BT * SEQ            # token rows carried per grid step

    # Patch extraction (input-side glue only); flattened in (C, ph, pw) order to
    # match nn.Conv2d's weight layout.  The matmul itself runs inside the kernel.
    patches = (
        x.reshape(B, C, nh, p, nw, p)
         .transpose(0, 2, 4, 1, 3, 5)               # (B, nh, nw, C, p, p)
         .reshape(NT, BT * n_patch, cpp)
    )

    # Grid-invariant small tensors computed once in the wrapper.
    # Row layout per tile: [cls rows (BT)] [dist rows (BT)] [patch rows (BT*NP)].
    pos = params["pos_embed"]
    prefix = jnp.concatenate(
        [jnp.tile(params["cls_token"] + pos[0:1], (BT, 1)),
         jnp.tile(params["dist_token"] + pos[1:2], (BT, 1))], axis=0)   # (2*BT, D)
    pos_patch = jnp.tile(pos[2:SEQ], (BT, 1))                            # (BT*NP, D)
    img_id = jnp.concatenate([jnp.arange(BT), jnp.arange(BT),
                              jnp.repeat(jnp.arange(BT), n_patch)])
    attn_bias = jnp.where(img_id[:, None] == img_id[None, :],
                          0.0, NEG_INF).astype(jnp.float32)              # (M, M)

    args = [
        patches, prefix, pos_patch, attn_bias,
        params["patch_w"], params["patch_b"],
        params["ln1_g"], params["ln1_b"],
        params["q_w"], params["q_b"], params["k_w"], params["k_b"],
        params["v_w"], params["v_b"],
        params["proj_w"], params["proj_b"],
        params["ln2_g"], params["ln2_b"],
        params["fc1_w"], params["fc1_b"], params["fc2_w"], params["fc2_b"],
        params["ln_g"], params["ln_b"], params["head_w"], params["head_b"],
    ]

    def _zero_map(nd):
        return lambda t: (0,) * nd

    in_specs = [pl.BlockSpec((1, BT * n_patch, cpp), lambda t: (t, 0, 0))]
    in_specs += [pl.BlockSpec(a.shape, _zero_map(a.ndim)) for a in args[1:]]

    out_shape = jax.ShapeDtypeStruct((NT, 2 * BT, HEAD_PAD), jnp.float32)
    out_specs = pl.BlockSpec((1, 2 * BT, HEAD_PAD), lambda t: (t, 0, 0))

    # Advisory cost estimate (whole call).
    flops_step = 2 * BT * n_patch * cpp * EMBED
    flops_step += DEPTH * (
        3 * 2 * M * EMBED * EMBED                       # q/k/v projections
        + 2 * 2 * M * M * EMBED                         # scores + P@V (all heads)
        + 2 * M * EMBED * EMBED                         # output projection
        + 2 * 2 * M * EMBED * MLP_RATIO * EMBED)        # fc1 + fc2
    flops_step += 2 * (2 * BT) * EMBED * HEAD_PAD
    transc_step = DEPTH * (HEADS * M * M + M * MLP_RATIO * EMBED)
    weight_bytes = sum(int(a.size) * a.dtype.itemsize for a in args[1:])
    bytes_accessed = (int(patches.size) * 4 + NT * weight_bytes
                      + NT * 2 * BT * HEAD_PAD * 4)
    cost = pl.CostEstimate(flops=NT * flops_step,
                           transcendentals=NT * transc_step,
                           bytes_accessed=bytes_accessed)

    out = pl.pallas_call(
        _deit_kernel,
        out_shape=out_shape,
        grid=(NT,),
        in_specs=in_specs,
        out_specs=out_specs,
        cost_estimate=cost,
        compiler_params=pltpu.CompilerParams(
            dimension_semantics=("parallel",),
            vmem_limit_bytes=32 * 1024 * 1024,
        ),
    )(*args)

    # Lane-dense kernel output -> cls/dist split is free wrapper-side slicing.
    cls_logits = out[:, 0:BT, 0:NUM_CLASSES].reshape(B, NUM_CLASSES)
    dist_logits = out[:, BT:2 * BT, NUM_CLASSES:2 * NUM_CLASSES].reshape(B, NUM_CLASSES)
    return cls_logits, dist_logits


# ---------------------------------- main ----------------------------------------
if __name__ == "__main__":
    key = jax.random.PRNGKey(0)
    k_param, k_input = jax.random.split(key)
    params = init_params(k_param)

    B = 8                                       # -> BT=4 images/step, grid=(2,)
    x = jax.random.normal(k_input, (B, IN_CH, IMG, IMG), jnp.float32)

    cls_logits, dist_logits = jax.jit(deit_forward)(x, params)
    jax.block_until_ready((cls_logits, dist_logits))

    assert cls_logits.shape == (B, NUM_CLASSES)
    assert dist_logits.shape == (B, NUM_CLASSES)
    print("KERNEL_OK")
</pallas_src>

<mosaic_0001>
module attributes {stable_mosaic.version = 11 : i64} {
  func.func @_deit_kernel(%arg0: i32, %arg1: memref<1x16x768xf32, #tpu.memory_space<vmem>>, %arg2: memref<8x64xf32, #tpu.memory_space<vmem>>, %arg3: memref<16x64xf32, #tpu.memory_space<vmem>>, %arg4: memref<24x24xf32, #tpu.memory_space<vmem>>, %arg5: memref<768x64xbf16, #tpu.memory_space<vmem>>, %arg6: memref<1x64xf32, #tpu.memory_space<vmem>>, %arg7: memref<2x1x64xf32, #tpu.memory_space<vmem>>, %arg8: memref<2x1x64xf32, #tpu.memory_space<vmem>>, %arg9: memref<4x64x32xbf16, #tpu.memory_space<vmem>>, %arg10: memref<4x1x32xf32, #tpu.memory_space<vmem>>, %arg11: memref<4x64x32xbf16, #tpu.memory_space<vmem>>, %arg12: memref<4x1x32xf32, #tpu.memory_space<vmem>>, %arg13: memref<4x64x32xbf16, #tpu.memory_space<vmem>>, %arg14: memref<4x1x32xf32, #tpu.memory_space<vmem>>, %arg15: memref<2x64x64xbf16, #tpu.memory_space<vmem>>, %arg16: memref<2x1x64xf32, #tpu.memory_space<vmem>>, %arg17: memref<2x1x64xf32, #tpu.memory_space<vmem>>, %arg18: memref<2x1x64xf32, #tpu.memory_space<vmem>>, %arg19: memref<2x64x256xbf16, #tpu.memory_space<vmem>>, %arg20: memref<2x1x256xf32, #tpu.memory_space<vmem>>, %arg21: memref<2x256x64xbf16, #tpu.memory_space<vmem>>, %arg22: memref<2x1x64xf32, #tpu.memory_space<vmem>>, %arg23: memref<1x64xf32, #tpu.memory_space<vmem>>, %arg24: memref<1x64xf32, #tpu.memory_space<vmem>>, %arg25: memref<64x128xbf16, #tpu.memory_space<vmem>>, %arg26: memref<1x128xf32, #tpu.memory_space<vmem>>, %arg27: memref<1x8x128xf32, #tpu.memory_space<vmem>>) attributes {dimension_semantics = [#tpu.dimension_semantics<parallel>], iteration_bounds = array<i64: 2>, scalar_prefetch = 0 : i64, scratch_operands = 0 : i64, tpu.core_type = #tpu.core_type<tc>, window_params = [{transform_indices = @transform_0, window_bounds = array<i64: 1, 16, 768>}, {pipeline_mode = #tpu.pipeline_mode<synchronous>, transform_indices = @transform_1, window_bounds = array<i64: 8, 64>}, {pipeline_mode = #tpu.pipeline_mode<synchronous>, transform_indices = @transform_2, window_bounds = array<i64: 16, 64>}, {pipeline_mode = #tpu.pipeline_mode<synchronous>, transform_indices = @transform_3, window_bounds = array<i64: 24, 24>}, {pipeline_mode = #tpu.pipeline_mode<synchronous>, transform_indices = @transform_4, window_bounds = array<i64: 768, 64>}, {pipeline_mode = #tpu.pipeline_mode<synchronous>, transform_indices = @transform_5, window_bounds = array<i64: 1, 64>}, {pipeline_mode = #tpu.pipeline_mode<synchronous>, transform_indices = @transform_6, window_bounds = array<i64: 2, 1, 64>}, {pipeline_mode = #tpu.pipeline_mode<synchronous>, transform_indices = @transform_7, window_bounds = array<i64: 2, 1, 64>}, {pipeline_mode = #tpu.pipeline_mode<synchronous>, transform_indices = @transform_8, window_bounds = array<i64: 4, 64, 32>}, {pipeline_mode = #tpu.pipeline_mode<synchronous>, transform_indices = @transform_9, window_bounds = array<i64: 4, 1, 32>}, {pipeline_mode = #tpu.pipeline_mode<synchronous>, transform_indices = @transform_10, window_bounds = array<i64: 4, 64, 32>}, {pipeline_mode = #tpu.pipeline_mode<synchronous>, transform_indices = @transform_11, window_bounds = array<i64: 4, 1, 32>}, {pipeline_mode = #tpu.pipeline_mode<synchronous>, transform_indices = @transform_12, window_bounds = array<i64: 4, 64, 32>}, {pipeline_mode = #tpu.pipeline_mode<synchronous>, transform_indices = @transform_13, window_bounds = array<i64: 4, 1, 32>}, {pipeline_mode = #tpu.pipeline_mode<synchronous>, transform_indices = @transform_14, window_bounds = array<i64: 2, 64, 64>}, {pipeline_mode = #tpu.pipeline_mode<synchronous>, transform_indices = @transform_15, window_bounds = array<i64: 2, 1, 64>}, {pipeline_mode = #tpu.pipeline_mode<synchronous>, transform_indices = @transform_16, window_bounds = array<i64: 2, 1, 64>}, {pipeline_mode = #tpu.pipeline_mode<synchronous>, transform_indices = @transform_17, window_bounds = array<i64: 2, 1, 64>}, {pipeline_mode = #tpu.pipeline_mode<synchronous>, transform_indices = @transform_18, window_bounds = array<i64: 2, 64, 256>}, {pipeline_mode = #tpu.pipeline_mode<synchronous>, transform_indices = @transform_19, window_bounds = array<i64: 2, 1, 256>}, {pipeline_mode = #tpu.pipeline_mode<synchronous>, transform_indices = @transform_20, window_bounds = array<i64: 2, 256, 64>}, {pipeline_mode = #tpu.pipeline_mode<synchronous>, transform_indices = @transform_21, window_bounds = array<i64: 2, 1, 64>}, {pipeline_mode = #tpu.pipeline_mode<synchronous>, transform_indices = @transform_22, window_bounds = array<i64: 1, 64>}, {pipeline_mode = #tpu.pipeline_mode<synchronous>, transform_indices = @transform_23, window_bounds = array<i64: 1, 64>}, {pipeline_mode = #tpu.pipeline_mode<synchronous>, transform_indices = @transform_24, window_bounds = array<i64: 64, 128>}, {pipeline_mode = #tpu.pipeline_mode<synchronous>, transform_indices = @transform_25, window_bounds = array<i64: 1, 128>}, {transform_indices = @transform_26, window_bounds = array<i64: 1, 8, 128>}]} {
    %c0 = arith.constant 0 : index
    %c0_0 = arith.constant 0 : index
    %c0_1 = arith.constant 0 : index
    %0 = vector.load %arg1[%c0, %c0_0, %c0_1] : memref<1x16x768xf32, #tpu.memory_space<vmem>>, vector<1x16x768xf32>
    %1 = vector.shape_cast %0 : vector<1x16x768xf32> to vector<16x768xf32>
    %c0_2 = arith.constant 0 : index
    %c0_3 = arith.constant 0 : index
    %2 = vector.load %arg5[%c0_2, %c0_3] : memref<768x64xbf16, #tpu.memory_space<vmem>>, vector<768x64xbf16>
    %3 = arith.truncf %1 : vector<16x768xf32> to vector<16x768xbf16>
    %cst = arith.constant dense<0.000000e+00> : vector<16x64xf32>
    %4 = tpu.matmul %3, %2, %cst {dimension_numbers = #tpu.dot_dimension_numbers<[1], [0], [0], [1], [0, 0, 1, 1], [], []>} : vector<16x768xbf16>, vector<768x64xbf16>, vector<16x64xf32> -> vector<16x64xf32>
    %c0_4 = arith.constant 0 : index
    %c0_5 = arith.constant 0 : index
    %5 = vector.load %arg6[%c0_4, %c0_5] : memref<1x64xf32, #tpu.memory_space<vmem>>, vector<1x64xf32>
    %6 = vector.broadcast %5 : vector<1x64xf32> to vector<16x64xf32>
    %7 = arith.addf %4, %6 : vector<16x64xf32>
    %c0_6 = arith.constant 0 : index
    %c0_7 = arith.constant 0 : index
    %8 = vector.load %arg3[%c0_6, %c0_7] : memref<16x64xf32, #tpu.memory_space<vmem>>, vector<16x64xf32>
    %9 = arith.addf %7, %8 : vector<16x64xf32>
    %c0_8 = arith.constant 0 : index
    %c0_9 = arith.constant 0 : index
    %10 = vector.load %arg2[%c0_8, %c0_9] : memref<8x64xf32, #tpu.memory_space<vmem>>, vector<8x64xf32>
    %11 = tpu.concatenate %10, %9 in 0 : vector<8x64xf32>, vector<16x64xf32> -> vector<24x64xf32>
    %c0_10 = arith.constant 0 : index
    %c0_11 = arith.constant 0 : index
    %12 = vector.load %arg4[%c0_10, %c0_11] : memref<24x24xf32, #tpu.memory_space<vmem>>, vector<24x24xf32>
    %c0_12 = arith.constant 0 : index
    %c0_13 = arith.constant 0 : index
    %c0_14 = arith.constant 0 : index
    %13 = vector.load %arg7[%c0_12, %c0_13, %c0_14] : memref<2x1x64xf32, #tpu.memory_space<vmem>>, vector<1x1x64xf32>
    %14 = vector.shape_cast %13 : vector<1x1x64xf32> to vector<1x64xf32>
    %c0_15 = arith.constant 0 : index
    %c0_16 = arith.constant 0 : index
    %c0_17 = arith.constant 0 : index
    %15 = vector.load %arg8[%c0_15, %c0_16, %c0_17] : memref<2x1x64xf32, #tpu.memory_space<vmem>>, vector<1x1x64xf32>
    %16 = vector.shape_cast %15 : vector<1x1x64xf32> to vector<1x64xf32>
    %cst_18 = arith.constant dense<0.000000e+00> : vector<24xf32>
    %17 = vector.multi_reduction <add>, %11, %cst_18 [1] : vector<24x64xf32> to vector<24xf32>
    %18 = vector.shape_cast %17 : vector<24xf32> to vector<24x1xf32>
    %cst_19 = arith.constant 6.400000e+01 : f32
    %19 = vector.broadcast %cst_19 : f32 to vector<24x1xf32>
    %20 = arith.divf %18, %19 : vector<24x1xf32>
    %21 = vector.broadcast %20 : vector<24x1xf32> to vector<24x64xf32>
    %22 = arith.subf %11, %21 : vector<24x64xf32>
    %23 = arith.mulf %22, %22 : vector<24x64xf32>
    %cst_20 = arith.constant dense<0.000000e+00> : vector<24xf32>
    %24 = vector.multi_reduction <add>, %23, %cst_20 [1] : vector<24x64xf32> to vector<24xf32>
    %25 = vector.shape_cast %24 : vector<24xf32> to vector<24x1xf32>
    %cst_21 = arith.constant 6.400000e+01 : f32
    %26 = vector.broadcast %cst_21 : f32 to vector<24x1xf32>
    %27 = arith.divf %25, %26 : vector<24x1xf32>
    %28 = vector.broadcast %20 : vector<24x1xf32> to vector<24x64xf32>
    %29 = arith.subf %11, %28 : vector<24x64xf32>
    %cst_22 = arith.constant 9.99999997E-7 : f32
    %30 = vector.broadcast %cst_22 : f32 to vector<24x1xf32>
    %31 = arith.addf %27, %30 : vector<24x1xf32>
    %32 = math.rsqrt %31 : vector<24x1xf32>
    %33 = vector.broadcast %32 : vector<24x1xf32> to vector<24x64xf32>
    %34 = arith.mulf %29, %33 : vector<24x64xf32>
    %35 = vector.broadcast %14 : vector<1x64xf32> to vector<24x64xf32>
    %36 = arith.mulf %34, %35 : vector<24x64xf32>
    %37 = vector.broadcast %16 : vector<1x64xf32> to vector<24x64xf32>
    %38 = arith.addf %36, %37 : vector<24x64xf32>
    %c0_23 = arith.constant 0 : index
    %c0_24 = arith.constant 0 : index
    %c0_25 = arith.constant 0 : index
    %39 = vector.load %arg9[%c0_23, %c0_24, %c0_25] : memref<4x64x32xbf16, #tpu.memory_space<vmem>>, vector<1x64x32xbf16>
    %40 = vector.shape_cast %39 : vector<1x64x32xbf16> to vector<64x32xbf16>
    %41 = arith.truncf %38 : vector<24x64xf32> to vector<24x64xbf16>
    %cst_26 = arith.constant dense<0.000000e+00> : vector<24x32xf32>
    %42 = tpu.matmul %41, %40, %cst_26 {dimension_numbers = #tpu.dot_dimension_numbers<[1], [0], [0], [1], [0, 0, 1, 1], [], []>} : vector<24x64xbf16>, vector<64x32xbf16>, vector<24x32xf32> -> vector<24x32xf32>
    %c0_27 = arith.constant 0 : index
    %c0_28 = arith.constant 0 : index
    %c0_29 = arith.constant 0 : index
    %43 = vector.load %arg10[%c0_27, %c0_28, %c0_29] : memref<4x1x32xf32, #tpu.memory_space<vmem>>, vector<1x1x32xf32>
    %44 = vector.shape_cast %43 : vector<1x1x32xf32> to vector<1x32xf32>
    %45 = vector.broadcast %44 : vector<1x32xf32> to vector<24x32xf32>
    %46 = arith.addf %42, %45 : vector<24x32xf32>
    %c0_30 = arith.constant 0 : index
    %c0_31 = arith.constant 0 : index
    %c0_32 = arith.constant 0 : index
    %47 = vector.load %arg11[%c0_30, %c0_31, %c0_32] : memref<4x64x32xbf16, #tpu.memory_space<vmem>>, vector<1x64x32xbf16>
    %48 = vector.shape_cast %47 : vector<1x64x32xbf16> to vector<64x32xbf16>
    %49 = arith.truncf %38 : vector<24x64xf32> to vector<24x64xbf16>
    %cst_33 = arith.constant dense<0.000000e+00> : vector<24x32xf32>
    %50 = tpu.matmul %49, %48, %cst_33 {dimension_numbers = #tpu.dot_dimension_numbers<[1], [0], [0], [1], [0, 0, 1, 1], [], []>} : vector<24x64xbf16>, vector<64x32xbf16>, vector<24x32xf32> -> vector<24x32xf32>
    %c0_34 = arith.constant 0 : index
    %c0_35 = arith.constant 0 : index
    %c0_36 = arith.constant 0 : index
    %51 = vector.load %arg12[%c0_34, %c0_35, %c0_36] : memref<4x1x32xf32, #tpu.memory_space<vmem>>, vector<1x1x32xf32>
    %52 = vector.shape_cast %51 : vector<1x1x32xf32> to vector<1x32xf32>
    %53 = vector.broadcast %52 : vector<1x32xf32> to vector<24x32xf32>
    %54 = arith.addf %50, %53 : vector<24x32xf32>
    %c0_37 = arith.constant 0 : index
    %c0_38 = arith.constant 0 : index
    %c0_39 = arith.constant 0 : index
    %55 = vector.load %arg13[%c0_37, %c0_38, %c0_39] : memref<4x64x32xbf16, #tpu.memory_space<vmem>>, vector<1x64x32xbf16>
    %56 = vector.shape_cast %55 : vector<1x64x32xbf16> to vector<64x32xbf16>
    %57 = arith.truncf %38 : vector<24x64xf32> to vector<24x64xbf16>
    %cst_40 = arith.constant dense<0.000000e+00> : vector<24x32xf32>
    %58 = tpu.matmul %57, %56, %cst_40 {dimension_numbers = #tpu.dot_dimension_numbers<[1], [0], [0], [1], [0, 0, 1, 1], [], []>} : vector<24x64xbf16>, vector<64x32xbf16>, vector<24x32xf32> -> vector<24x32xf32>
    %c0_41 = arith.constant 0 : index
    %c0_42 = arith.constant 0 : index
    %c0_43 = arith.constant 0 : index
    %59 = vector.load %arg14[%c0_41, %c0_42, %c0_43] : memref<4x1x32xf32, #tpu.memory_space<vmem>>, vector<1x1x32xf32>
    %60 = vector.shape_cast %59 : vector<1x1x32xf32> to vector<1x32xf32>
    %61 = vector.broadcast %60 : vector<1x32xf32> to vector<24x32xf32>
    %62 = arith.addf %58, %61 : vector<24x32xf32>
    %63 = arith.truncf %46 : vector<24x32xf32> to vector<24x32xbf16>
    %64 = arith.truncf %54 : vector<24x32xf32> to vector<24x32xbf16>
    %cst_44 = arith.constant dense<0.000000e+00> : vector<24x24xf32>
    %65 = tpu.matmul %63, %64, %cst_44 {dimension_numbers = #tpu.dot_dimension_numbers<[1], [1], [0], [0], [0, 0, 1, 0], [], []>} : vector<24x32xbf16>, vector<24x32xbf16>, vector<24x24xf32> -> vector<24x24xf32>
    %66 = arith.addf %65, %12 : vector<24x24xf32>
    %cst_45 = arith.constant dense<0xFF800000> : vector<24xf32>
    %67 = vector.multi_reduction <maximumf>, %66, %cst_45 [1] : vector<24x24xf32> to vector<24xf32>
    %68 = vector.shape_cast %67 : vector<24xf32> to vector<24x1xf32>
    %69 = vector.broadcast %68 : vector<24x1xf32> to vector<24x24xf32>
    %70 = arith.subf %66, %69 : vector<24x24xf32>
    %71 = math.exp %70 : vector<24x24xf32>
    %cst_46 = arith.constant dense<0.000000e+00> : vector<24xf32>
    %72 = vector.multi_reduction <add>, %71, %cst_46 [1] : vector<24x24xf32> to vector<24xf32>
    %73 = vector.shape_cast %72 : vector<24xf32> to vector<24x1xf32>
    %74 = tpu.reciprocal %73 {approx = true} : vector<24x1xf32> -> vector<24x1xf32>
    %75 = vector.broadcast %74 : vector<24x1xf32> to vector<24x24xf32>
    %76 = arith.mulf %71, %75 : vector<24x24xf32>
    %77 = arith.truncf %76 : vector<24x24xf32> to vector<24x24xbf16>
    %78 = arith.truncf %62 : vector<24x32xf32> to vector<24x32xbf16>
    %cst_47 = arith.constant dense<0.000000e+00> : vector<24x32xf32>
    %79 = tpu.matmul %77, %78, %cst_47 {dimension_numbers = #tpu.dot_dimension_numbers<[1], [0], [0], [1], [0, 0, 1, 1], [], []>} : vector<24x24xbf16>, vector<24x32xbf16>, vector<24x32xf32> -> vector<24x32xf32>
    %c1 = arith.constant 1 : index
    %c0_48 = arith.constant 0 : index
    %c0_49 = arith.constant 0 : index
    %80 = vector.load %arg9[%c1, %c0_48, %c0_49] : memref<4x64x32xbf16, #tpu.memory_space<vmem>>, vector<1x64x32xbf16>
    %81 = vector.shape_cast %80 : vector<1x64x32xbf16> to vector<64x32xbf16>
    %82 = arith.truncf %38 : vector<24x64xf32> to vector<24x64xbf16>
    %cst_50 = arith.constant dense<0.000000e+00> : vector<24x32xf32>
    %83 = tpu.matmul %82, %81, %cst_50 {dimension_numbers = #tpu.dot_dimension_numbers<[1], [0], [0], [1], [0, 0, 1, 1], [], []>} : vector<24x64xbf16>, vector<64x32xbf16>, vector<24x32xf32> -> vector<24x32xf32>
    %c1_51 = arith.constant 1 : index
    %c0_52 = arith.constant 0 : index
    %c0_53 = arith.constant 0 : index
    %84 = vector.load %arg10[%c1_51, %c0_52, %c0_53] : memref<4x1x32xf32, #tpu.memory_space<vmem>>, vector<1x1x32xf32>
    %85 = vector.shape_cast %84 : vector<1x1x32xf32> to vector<1x32xf32>
    %86 = vector.broadcast %85 : vector<1x32xf32> to vector<24x32xf32>
    %87 = arith.addf %83, %86 : vector<24x32xf32>
    %c1_54 = arith.constant 1 : index
    %c0_55 = arith.constant 0 : index
    %c0_56 = arith.constant 0 : index
    %88 = vector.load %arg11[%c1_54, %c0_55, %c0_56] : memref<4x64x32xbf16, #tpu.memory_space<vmem>>, vector<1x64x32xbf16>
    %89 = vector.shape_cast %88 : vector<1x64x32xbf16> to vector<64x32xbf16>
    %90 = arith.truncf %38 : vector<24x64xf32> to vector<24x64xbf16>
    %cst_57 = arith.constant dense<0.000000e+00> : vector<24x32xf32>
    %91 = tpu.matmul %90, %89, %cst_57 {dimension_numbers = #tpu.dot_dimension_numbers<[1], [0], [0], [1], [0, 0, 1, 1], [], []>} : vector<24x64xbf16>, vector<64x32xbf16>, vector<24x32xf32> -> vector<24x32xf32>
    %c1_58 = arith.constant 1 : index
    %c0_59 = arith.constant 0 : index
    %c0_60 = arith.constant 0 : index
    %92 = vector.load %arg12[%c1_58, %c0_59, %c0_60] : memref<4x1x32xf32, #tpu.memory_space<vmem>>, vector<1x1x32xf32>
    %93 = vector.shape_cast %92 : vector<1x1x32xf32> to vector<1x32xf32>
    %94 = vector.broadcast %93 : vector<1x32xf32> to vector<24x32xf32>
    %95 = arith.addf %91, %94 : vector<24x32xf32>
    %c1_61 = arith.constant 1 : index
    %c0_62 = arith.constant 0 : index
    %c0_63 = arith.constant 0 : index
    %96 = vector.load %arg13[%c1_61, %c0_62, %c0_63] : memref<4x64x32xbf16, #tpu.memory_space<vmem>>, vector<1x64x32xbf16>
    %97 = vector.shape_cast %96 : vector<1x64x32xbf16> to vector<64x32xbf16>
    %98 = arith.truncf %38 : vector<24x64xf32> to vector<24x64xbf16>
    %cst_64 = arith.constant dense<0.000000e+00> : vector<24x32xf32>
    %99 = tpu.matmul %98, %97, %cst_64 {dimension_numbers = #tpu.dot_dimension_numbers<[1], [0], [0], [1], [0, 0, 1, 1], [], []>} : vector<24x64xbf16>, vector<64x32xbf16>, vector<24x32xf32> -> vector<24x32xf32>
    %c1_65 = arith.constant 1 : index
    %c0_66 = arith.constant 0 : index
    %c0_67 = arith.constant 0 : index
    %100 = vector.load %arg14[%c1_65, %c0_66, %c0_67] : memref<4x1x32xf32, #tpu.memory_space<vmem>>, vector<1x1x32xf32>
    %101 = vector.shape_cast %100 : vector<1x1x32xf32> to vector<1x32xf32>
    %102 = vector.broadcast %101 : vector<1x32xf32> to vector<24x32xf32>
    %103 = arith.addf %99, %102 : vector<24x32xf32>
    %104 = arith.truncf %87 : vector<24x32xf32> to vector<24x32xbf16>
    %105 = arith.truncf %95 : vector<24x32xf32> to vector<24x32xbf16>
    %cst_68 = arith.constant dense<0.000000e+00> : vector<24x24xf32>
    %106 = tpu.matmul %104, %105, %cst_68 {dimension_numbers = #tpu.dot_dimension_numbers<[1], [1], [0], [0], [0, 0, 1, 0], [], []>} : vector<24x32xbf16>, vector<24x32xbf16>, vector<24x24xf32> -> vector<24x24xf32>
    %107 = arith.addf %106, %12 : vector<24x24xf32>
    %cst_69 = arith.constant dense<0xFF800000> : vector<24xf32>
    %108 = vector.multi_reduction <maximumf>, %107, %cst_69 [1] : vector<24x24xf32> to vector<24xf32>
    %109 = vector.shape_cast %108 : vector<24xf32> to vector<24x1xf32>
    %110 = vector.broadcast %109 : vector<24x1xf32> to vector<24x24xf32>
    %111 = arith.subf %107, %110 : vector<24x24xf32>
    %112 = math.exp %111 : vector<24x24xf32>
    %cst_70 = arith.constant dense<0.000000e+00> : vector<24xf32>
    %113 = vector.multi_reduction <add>, %112, %cst_70 [1] : vector<24x24xf32> to vector<24xf32>
    %114 = vector.shape_cast %113 : vector<24xf32> to vector<24x1xf32>
    %115 = tpu.reciprocal %114 {approx = true} : vector<24x1xf32> -> vector<24x1xf32>
    %116 = vector.broadcast %115 : vector<24x1xf32> to vector<24x24xf32>
    %117 = arith.mulf %112, %116 : vector<24x24xf32>
    %118 = arith.truncf %117 : vector<24x24xf32> to vector<24x24xbf16>
    %119 = arith.truncf %103 : vector<24x32xf32> to vector<24x32xbf16>
    %cst_71 = arith.constant dense<0.000000e+00> : vector<24x32xf32>
    %120 = tpu.matmul %118, %119, %cst_71 {dimension_numbers = #tpu.dot_dimension_numbers<[1], [0], [0], [1], [0, 0, 1, 1], [], []>} : vector<24x24xbf16>, vector<24x32xbf16>, vector<24x32xf32> -> vector<24x32xf32>
    %121 = tpu.concatenate %79, %120 in 1 : vector<24x32xf32>, vector<24x32xf32> -> vector<24x64xf32>
    %c0_72 = arith.constant 0 : index
    %c0_73 = arith.constant 0 : index
    %c0_74 = arith.constant 0 : index
    %122 = vector.load %arg15[%c0_72, %c0_73, %c0_74] : memref<2x64x64xbf16, #tpu.memory_space<vmem>>, vector<1x64x64xbf16>
    %123 = vector.shape_cast %122 : vector<1x64x64xbf16> to vector<64x64xbf16>
    %124 = arith.truncf %121 : vector<24x64xf32> to vector<24x64xbf16>
    %cst_75 = arith.constant dense<0.000000e+00> : vector<24x64xf32>
    %125 = tpu.matmul %124, %123, %cst_75 {dimension_numbers = #tpu.dot_dimension_numbers<[1], [0], [0], [1], [0, 0, 1, 1], [], []>} : vector<24x64xbf16>, vector<64x64xbf16>, vector<24x64xf32> -> vector<24x64xf32>
    %126 = arith.addf %11, %125 : vector<24x64xf32>
    %c0_76 = arith.constant 0 : index
    %c0_77 = arith.constant 0 : index
    %c0_78 = arith.constant 0 : index
    %127 = vector.load %arg16[%c0_76, %c0_77, %c0_78] : memref<2x1x64xf32, #tpu.memory_space<vmem>>, vector<1x1x64xf32>
    %128 = vector.shape_cast %127 : vector<1x1x64xf32> to vector<1x64xf32>
    %129 = vector.broadcast %128 : vector<1x64xf32> to vector<24x64xf32>
    %130 = arith.addf %126, %129 : vector<24x64xf32>
    %c0_79 = arith.constant 0 : index
    %c0_80 = arith.constant 0 : index
    %c0_81 = arith.constant 0 : index
    %131 = vector.load %arg17[%c0_79, %c0_80, %c0_81] : memref<2x1x64xf32, #tpu.memory_space<vmem>>, vector<1x1x64xf32>
    %132 = vector.shape_cast %131 : vector<1x1x64xf32> to vector<1x64xf32>
    %c0_82 = arith.constant 0 : index
    %c0_83 = arith.constant 0 : index
    %c0_84 = arith.constant 0 : index
    %133 = vector.load %arg18[%c0_82, %c0_83, %c0_84] : memref<2x1x64xf32, #tpu.memory_space<vmem>>, vector<1x1x64xf32>
    %134 = vector.shape_cast %133 : vector<1x1x64xf32> to vector<1x64xf32>
    %cst_85 = arith.constant dense<0.000000e+00> : vector<24xf32>
    %135 = vector.multi_reduction <add>, %130, %cst_85 [1] : vector<24x64xf32> to vector<24xf32>
    %136 = vector.shape_cast %135 : vector<24xf32> to vector<24x1xf32>
    %cst_86 = arith.constant 6.400000e+01 : f32
    %137 = vector.broadcast %cst_86 : f32 to vector<24x1xf32>
    %138 = arith.divf %136, %137 : vector<24x1xf32>
    %139 = vector.broadcast %138 : vector<24x1xf32> to vector<24x64xf32>
    %140 = arith.subf %130, %139 : vector<24x64xf32>
    %141 = arith.mulf %140, %140 : vector<24x64xf32>
    %cst_87 = arith.constant dense<0.000000e+00> : vector<24xf32>
    %142 = vector.multi_reduction <add>, %141, %cst_87 [1] : vector<24x64xf32> to vector<24xf32>
    %143 = vector.shape_cast %142 : vector<24xf32> to vector<24x1xf32>
    %cst_88 = arith.constant 6.400000e+01 : f32
    %144 = vector.broadcast %cst_88 : f32 to vector<24x1xf32>
    %145 = arith.divf %143, %144 : vector<24x1xf32>
    %146 = vector.broadcast %138 : vector<24x1xf32> to vector<24x64xf32>
    %147 = arith.subf %130, %146 : vector<24x64xf32>
    %cst_89 = arith.constant 9.99999997E-7 : f32
    %148 = vector.broadcast %cst_89 : f32 to vector<24x1xf32>
    %149 = arith.addf %145, %148 : vector<24x1xf32>
    %150 = math.rsqrt %149 : vector<24x1xf32>
    %151 = vector.broadcast %150 : vector<24x1xf32> to vector<24x64xf32>
    %152 = arith.mulf %147, %151 : vector<24x64xf32>
    %153 = vector.broadcast %132 : vector<1x64xf32> to vector<24x64xf32>
    %154 = arith.mulf %152, %153 : vector<24x64xf32>
    %155 = vector.broadcast %134 : vector<1x64xf32> to vector<24x64xf32>
    %156 = arith.addf %154, %155 : vector<24x64xf32>
    %c0_90 = arith.constant 0 : index
    %c0_91 = arith.constant 0 : index
    %c0_92 = arith.constant 0 : index
    %157 = vector.load %arg19[%c0_90, %c0_91, %c0_92] : memref<2x64x256xbf16, #tpu.memory_space<vmem>>, vector<1x64x256xbf16>
    %158 = vector.shape_cast %157 : vector<1x64x256xbf16> to vector<64x256xbf16>
    %159 = arith.truncf %156 : vector<24x64xf32> to vector<24x64xbf16>
    %cst_93 = arith.constant dense<0.000000e+00> : vector<24x256xf32>
    %160 = tpu.matmul %159, %158, %cst_93 {dimension_numbers = #tpu.dot_dimension_numbers<[1], [0], [0], [1], [0, 0, 1, 1], [], []>} : vector<24x64xbf16>, vector<64x256xbf16>, vector<24x256xf32> -> vector<24x256xf32>
    %c0_94 = arith.constant 0 : index
    %c0_95 = arith.constant 0 : index
    %c0_96 = arith.constant 0 : index
    %161 = vector.load %arg20[%c0_94, %c0_95, %c0_96] : memref<2x1x256xf32, #tpu.memory_space<vmem>>, vector<1x1x256xf32>
    %162 = vector.shape_cast %161 : vector<1x1x256xf32> to vector<1x256xf32>
    %163 = vector.broadcast %162 : vector<1x256xf32> to vector<24x256xf32>
    %164 = arith.addf %160, %163 : vector<24x256xf32>
    %165 = arith.mulf %164, %164 : vector<24x256xf32>
    %166 = arith.mulf %164, %165 : vector<24x256xf32>
    %cst_97 = arith.constant 4.471500e-02 : f32
    %167 = vector.broadcast %cst_97 : f32 to vector<24x256xf32>
    %168 = arith.mulf %167, %166 : vector<24x256xf32>
    %169 = arith.addf %164, %168 : vector<24x256xf32>
    %cst_98 = arith.constant 0.797884583 : f32
    %170 = vector.broadcast %cst_98 : f32 to vector<24x256xf32>
    %171 = arith.mulf %170, %169 : vector<24x256xf32>
    %172 = math.tanh %171 : vector<24x256xf32>
    %cst_99 = arith.constant 1.000000e+00 : f32
    %173 = vector.broadcast %cst_99 : f32 to vector<24x256xf32>
    %174 = arith.addf %173, %172 : vector<24x256xf32>
    %cst_100 = arith.constant 5.000000e-01 : f32
    %175 = vector.broadcast %cst_100 : f32 to vector<24x256xf32>
    %176 = arith.mulf %175, %174 : vector<24x256xf32>
    %177 = arith.mulf %164, %176 : vector<24x256xf32>
    %c0_101 = arith.constant 0 : index
    %c0_102 = arith.constant 0 : index
    %c0_103 = arith.constant 0 : index
    %178 = vector.load %arg21[%c0_101, %c0_102, %c0_103] : memref<2x256x64xbf16, #tpu.memory_space<vmem>>, vector<1x256x64xbf16>
    %179 = vector.shape_cast %178 : vector<1x256x64xbf16> to vector<256x64xbf16>
    %180 = arith.truncf %177 : vector<24x256xf32> to vector<24x256xbf16>
    %cst_104 = arith.constant dense<0.000000e+00> : vector<24x64xf32>
    %181 = tpu.matmul %180, %179, %cst_104 {dimension_numbers = #tpu.dot_dimension_numbers<[1], [0], [0], [1], [0, 0, 1, 1], [], []>} : vector<24x256xbf16>, vector<256x64xbf16>, vector<24x64xf32> -> vector<24x64xf32>
    %c0_105 = arith.constant 0 : index
    %c0_106 = arith.constant 0 : index
    %c0_107 = arith.constant 0 : index
    %182 = vector.load %arg22[%c0_105, %c0_106, %c0_107] : memref<2x1x64xf32, #tpu.memory_space<vmem>>, vector<1x1x64xf32>
    %183 = vector.shape_cast %182 : vector<1x1x64xf32> to vector<1x64xf32>
    %184 = vector.broadcast %183 : vector<1x64xf32> to vector<24x64xf32>
    %185 = arith.addf %181, %184 : vector<24x64xf32>
    %186 = arith.addf %130, %185 : vector<24x64xf32>
    %c1_108 = arith.constant 1 : index
    %c0_109 = arith.constant 0 : index
    %c0_110 = arith.constant 0 : index
    %187 = vector.load %arg7[%c1_108, %c0_109, %c0_110] : memref<2x1x64xf32, #tpu.memory_space<vmem>>, vector<1x1x64xf32>
    %188 = vector.shape_cast %187 : vector<1x1x64xf32> to vector<1x64xf32>
    %c1_111 = arith.constant 1 : index
    %c0_112 = arith.constant 0 : index
    %c0_113 = arith.constant 0 : index
    %189 = vector.load %arg8[%c1_111, %c0_112, %c0_113] : memref<2x1x64xf32, #tpu.memory_space<vmem>>, vector<1x1x64xf32>
    %190 = vector.shape_cast %189 : vector<1x1x64xf32> to vector<1x64xf32>
    %cst_114 = arith.constant dense<0.000000e+00> : vector<24xf32>
    %191 = vector.multi_reduction <add>, %186, %cst_114 [1] : vector<24x64xf32> to vector<24xf32>
    %192 = vector.shape_cast %191 : vector<24xf32> to vector<24x1xf32>
    %cst_115 = arith.constant 6.400000e+01 : f32
    %193 = vector.broadcast %cst_115 : f32 to vector<24x1xf32>
    %194 = arith.divf %192, %193 : vector<24x1xf32>
    %195 = vector.broadcast %194 : vector<24x1xf32> to vector<24x64xf32>
    %196 = arith.subf %186, %195 : vector<24x64xf32>
    %197 = arith.mulf %196, %196 : vector<24x64xf32>
    %cst_116 = arith.constant dense<0.000000e+00> : vector<24xf32>
    %198 = vector.multi_reduction <add>, %197, %cst_116 [1] : vector<24x64xf32> to vector<24xf32>
    %199 = vector.shape_cast %198 : vector<24xf32> to vector<24x1xf32>
    %cst_117 = arith.constant 6.400000e+01 : f32
    %200 = vector.broadcast %cst_117 : f32 to vector<24x1xf32>
    %201 = arith.divf %199, %200 : vector<24x1xf32>
    %202 = vector.broadcast %194 : vector<24x1xf32> to vector<24x64xf32>
    %203 = arith.subf %186, %202 : vector<24x64xf32>
    %cst_118 = arith.constant 9.99999997E-7 : f32
    %204 = vector.broadcast %cst_118 : f32 to vector<24x1xf32>
    %205 = arith.addf %201, %204 : vector<24x1xf32>
    %206 = math.rsqrt %205 : vector<24x1xf32>
    %207 = vector.broadcast %206 : vector<24x1xf32> to vector<24x64xf32>
    %208 = arith.mulf %203, %207 : vector<24x64xf32>
    %209 = vector.broadcast %188 : vector<1x64xf32> to vector<24x64xf32>
    %210 = arith.mulf %208, %209 : vector<24x64xf32>
    %211 = vector.broadcast %190 : vector<1x64xf32> to vector<24x64xf32>
    %212 = arith.addf %210, %211 : vector<24x64xf32>
    %c2 = arith.constant 2 : index
    %c0_119 = arith.constant 0 : index
    %c0_120 = arith.constant 0 : index
    %213 = vector.load %arg9[%c2, %c0_119, %c0_120] : memref<4x64x32xbf16, #tpu.memory_space<vmem>>, vector<1x64x32xbf16>
    %214 = vector.shape_cast %213 : vector<1x64x32xbf16> to vector<64x32xbf16>
    %215 = arith.truncf %212 : vector<24x64xf32> to vector<24x64xbf16>
    %cst_121 = arith.constant dense<0.000000e+00> : vector<24x32xf32>
    %216 = tpu.matmul %215, %214, %cst_121 {dimension_numbers = #tpu.dot_dimension_numbers<[1], [0], [0], [1], [0, 0, 1, 1], [], []>} : vector<24x64xbf16>, vector<64x32xbf16>, vector<24x32xf32> -> vector<24x32xf32>
    %c2_122 = arith.constant 2 : index
    %c0_123 = arith.constant 0 : index
    %c0_124 = arith.constant 0 : index
    %217 = vector.load %arg10[%c2_122, %c0_123, %c0_124] : memref<4x1x32xf32, #tpu.memory_space<vmem>>, vector<1x1x32xf32>
    %218 = vector.shape_cast %217 : vector<1x1x32xf32> to vector<1x32xf32>
    %219 = vector.broadcast %218 : vector<1x32xf32> to vector<24x32xf32>
    %220 = arith.addf %216, %219 : vector<24x32xf32>
    %c2_125 = arith.constant 2 : index
    %c0_126 = arith.constant 0 : index
    %c0_127 = arith.constant 0 : index
    %221 = vector.load %arg11[%c2_125, %c0_126, %c0_127] : memref<4x64x32xbf16, #tpu.memory_space<vmem>>, vector<1x64x32xbf16>
    %222 = vector.shape_cast %221 : vector<1x64x32xbf16> to vector<64x32xbf16>
    %223 = arith.truncf %212 : vector<24x64xf32> to vector<24x64xbf16>
    %cst_128 = arith.constant dense<0.000000e+00> : vector<24x32xf32>
    %224 = tpu.matmul %223, %222, %cst_128 {dimension_numbers = #tpu.dot_dimension_numbers<[1], [0], [0], [1], [0, 0, 1, 1], [], []>} : vector<24x64xbf16>, vector<64x32xbf16>, vector<24x32xf32> -> vector<24x32xf32>
    %c2_129 = arith.constant 2 : index
    %c0_130 = arith.constant 0 : index
    %c0_131 = arith.constant 0 : index
    %225 = vector.load %arg12[%c2_129, %c0_130, %c0_131] : memref<4x1x32xf32, #tpu.memory_space<vmem>>, vector<1x1x32xf32>
    %226 = vector.shape_cast %225 : vector<1x1x32xf32> to vector<1x32xf32>
    %227 = vector.broadcast %226 : vector<1x32xf32> to vector<24x32xf32>
    %228 = arith.addf %224, %227 : vector<24x32xf32>
    %c2_132 = arith.constant 2 : index
    %c0_133 = arith.constant 0 : index
    %c0_134 = arith.constant 0 : index
    %229 = vector.load %arg13[%c2_132, %c0_133, %c0_134] : memref<4x64x32xbf16, #tpu.memory_space<vmem>>, vector<1x64x32xbf16>
    %230 = vector.shape_cast %229 : vector<1x64x32xbf16> to vector<64x32xbf16>
    %231 = arith.truncf %212 : vector<24x64xf32> to vector<24x64xbf16>
    %cst_135 = arith.constant dense<0.000000e+00> : vector<24x32xf32>
    %232 = tpu.matmul %231, %230, %cst_135 {dimension_numbers = #tpu.dot_dimension_numbers<[1], [0], [0], [1], [0, 0, 1, 1], [], []>} : vector<24x64xbf16>, vector<64x32xbf16>, vector<24x32xf32> -> vector<24x32xf32>
    %c2_136 = arith.constant 2 : index
    %c0_137 = arith.constant 0 : index
    %c0_138 = arith.constant 0 : index
    %233 = vector.load %arg14[%c2_136, %c0_137, %c0_138] : memref<4x1x32xf32, #tpu.memory_space<vmem>>, vector<1x1x32xf32>
    %234 = vector.shape_cast %233 : vector<1x1x32xf32> to vector<1x32xf32>
    %235 = vector.broadcast %234 : vector<1x32xf32> to vector<24x32xf32>
    %236 = arith.addf %232, %235 : vector<24x32xf32>
    %237 = arith.truncf %220 : vector<24x32xf32> to vector<24x32xbf16>
    %238 = arith.truncf %228 : vector<24x32xf32> to vector<24x32xbf16>
    %cst_139 = arith.constant dense<0.000000e+00> : vector<24x24xf32>
    %239 = tpu.matmul %237, %238, %cst_139 {dimension_numbers = #tpu.dot_dimension_numbers<[1], [1], [0], [0], [0, 0, 1, 0], [], []>} : vector<24x32xbf16>, vector<24x32xbf16>, vector<24x24xf32> -> vector<24x24xf32>
    %240 = arith.addf %239, %12 : vector<24x24xf32>
    %cst_140 = arith.constant dense<0xFF800000> : vector<24xf32>
    %241 = vector.multi_reduction <maximumf>, %240, %cst_140 [1] : vector<24x24xf32> to vector<24xf32>
    %242 = vector.shape_cast %241 : vector<24xf32> to vector<24x1xf32>
    %243 = vector.broadcast %242 : vector<24x1xf32> to vector<24x24xf32>
    %244 = arith.subf %240, %243 : vector<24x24xf32>
    %245 = math.exp %244 : vector<24x24xf32>
    %cst_141 = arith.constant dense<0.000000e+00> : vector<24xf32>
    %246 = vector.multi_reduction <add>, %245, %cst_141 [1] : vector<24x24xf32> to vector<24xf32>
    %247 = vector.shape_cast %246 : vector<24xf32> to vector<24x1xf32>
    %248 = tpu.reciprocal %247 {approx = true} : vector<24x1xf32> -> vector<24x1xf32>
    %249 = vector.broadcast %248 : vector<24x1xf32> to vector<24x24xf32>
    %250 = arith.mulf %245, %249 : vector<24x24xf32>
    %251 = arith.truncf %250 : vector<24x24xf32> to vector<24x24xbf16>
    %252 = arith.truncf %236 : vector<24x32xf32> to vector<24x32xbf16>
    %cst_142 = arith.constant dense<0.000000e+00> : vector<24x32xf32>
    %253 = tpu.matmul %251, %252, %cst_142 {dimension_numbers = #tpu.dot_dimension_numbers<[1], [0], [0], [1], [0, 0, 1, 1], [], []>} : vector<24x24xbf16>, vector<24x32xbf16>, vector<24x32xf32> -> vector<24x32xf32>
    %c3 = arith.constant 3 : index
    %c0_143 = arith.constant 0 : index
    %c0_144 = arith.constant 0 : index
    %254 = vector.load %arg9[%c3, %c0_143, %c0_144] : memref<4x64x32xbf16, #tpu.memory_space<vmem>>, vector<1x64x32xbf16>
    %255 = vector.shape_cast %254 : vector<1x64x32xbf16> to vector<64x32xbf16>
    %256 = arith.truncf %212 : vector<24x64xf32> to vector<24x64xbf16>
    %cst_145 = arith.constant dense<0.000000e+00> : vector<24x32xf32>
    %257 = tpu.matmul %256, %255, %cst_145 {dimension_numbers = #tpu.dot_dimension_numbers<[1], [0], [0], [1], [0, 0, 1, 1], [], []>} : vector<24x64xbf16>, vector<64x32xbf16>, vector<24x32xf32> -> vector<24x32xf32>
    %c3_146 = arith.constant 3 : index
    %c0_147 = arith.constant 0 : index
    %c0_148 = arith.constant 0 : index
    %258 = vector.load %arg10[%c3_146, %c0_147, %c0_148] : memref<4x1x32xf32, #tpu.memory_space<vmem>>, vector<1x1x32xf32>
    %259 = vector.shape_cast %258 : vector<1x1x32xf32> to vector<1x32xf32>
    %260 = vector.broadcast %259 : vector<1x32xf32> to vector<24x32xf32>
    %261 = arith.addf %257, %260 : vector<24x32xf32>
    %c3_149 = arith.constant 3 : index
    %c0_150 = arith.constant 0 : index
    %c0_151 = arith.constant 0 : index
    %262 = vector.load %arg11[%c3_149, %c0_150, %c0_151] : memref<4x64x32xbf16, #tpu.memory_space<vmem>>, vector<1x64x32xbf16>
    %263 = vector.shape_cast %262 : vector<1x64x32xbf16> to vector<64x32xbf16>
    %264 = arith.truncf %212 : vector<24x64xf32> to vector<24x64xbf16>
    %cst_152 = arith.constant dense<0.000000e+00> : vector<24x32xf32>
    %265 = tpu.matmul %264, %263, %cst_152 {dimension_numbers = #tpu.dot_dimension_numbers<[1], [0], [0], [1], [0, 0, 1, 1], [], []>} : vector<24x64xbf16>, vector<64x32xbf16>, vector<24x32xf32> -> vector<24x32xf32>
    %c3_153 = arith.constant 3 : index
    %c0_154 = arith.constant 0 : index
    %c0_155 = arith.constant 0 : index
    %266 = vector.load %arg12[%c3_153, %c0_154, %c0_155] : memref<4x1x32xf32, #tpu.memory_space<vmem>>, vector<1x1x32xf32>
    %267 = vector.shape_cast %266 : vector<1x1x32xf32> to vector<1x32xf32>
    %268 = vector.broadcast %267 : vector<1x32xf32> to vector<24x32xf32>
    %269 = arith.addf %265, %268 : vector<24x32xf32>
    %c3_156 = arith.constant 3 : index
    %c0_157 = arith.constant 0 : index
    %c0_158 = arith.constant 0 : index
    %270 = vector.load %arg13[%c3_156, %c0_157, %c0_158] : memref<4x64x32xbf16, #tpu.memory_space<vmem>>, vector<1x64x32xbf16>
    %271 = vector.shape_cast %270 : vector<1x64x32xbf16> to vector<64x32xbf16>
    %272 = arith.truncf %212 : vector<24x64xf32> to vector<24x64xbf16>
    %cst_159 = arith.constant dense<0.000000e+00> : vector<24x32xf32>
    %273 = tpu.matmul %272, %271, %cst_159 {dimension_numbers = #tpu.dot_dimension_numbers<[1], [0], [0], [1], [0, 0, 1, 1], [], []>} : vector<24x64xbf16>, vector<64x32xbf16>, vector<24x32xf32> -> vector<24x32xf32>
    %c3_160 = arith.constant 3 : index
    %c0_161 = arith.constant 0 : index
    %c0_162 = arith.constant 0 : index
    %274 = vector.load %arg14[%c3_160, %c0_161, %c0_162] : memref<4x1x32xf32, #tpu.memory_space<vmem>>, vector<1x1x32xf32>
    %275 = vector.shape_cast %274 : vector<1x1x32xf32> to vector<1x32xf32>
    %276 = vector.broadcast %275 : vector<1x32xf32> to vector<24x32xf32>
    %277 = arith.addf %273, %276 : vector<24x32xf32>
    %278 = arith.truncf %261 : vector<24x32xf32> to vector<24x32xbf16>
    %279 = arith.truncf %269 : vector<24x32xf32> to vector<24x32xbf16>
    %cst_163 = arith.constant dense<0.000000e+00> : vector<24x24xf32>
    %280 = tpu.matmul %278, %279, %cst_163 {dimension_numbers = #tpu.dot_dimension_numbers<[1], [1], [0], [0], [0, 0, 1, 0], [], []>} : vector<24x32xbf16>, vector<24x32xbf16>, vector<24x24xf32> -> vector<24x24xf32>
    %281 = arith.addf %280, %12 : vector<24x24xf32>
    %cst_164 = arith.constant dense<0xFF800000> : vector<24xf32>
    %282 = vector.multi_reduction <maximumf>, %281, %cst_164 [1] : vector<24x24xf32> to vector<24xf32>
    %283 = vector.shape_cast %282 : vector<24xf32> to vector<24x1xf32>
    %284 = vector.broadcast %283 : vector<24x1xf32> to vector<24x24xf32>
    %285 = arith.subf %281, %284 : vector<24x24xf32>
    %286 = math.exp %285 : vector<24x24xf32>
    %cst_165 = arith.constant dense<0.000000e+00> : vector<24xf32>
    %287 = vector.multi_reduction <add>, %286, %cst_165 [1] : vector<24x24xf32> to vector<24xf32>
    %288 = vector.shape_cast %287 : vector<24xf32> to vector<24x1xf32>
    %289 = tpu.reciprocal %288 {approx = true} : vector<24x1xf32> -> vector<24x1xf32>
    %290 = vector.broadcast %289 : vector<24x1xf32> to vector<24x24xf32>
    %291 = arith.mulf %286, %290 : vector<24x24xf32>
    %292 = arith.truncf %291 : vector<24x24xf32> to vector<24x24xbf16>
    %293 = arith.truncf %277 : vector<24x32xf32> to vector<24x32xbf16>
    %cst_166 = arith.constant dense<0.000000e+00> : vector<24x32xf32>
    %294 = tpu.matmul %292, %293, %cst_166 {dimension_numbers = #tpu.dot_dimension_numbers<[1], [0], [0], [1], [0, 0, 1, 1], [], []>} : vector<24x24xbf16>, vector<24x32xbf16>, vector<24x32xf32> -> vector<24x32xf32>
    %295 = tpu.concatenate %253, %294 in 1 : vector<24x32xf32>, vector<24x32xf32> -> vector<24x64xf32>
    %c1_167 = arith.constant 1 : index
    %c0_168 = arith.constant 0 : index
    %c0_169 = arith.constant 0 : index
    %296 = vector.load %arg15[%c1_167, %c0_168, %c0_169] : memref<2x64x64xbf16, #tpu.memory_space<vmem>>, vector<1x64x64xbf16>
    %297 = vector.shape_cast %296 : vector<1x64x64xbf16> to vector<64x64xbf16>
    %298 = arith.truncf %295 : vector<24x64xf32> to vector<24x64xbf16>
    %cst_170 = arith.constant dense<0.000000e+00> : vector<24x64xf32>
    %299 = tpu.matmul %298, %297, %cst_170 {dimension_numbers = #tpu.dot_dimension_numbers<[1], [0], [0], [1], [0, 0, 1, 1], [], []>} : vector<24x64xbf16>, vector<64x64xbf16>, vector<24x64xf32> -> vector<24x64xf32>
    %300 = arith.addf %186, %299 : vector<24x64xf32>
    %c1_171 = arith.constant 1 : index
    %c0_172 = arith.constant 0 : index
    %c0_173 = arith.constant 0 : index
    %301 = vector.load %arg16[%c1_171, %c0_172, %c0_173] : memref<2x1x64xf32, #tpu.memory_space<vmem>>, vector<1x1x64xf32>
    %302 = vector.shape_cast %301 : vector<1x1x64xf32> to vector<1x64xf32>
    %303 = vector.broadcast %302 : vector<1x64xf32> to vector<24x64xf32>
    %304 = arith.addf %300, %303 : vector<24x64xf32>
    %c1_174 = arith.constant 1 : index
    %c0_175 = arith.constant 0 : index
    %c0_176 = arith.constant 0 : index
    %305 = vector.load %arg17[%c1_174, %c0_175, %c0_176] : memref<2x1x64xf32, #tpu.memory_space<vmem>>, vector<1x1x64xf32>
    %306 = vector.shape_cast %305 : vector<1x1x64xf32> to vector<1x64xf32>
    %c1_177 = arith.constant 1 : index
    %c0_178 = arith.constant 0 : index
    %c0_179 = arith.constant 0 : index
    %307 = vector.load %arg18[%c1_177, %c0_178, %c0_179] : memref<2x1x64xf32, #tpu.memory_space<vmem>>, vector<1x1x64xf32>
    %308 = vector.shape_cast %307 : vector<1x1x64xf32> to vector<1x64xf32>
    %cst_180 = arith.constant dense<0.000000e+00> : vector<24xf32>
    %309 = vector.multi_reduction <add>, %304, %cst_180 [1] : vector<24x64xf32> to vector<24xf32>
    %310 = vector.shape_cast %309 : vector<24xf32> to vector<24x1xf32>
    %cst_181 = arith.constant 6.400000e+01 : f32
    %311 = vector.broadcast %cst_181 : f32 to vector<24x1xf32>
    %312 = arith.divf %310, %311 : vector<24x1xf32>
    %313 = vector.broadcast %312 : vector<24x1xf32> to vector<24x64xf32>
    %314 = arith.subf %304, %313 : vector<24x64xf32>
    %315 = arith.mulf %314, %314 : vector<24x64xf32>
    %cst_182 = arith.constant dense<0.000000e+00> : vector<24xf32>
    %316 = vector.multi_reduction <add>, %315, %cst_182 [1] : vector<24x64xf32> to vector<24xf32>
    %317 = vector.shape_cast %316 : vector<24xf32> to vector<24x1xf32>
    %cst_183 = arith.constant 6.400000e+01 : f32
    %318 = vector.broadcast %cst_183 : f32 to vector<24x1xf32>
    %319 = arith.divf %317, %318 : vector<24x1xf32>
    %320 = vector.broadcast %312 : vector<24x1xf32> to vector<24x64xf32>
    %321 = arith.subf %304, %320 : vector<24x64xf32>
    %cst_184 = arith.constant 9.99999997E-7 : f32
    %322 = vector.broadcast %cst_184 : f32 to vector<24x1xf32>
    %323 = arith.addf %319, %322 : vector<24x1xf32>
    %324 = math.rsqrt %323 : vector<24x1xf32>
    %325 = vector.broadcast %324 : vector<24x1xf32> to vector<24x64xf32>
    %326 = arith.mulf %321, %325 : vector<24x64xf32>
    %327 = vector.broadcast %306 : vector<1x64xf32> to vector<24x64xf32>
    %328 = arith.mulf %326, %327 : vector<24x64xf32>
    %329 = vector.broadcast %308 : vector<1x64xf32> to vector<24x64xf32>
    %330 = arith.addf %328, %329 : vector<24x64xf32>
    %c1_185 = arith.constant 1 : index
    %c0_186 = arith.constant 0 : index
    %c0_187 = arith.constant 0 : index
    %331 = vector.load %arg19[%c1_185, %c0_186, %c0_187] : memref<2x64x256xbf16, #tpu.memory_space<vmem>>, vector<1x64x256xbf16>
    %332 = vector.shape_cast %331 : vector<1x64x256xbf16> to vector<64x256xbf16>
    %333 = arith.truncf %330 : vector<24x64xf32> to vector<24x64xbf16>
    %cst_188 = arith.constant dense<0.000000e+00> : vector<24x256xf32>
    %334 = tpu.matmul %333, %332, %cst_188 {dimension_numbers = #tpu.dot_dimension_numbers<[1], [0], [0], [1], [0, 0, 1, 1], [], []>} : vector<24x64xbf16>, vector<64x256xbf16>, vector<24x256xf32> -> vector<24x256xf32>
    %c1_189 = arith.constant 1 : index
    %c0_190 = arith.constant 0 : index
    %c0_191 = arith.constant 0 : index
    %335 = vector.load %arg20[%c1_189, %c0_190, %c0_191] : memref<2x1x256xf32, #tpu.memory_space<vmem>>, vector<1x1x256xf32>
    %336 = vector.shape_cast %335 : vector<1x1x256xf32> to vector<1x256xf32>
    %337 = vector.broadcast %336 : vector<1x256xf32> to vector<24x256xf32>
    %338 = arith.addf %334, %337 : vector<24x256xf32>
    %339 = arith.mulf %338, %338 : vector<24x256xf32>
    %340 = arith.mulf %338, %339 : vector<24x256xf32>
    %cst_192 = arith.constant 4.471500e-02 : f32
    %341 = vector.broadcast %cst_192 : f32 to vector<24x256xf32>
    %342 = arith.mulf %341, %340 : vector<24x256xf32>
    %343 = arith.addf %338, %342 : vector<24x256xf32>
    %cst_193 = arith.constant 0.797884583 : f32
    %344 = vector.broadcast %cst_193 : f32 to vector<24x256xf32>
    %345 = arith.mulf %344, %343 : vector<24x256xf32>
    %346 = math.tanh %345 : vector<24x256xf32>
    %cst_194 = arith.constant 1.000000e+00 : f32
    %347 = vector.broadcast %cst_194 : f32 to vector<24x256xf32>
    %348 = arith.addf %347, %346 : vector<24x256xf32>
    %cst_195 = arith.constant 5.000000e-01 : f32
    %349 = vector.broadcast %cst_195 : f32 to vector<24x256xf32>
    %350 = arith.mulf %349, %348 : vector<24x256xf32>
    %351 = arith.mulf %338, %350 : vector<24x256xf32>
    %c1_196 = arith.constant 1 : index
    %c0_197 = arith.constant 0 : index
    %c0_198 = arith.constant 0 : index
    %352 = vector.load %arg21[%c1_196, %c0_197, %c0_198] : memref<2x256x64xbf16, #tpu.memory_space<vmem>>, vector<1x256x64xbf16>
    %353 = vector.shape_cast %352 : vector<1x256x64xbf16> to vector<256x64xbf16>
    %354 = arith.truncf %351 : vector<24x256xf32> to vector<24x256xbf16>
    %cst_199 = arith.constant dense<0.000000e+00> : vector<24x64xf32>
    %355 = tpu.matmul %354, %353, %cst_199 {dimension_numbers = #tpu.dot_dimension_numbers<[1], [0], [0], [1], [0, 0, 1, 1], [], []>} : vector<24x256xbf16>, vector<256x64xbf16>, vector<24x64xf32> -> vector<24x64xf32>
    %c1_200 = arith.constant 1 : index
    %c0_201 = arith.constant 0 : index
    %c0_202 = arith.constant 0 : index
    %356 = vector.load %arg22[%c1_200, %c0_201, %c0_202] : memref<2x1x64xf32, #tpu.memory_space<vmem>>, vector<1x1x64xf32>
    %357 = vector.shape_cast %356 : vector<1x1x64xf32> to vector<1x64xf32>
    %358 = vector.broadcast %357 : vector<1x64xf32> to vector<24x64xf32>
    %359 = arith.addf %355, %358 : vector<24x64xf32>
    %360 = arith.addf %304, %359 : vector<24x64xf32>
    %361 = vector.extract_strided_slice %360 {offsets = [0, 0], sizes = [8, 64], strides = [1, 1]} : vector<24x64xf32> to vector<8x64xf32>
    %c0_203 = arith.constant 0 : index
    %c0_204 = arith.constant 0 : index
    %362 = vector.load %arg23[%c0_203, %c0_204] : memref<1x64xf32, #tpu.memory_space<vmem>>, vector<1x64xf32>
    %c0_205 = arith.constant 0 : index
    %c0_206 = arith.constant 0 : index
    %363 = vector.load %arg24[%c0_205, %c0_206] : memref<1x64xf32, #tpu.memory_space<vmem>>, vector<1x64xf32>
    %cst_207 = arith.constant dense<0.000000e+00> : vector<8xf32>
    %364 = vector.multi_reduction <add>, %361, %cst_207 [1] : vector<8x64xf32> to vector<8xf32>
    %365 = vector.shape_cast %364 : vector<8xf32> to vector<8x1xf32>
    %cst_208 = arith.constant 6.400000e+01 : f32
    %366 = vector.broadcast %cst_208 : f32 to vector<8x1xf32>
    %367 = arith.divf %365, %366 : vector<8x1xf32>
    %368 = vector.broadcast %367 : vector<8x1xf32> to vector<8x64xf32>
    %369 = arith.subf %361, %368 : vector<8x64xf32>
    %370 = arith.mulf %369, %369 : vector<8x64xf32>
    %cst_209 = arith.constant dense<0.000000e+00> : vector<8xf32>
    %371 = vector.multi_reduction <add>, %370, %cst_209 [1] : vector<8x64xf32> to vector<8xf32>
    %372 = vector.shape_cast %371 : vector<8xf32> to vector<8x1xf32>
    %cst_210 = arith.constant 6.400000e+01 : f32
    %373 = vector.broadcast %cst_210 : f32 to vector<8x1xf32>
    %374 = arith.divf %372, %373 : vector<8x1xf32>
    %375 = vector.broadcast %367 : vector<8x1xf32> to vector<8x64xf32>
    %376 = arith.subf %361, %375 : vector<8x64xf32>
    %cst_211 = arith.constant 9.99999997E-7 : f32
    %377 = vector.broadcast %cst_211 : f32 to vector<8x1xf32>
    %378 = arith.addf %374, %377 : vector<8x1xf32>
    %379 = math.rsqrt %378 : vector<8x1xf32>
    %380 = vector.broadcast %379 : vector<8x1xf32> to vector<8x64xf32>
    %381 = arith.mulf %376, %380 : vector<8x64xf32>
    %382 = vector.broadcast %362 : vector<1x64xf32> to vector<8x64xf32>
    %383 = arith.mulf %381, %382 : vector<8x64xf32>
    %384 = vector.broadcast %363 : vector<1x64xf32> to vector<8x64xf32>
    %385 = arith.addf %383, %384 : vector<8x64xf32>
    %c0_212 = arith.constant 0 : index
    %c0_213 = arith.constant 0 : index
    %386 = vector.load %arg25[%c0_212, %c0_213] : memref<64x128xbf16, #tpu.memory_space<vmem>>, vector<64x128xbf16>
    %387 = arith.truncf %385 : vector<8x64xf32> to vector<8x64xbf16>
    %cst_214 = arith.constant dense<0.000000e+00> : vector<8x128xf32>
    %388 = tpu.matmul %387, %386, %cst_214 {dimension_numbers = #tpu.dot_dimension_numbers<[1], [0], [0], [1], [0, 0, 1, 1], [], []>} : vector<8x64xbf16>, vector<64x128xbf16>, vector<8x128xf32> -> vector<8x128xf32>
    %c0_215 = arith.constant 0 : index
    %c0_216 = arith.constant 0 : index
    %389 = vector.load %arg26[%c0_215, %c0_216] : memref<1x128xf32, #tpu.memory_space<vmem>>, vector<1x128xf32>
    %390 = vector.broadcast %389 : vector<1x128xf32> to vector<8x128xf32>
    %391 = arith.addf %388, %390 : vector<8x128xf32>
    %c0_217 = arith.constant 0 : index
    %c0_218 = arith.constant 0 : index
    %c0_219 = arith.constant 0 : index
    %392 = vector.load %arg27[%c0_217, %c0_218, %c0_219] : memref<1x8x128xf32, #tpu.memory_space<vmem>>, vector<1x8x128xf32>
    %393 = vector.shape_cast %392 : vector<1x8x128xf32> to vector<8x128xf32>
    %394 = vector.shape_cast %391 : vector<8x128xf32> to vector<1x8x128xf32>
    tpu.vector_store %arg27[%c0_217, %c0_218, %c0_219], %394 {strides = array<i32>} : memref<1x8x128xf32, #tpu.memory_space<vmem>>, vector<1x8x128xf32>,
    return
  }
  func.func @transform_0(%arg0: i32) -> (i32, i32, i32) {
    %c0_i32 = arith.constant 0 : i32
    %c0_i32_0 = arith.constant 0 : i32
    %c0_i32_1 = arith.constant 0 : i32
    return %arg0, %c0_i32, %c0_i32_0 : i32, i32, i32
  }
  func.func @transform_1(%arg0: i32) -> (i32, i32) {
    %c0_i32 = arith.constant 0 : i32
    %c0_i32_0 = arith.constant 0 : i32
    %c0_i32_1 = arith.constant 0 : i32
    return %c0_i32, %c0_i32_0 : i32, i32
  }
  func.func @transform_2(%arg0: i32) -> (i32, i32) {
    %c0_i32 = arith.constant 0 : i32
    %c0_i32_0 = arith.constant 0 : i32
    %c0_i32_1 = arith.constant 0 : i32
    return %c0_i32, %c0_i32_0 : i32, i32
  }
  func.func @transform_3(%arg0: i32) -> (i32, i32) {
    %c0_i32 = arith.constant 0 : i32
    %c0_i32_0 = arith.constant 0 : i32
    %c0_i32_1 = arith.constant 0 : i32
    return %c0_i32, %c0_i32_0 : i32, i32
  }
  func.func @transform_4(%arg0: i32) -> (i32, i32) {
    %c0_i32 = arith.constant 0 : i32
    %c0_i32_0 = arith.constant 0 : i32
    %c0_i32_1 = arith.constant 0 : i32
    return %c0_i32, %c0_i32_0 : i32, i32
  }
  func.func @transform_5(%arg0: i32) -> (i32, i32) {
    %c0_i32 = arith.constant 0 : i32
    %c0_i32_0 = arith.constant 0 : i32
    %c0_i32_1 = arith.constant 0 : i32
    return %c0_i32, %c0_i32_0 : i32, i32
  }
  func.func @transform_6(%arg0: i32) -> (i32, i32, i32) {
    %c0_i32 = arith.constant 0 : i32
    %c0_i32_0 = arith.constant 0 : i32
    %c0_i32_1 = arith.constant 0 : i32
    %c0_i32_2 = arith.constant 0 : i32
    return %c0_i32, %c0_i32_0, %c0_i32_1 : i32, i32, i32
  }
  func.func @transform_7(%arg0: i32) -> (i32, i32, i32) {
    %c0_i32 = arith.constant 0 : i32
    %c0_i32_0 = arith.constant 0 : i32
    %c0_i32_1 = arith.constant 0 : i32
    %c0_i32_2 = arith.constant 0 : i32
    return %c0_i32, %c0_i32_0, %c0_i32_1 : i32, i32, i32
  }
  func.func @transform_8(%arg0: i32) -> (i32, i32, i32) {
    %c0_i32 = arith.constant 0 : i32
    %c0_i32_0 = arith.constant 0 : i32
    %c0_i32_1 = arith.constant 0 : i32
    %c0_i32_2 = arith.constant 0 : i32
    return %c0_i32, %c0_i32_0, %c0_i32_1 : i32, i32, i32
  }
  func.func @transform_9(%arg0: i32) -> (i32, i32, i32) {
    %c0_i32 = arith.constant 0 : i32
    %c0_i32_0 = arith.constant 0 : i32
    %c0_i32_1 = arith.constant 0 : i32
    %c0_i32_2 = arith.constant 0 : i32
    return %c0_i32, %c0_i32_0, %c0_i32_1 : i32, i32, i32
  }
  func.func @transform_10(%arg0: i32) -> (i32, i32, i32) {
    %c0_i32 = arith.constant 0 : i32
    %c0_i32_0 = arith.constant 0 : i32
    %c0_i32_1 = arith.constant 0 : i32
    %c0_i32_2 = arith.constant 0 : i32
    return %c0_i32, %c0_i32_0, %c0_i32_1 : i32, i32, i32
  }
  func.func @transform_11(%arg0: i32) -> (i32, i32, i32) {
    %c0_i32 = arith.constant 0 : i32
    %c0_i32_0 = arith.constant 0 : i32
    %c0_i32_1 = arith.constant 0 : i32
    %c0_i32_2 = arith.constant 0 : i32
    return %c0_i32, %c0_i32_0, %c0_i32_1 : i32, i32, i32
  }
  func.func @transform_12(%arg0: i32) -> (i32, i32, i32) {
    %c0_i32 = arith.constant 0 : i32
    %c0_i32_0 = arith.constant 0 : i32
    %c0_i32_1 = arith.constant 0 : i32
    %c0_i32_2 = arith.constant 0 : i32
    return %c0_i32, %c0_i32_0, %c0_i32_1 : i32, i32, i32
  }
  func.func @transform_13(%arg0: i32) -> (i32, i32, i32) {
    %c0_i32 = arith.constant 0 : i32
    %c0_i32_0 = arith.constant 0 : i32
    %c0_i32_1 = arith.constant 0 : i32
    %c0_i32_2 = arith.constant 0 : i32
    return %c0_i32, %c0_i32_0, %c0_i32_1 : i32, i32, i32
  }
  func.func @transform_14(%arg0: i32) -> (i32, i32, i32) {
    %c0_i32 = arith.constant 0 : i32
    %c0_i32_0 = arith.constant 0 : i32
    %c0_i32_1 = arith.constant 0 : i32
    %c0_i32_2 = arith.constant 0 : i32
    return %c0_i32, %c0_i32_0, %c0_i32_1 : i32, i32, i32
  }
  func.func @transform_15(%arg0: i32) -> (i32, i32, i32) {
    %c0_i32 = arith.constant 0 : i32
    %c0_i32_0 = arith.constant 0 : i32
    %c0_i32_1 = arith.constant 0 : i32
    %c0_i32_2 = arith.constant 0 : i32
    return %c0_i32, %c0_i32_0, %c0_i32_1 : i32, i32, i32
  }
  func.func @transform_16(%arg0: i32) -> (i32, i32, i32) {
    %c0_i32 = arith.constant 0 : i32
    %c0_i32_0 = arith.constant 0 : i32
    %c0_i32_1 = arith.constant 0 : i32
    %c0_i32_2 = arith.constant 0 : i32
    return %c0_i32, %c0_i32_0, %c0_i32_1 : i32, i32, i32
  }
  func.func @transform_17(%arg0: i32) -> (i32, i32, i32) {
    %c0_i32 = arith.constant 0 : i32
    %c0_i32_0 = arith.constant 0 : i32
    %c0_i32_1 = arith.constant 0 : i32
    %c0_i32_2 = arith.constant 0 : i32
    return %c0_i32, %c0_i32_0, %c0_i32_1 : i32, i32, i32
  }
  func.func @transform_18(%arg0: i32) -> (i32, i32, i32) {
    %c0_i32 = arith.constant 0 : i32
    %c0_i32_0 = arith.constant 0 : i32
    %c0_i32_1 = arith.constant 0 : i32
    %c0_i32_2 = arith.constant 0 : i32
    return %c0_i32, %c0_i32_0, %c0_i32_1 : i32, i32, i32
  }
  func.func @transform_19(%arg0: i32) -> (i32, i32, i32) {
    %c0_i32 = arith.constant 0 : i32
    %c0_i32_0 = arith.constant 0 : i32
    %c0_i32_1 = arith.constant 0 : i32
    %c0_i32_2 = arith.constant 0 : i32
    return %c0_i32, %c0_i32_0, %c0_i32_1 : i32, i32, i32
  }
  func.func @transform_20(%arg0: i32) -> (i32, i32, i32) {
    %c0_i32 = arith.constant 0 : i32
    %c0_i32_0 = arith.constant 0 : i32
    %c0_i32_1 = arith.constant 0 : i32
    %c0_i32_2 = arith.constant 0 : i32
    return %c0_i32, %c0_i32_0, %c0_i32_1 : i32, i32, i32
  }
  func.func @transform_21(%arg0: i32) -> (i32, i32, i32) {
    %c0_i32 = arith.constant 0 : i32
    %c0_i32_0 = arith.constant 0 : i32
    %c0_i32_1 = arith.constant 0 : i32
    %c0_i32_2 = arith.constant 0 : i32
    return %c0_i32, %c0_i32_0, %c0_i32_1 : i32, i32, i32
  }
  func.func @transform_22(%arg0: i32) -> (i32, i32) {
    %c0_i32 = arith.constant 0 : i32
    %c0_i32_0 = arith.constant 0 : i32
    %c0_i32_1 = arith.constant 0 : i32
    return %c0_i32, %c0_i32_0 : i32, i32
  }
  func.func @transform_23(%arg0: i32) -> (i32, i32) {
    %c0_i32 = arith.constant 0 : i32
    %c0_i32_0 = arith.constant 0 : i32
    %c0_i32_1 = arith.constant 0 : i32
    return %c0_i32, %c0_i32_0 : i32, i32
  }
  func.func @transform_24(%arg0: i32) -> (i32, i32) {
    %c0_i32 = arith.constant 0 : i32
    %c0_i32_0 = arith.constant 0 : i32
    %c0_i32_1 = arith.constant 0 : i32
    return %c0_i32, %c0_i32_0 : i32, i32
  }
  func.func @transform_25(%arg0: i32) -> (i32, i32) {
    %c0_i32 = arith.constant 0 : i32
    %c0_i32_0 = arith.constant 0 : i32
    %c0_i32_1 = arith.constant 0 : i32
    return %c0_i32, %c0_i32_0 : i32, i32
  }
  func.func @transform_26(%arg0: i32) -> (i32, i32, i32) {
    %c0_i32 = arith.constant 0 : i32
    %c0_i32_0 = arith.constant 0 : i32
    %c0_i32_1 = arith.constant 0 : i32
    return %arg0, %c0_i32, %c0_i32_0 : i32, i32, i32
  }
}

</mosaic_0001>

<llo_original>
// kernel: deit_forward.1
$region0: #{deit_forward.1}
  #allocation0 [shape = 'u32[]', space=smem, size = 0x4, offset = 0x4, fixed_abs, tag = 'smem constant byte address 0x4 - core index']
  #allocation1 [shape = 'u32[72,128]{1,0:T(1,128)}', space=vmem, size = 0x9000, scoped, tag = 'internal scratch']
  %s0 = inlined_call_operand.vmem [shape: f32[2,16,768], index: 0, kind: input, shape index: {}]
  %s1 = inlined_call_operand.vmem [shape: f32[8,64], index: 1, kind: input, shape index: {}]
  %s2 = inlined_call_operand.vmem [shape: f32[16,64], index: 2, kind: input, shape index: {}]
  %s3 = inlined_call_operand.vmem [shape: f32[24,24], index: 3, kind: input, shape index: {}]
  %s4 = inlined_call_operand.vmem [shape: bf16[768,64], index: 4, kind: input, shape index: {}]
  %s5 = inlined_call_operand.vmem [shape: f32[1,64], index: 5, kind: input, shape index: {}]
  %s6 = inlined_call_operand.vmem [shape: f32[2,1,64], index: 6, kind: input, shape index: {}]
  %s7 = inlined_call_operand.vmem [shape: f32[2,1,64], index: 7, kind: input, shape index: {}]
  %s8 = inlined_call_operand.vmem [shape: bf16[4,64,32], index: 8, kind: input, shape index: {}]
  %s9 = inlined_call_operand.vmem [shape: f32[4,1,32], index: 9, kind: input, shape index: {}]
  %s10 = inlined_call_operand.vmem [shape: bf16[4,64,32], index: 10, kind: input, shape index: {}]
  %s11 = inlined_call_operand.vmem [shape: f32[4,1,32], index: 11, kind: input, shape index: {}]
  %s12 = inlined_call_operand.vmem [shape: bf16[4,64,32], index: 12, kind: input, shape index: {}]
  %s13 = inlined_call_operand.vmem [shape: f32[4,1,32], index: 13, kind: input, shape index: {}]
  %s14 = inlined_call_operand.vmem [shape: bf16[2,64,64], index: 14, kind: input, shape index: {}]
  %s15 = inlined_call_operand.vmem [shape: f32[2,1,64], index: 15, kind: input, shape index: {}]
  %s16 = inlined_call_operand.vmem [shape: f32[2,1,64], index: 16, kind: input, shape index: {}]
  %s17 = inlined_call_operand.vmem [shape: f32[2,1,64], index: 17, kind: input, shape index: {}]
  %s18 = inlined_call_operand.vmem [shape: bf16[2,64,256], index: 18, kind: input, shape index: {}]
  %s19 = inlined_call_operand.vmem [shape: f32[2,1,256], index: 19, kind: input, shape index: {}]
  %s20 = inlined_call_operand.vmem [shape: bf16[2,256,64], index: 20, kind: input, shape index: {}]
  %s21 = inlined_call_operand.vmem [shape: f32[2,1,64], index: 21, kind: input, shape index: {}]
  %s22 = inlined_call_operand.vmem [shape: f32[1,64], index: 22, kind: input, shape index: {}]
  %s23 = inlined_call_operand.vmem [shape: f32[1,64], index: 23, kind: input, shape index: {}]
  %s24 = inlined_call_operand.vmem [shape: bf16[64,128], index: 24, kind: input, shape index: {}]
  %s25 = inlined_call_operand.vmem [shape: f32[1,128], index: 25, kind: input, shape index: {}]
  %s26 = inlined_call_operand.vmem [shape: f32[2,8,128], index: 26, kind: output, shape index: {}]
  %s27 = sld [smem:[#allocation0]]
  $region137: #{deit_forward.1} parent=0
    _
  %s29 = ssub.s32 1, %s27
  %s30 = scalar_select 0, %s29, %s27
  loop: start=0, step=1, limit=4
  $region2: #{deit_forward.1} parent=0 // loop_pre_header
    _
  $region3: #{deit_forward.1} parent=0 // loop_header
    %s32 = sphi 0, %s36
    %p33 = scmp.ge.s32.totalorder %s32, 4
    %s42 = sphi 0, %s44
    %s45 = sphi 0, %s42
    %s46 = sphi 0, %s45
    %s62 = sphi 0, %s46
    %s66 = sphi 0, %s66
    %s68 = sphi 0, %s66
    %s69 = sphi 0, %s68
    %s83 = sphi 0, %s69
    %s87 = sphi 0, %s87
    %s89 = sphi 0, %s87
    %s90 = sphi 0, %s89
    %s104 = sphi 0, %s90
    %s108 = sphi 0, %s108
    %s110 = sphi 0, %s108
    %s111 = sphi 0, %s110
    %s125 = sphi 0, %s111
    %s129 = sphi 0, %s129
    %s131 = sphi 0, %s129
    %s132 = sphi 0, %s131
    %s146 = sphi 0, %s132
    %s150 = sphi 0, %s150
    %s152 = sphi 0, %s150
    %s153 = sphi 0, %s152
    %s167 = sphi 0, %s153
    %s171 = sphi 0, %s171
    %s173 = sphi 0, %s171
    %s174 = sphi 0, %s173
    %s188 = sphi 0, %s174
    %s192 = sphi 0, %s192
    %s194 = sphi 0, %s192
    %s195 = sphi 0, %s194
    %s209 = sphi 0, %s195
    %s213 = sphi 0, %s213
    %s215 = sphi 0, %s213
    %s216 = sphi 0, %s215
    %s230 = sphi 0, %s216
    %s234 = sphi 0, %s234
    %s236 = sphi 0, %s234
    %s237 = sphi 0, %s236
    %s251 = sphi 0, %s237
    %s255 = sphi 0, %s255
    %s257 = sphi 0, %s255
    %s258 = sphi 0, %s257
    %s272 = sphi 0, %s258
    %s276 = sphi 0, %s276
    %s278 = sphi 0, %s276
    %s279 = sphi 0, %s278
    %s293 = sphi 0, %s279
    %s297 = sphi 0, %s297
    %s299 = sphi 0, %s297
    %s300 = sphi 0, %s299
    %s314 = sphi 0, %s300
    %s318 = sphi 0, %s318
    %s320 = sphi 0, %s318
    %s321 = sphi 0, %s320
    %s335 = sphi 0, %s321
    %s339 = sphi 0, %s339
    %s341 = sphi 0, %s339
    %s342 = sphi 0, %s341
    %s356 = sphi 0, %s342
    %s360 = sphi 0, %s360
    %s362 = sphi 0, %s360
    %s363 = sphi 0, %s362
    %s377 = sphi 0, %s363
    %s381 = sphi 0, %s381
    %s383 = sphi 0, %s381
    %s384 = sphi 0, %s383
    %s398 = sphi 0, %s384
    %s402 = sphi 0, %s402
    %s404 = sphi 0, %s402
    %s405 = sphi 0, %s404
    %s419 = sphi 0, %s405
    %s423 = sphi 0, %s423
    %s425 = sphi 0, %s423
    %s426 = sphi 0, %s425
    %s440 = sphi 0, %s426
    %s444 = sphi 0, %s444
    %s446 = sphi 0, %s444
    %s447 = sphi 0, %s446
    %s461 = sphi 0, %s447
    %s465 = sphi 0, %s465
    %s467 = sphi 0, %s465
    %s468 = sphi 0, %s467
    %s482 = sphi 0, %s468
    %s486 = sphi 0, %s486
    %s488 = sphi 0, %s486
    %s489 = sphi 0, %s488
    %s503 = sphi 0, %s489
    %s507 = sphi 0, %s507
    %s509 = sphi 0, %s507
    %s510 = sphi 0, %s509
    %s524 = sphi 0, %s510
    %s528 = sphi 0, %s528
    %s530 = sphi 0, %s528
    %s531 = sphi 0, %s530
    %s545 = sphi 0, %s531
    %s549 = sphi 0, %s549
    %s551 = sphi 0, %s549
    %s552 = sphi 0, %s551
    %s566 = sphi 0, %s552
    %s570 = sphi 0, %s570
    %s572 = sphi 0, %s570
    %s573 = sphi 0, %s572
    %s587 = sphi 0, %s573
    %s593 = sphi 0, %s595
    %s596 = sphi 0, %s593
    %s597 = sphi 0, %s596
    %s613 = sphi 0, %s597
  $region4: #{deit_forward.1} parent=0 // loop_header_branch
    %35 = sbr.rel (%p33) target = $region8
  $region5: #{deit_forward.1} parent=0 // loop_body
    %s37 = ssub.s32 %s32, 1
    %s38 = ssub.s32 %s32, 2
    %s39 = sadd.s32 %s32, 1
    %s40 = ssub.s32 %s32, %s39
    %p41 = scmp.eq.s32.totalorder %s40, 0
    %s43 = sadd.s32 %s42, 1
    %s44 = scalar_select %p41, %s42, %s43
    %p47 = pneg %p41
    %p48 = scmp.eq.s32.totalorder %s32, 1
    %p49 = por %p47, %p48
    %p50 = scmp.ne.s32.totalorder %s42, %s45
    %p51 = scmp.eq.s32.totalorder %s32, 0
    %p52 = por %p50, %p51
    %p53 = scmp.ne.s32.totalorder %s42, %s45
    %p54 = scmp.eq.s32.totalorder %s37, 1
    %p55 = por %p53, %p54
    %p56 = scmp.ne.s32.totalorder %s45, %s46
    %p57 = scmp.eq.s32.totalorder %s37, 0
    %p58 = por %p56, %p57
    %p59 = scmp.ne.s32.totalorder %s45, %s46
    %p60 = scmp.eq.s32.totalorder %s38, 1
    %p61 = por %p59, %p60
    %p63 = scmp.ne.s32.totalorder %s46, %s62
    %p64 = scmp.eq.s32.totalorder %s38, 0
    %p65 = por %p63, %p64
    %s67 = sadd.s32 %s66, 1
    %p70 = scmp.eq.s32.totalorder %s32, 1
    %p71 = scmp.ne.s32.totalorder %s66, %s68
    %p72 = scmp.eq.s32.totalorder %s32, 0
    %p73 = por %p71, %p72
    %p74 = scmp.ne.s32.totalorder %s66, %s68
    %p75 = scmp.eq.s32.totalorder %s37, 1
    %p76 = por %p74, %p75
    %p77 = scmp.ne.s32.totalorder %s68, %s69
    %p78 = scmp.eq.s32.totalorder %s37, 0
    %p79 = por %p77, %p78
    %p80 = scmp.ne.s32.totalorder %s68, %s69
    %p81 = scmp.eq.s32.totalorder %s38, 1
    %p82 = por %p80, %p81
    %p84 = scmp.ne.s32.totalorder %s69, %s83
    %p85 = scmp.eq.s32.totalorder %s38, 0
    %p86 = por %p84, %p85
    %s88 = sadd.s32 %s87, 1
    %p91 = scmp.eq.s32.totalorder %s32, 1
    %p92 = scmp.ne.s32.totalorder %s87, %s89
    %p93 = scmp.eq.s32.totalorder %s32, 0
    %p94 = por %p92, %p93
    %p95 = scmp.ne.s32.totalorder %s87, %s89
    %p96 = scmp.eq.s32.totalorder %s37, 1
    %p97 = por %p95, %p96
    %p98 = scmp.ne.s32.totalorder %s89, %s90
    %p99 = scmp.eq.s32.totalorder %s37, 0
    %p100 = por %p98, %p99
    %p101 = scmp.ne.s32.totalorder %s89, %s90
    %p102 = scmp.eq.s32.totalorder %s38, 1
    %p103 = por %p101, %p102
    %p105 = scmp.ne.s32.totalorder %s90, %s104
    %p106 = scmp.eq.s32.totalorder %s38, 0
    %p107 = por %p105, %p106
    %s109 = sadd.s32 %s108, 1
    %p112 = scmp.eq.s32.totalorder %s32, 1
    %p113 = scmp.ne.s32.totalorder %s108, %s110
    %p114 = scmp.eq.s32.totalorder %s32, 0
    %p115 = por %p113, %p114
    %p116 = scmp.ne.s32.totalorder %s108, %s110
    %p117 = scmp.eq.s32.totalorder %s37, 1
    %p118 = por %p116, %p117
    %p119 = scmp.ne.s32.totalorder %s110, %s111
    %p120 = scmp.eq.s32.totalorder %s37, 0
    %p121 = por %p119, %p120
    %p122 = scmp.ne.s32.totalorder %s110, %s111
    %p123 = scmp.eq.s32.totalorder %s38, 1
    %p124 = por %p122, %p123
    %p126 = scmp.ne.s32.totalorder %s111, %s125
    %p127 = scmp.eq.s32.totalorder %s38, 0
    %p128 = por %p126, %p127
    %s130 = sadd.s32 %s129, 1
    %p133 = scmp.eq.s32.totalorder %s32, 1
    %p134 = scmp.ne.s32.totalorder %s129, %s131
    %p135 = scmp.eq.s32.totalorder %s32, 0
    %p136 = por %p134, %p135
    %p137 = scmp.ne.s32.totalorder %s129, %s131
    %p138 = scmp.eq.s32.totalorder %s37, 1
    %p139 = por %p137, %p138
    %p140 = scmp.ne.s32.totalorder %s131, %s132
    %p141 = scmp.eq.s32.totalorder %s37, 0
    %p142 = por %p140, %p141
    %p143 = scmp.ne.s32.totalorder %s131, %s132
    %p144 = scmp.eq.s32.totalorder %s38, 1
    %p145 = por %p143, %p144
    %p147 = scmp.ne.s32.totalorder %s132, %s146
    %p148 = scmp.eq.s32.totalorder %s38, 0
    %p149 = por %p147, %p148
    %s151 = sadd.s32 %s150, 1
    %p154 = scmp.eq.s32.totalorder %s32, 1
    %p155 = scmp.ne.s32.totalorder %s150, %s152
    %p156 = scmp.eq.s32.totalorder %s32, 0
    %p157 = por %p155, %p156
    %p158 = scmp.ne.s32.totalorder %s150, %s152
    %p159 = scmp.eq.s32.totalorder %s37, 1
    %p160 = por %p158, %p159
    %p161 = scmp.ne.s32.totalorder %s152, %s153
    %p162 = scmp.eq.s32.totalorder %s37, 0
    %p163 = por %p161, %p162
    %p164 = scmp.ne.s32.totalorder %s152, %s153
    %p165 = scmp.eq.s32.totalorder %s38, 1
    %p166 = por %p164, %p165
    %p168 = scmp.ne.s32.totalorder %s153, %s167
    %p169 = scmp.eq.s32.totalorder %s38, 0
    %p170 = por %p168, %p169
    %s172 = sadd.s32 %s171, 1
    %p175 = scmp.eq.s32.totalorder %s32, 1
    %p176 = scmp.ne.s32.totalorder %s171, %s173
    %p177 = scmp.eq.s32.totalorder %s32, 0
    %p178 = por %p176, %p177
    %p179 = scmp.ne.s32.totalorder %s171, %s173
    %p180 = scmp.eq.s32.totalorder %s37, 1
    %p181 = por %p179, %p180
    %p182 = scmp.ne.s32.totalorder %s173, %s174
    %p183 = scmp.eq.s32.totalorder %s37, 0
    %p184 = por %p182, %p183
    %p185 = scmp.ne.s32.totalorder %s173, %s174
    %p186 = scmp.eq.s32.totalorder %s38, 1
    %p187 = por %p185, %p186
    %p189 = scmp.ne.s32.totalorder %s174, %s188
    %p190 = scmp.eq.s32.totalorder %s38, 0
    %p191 = por %p189, %p190
    %s193 = sadd.s32 %s192, 1
    %p196 = scmp.eq.s32.totalorder %s32, 1
    %p197 = scmp.ne.s32.totalorder %s192, %s194
    %p198 = scmp.eq.s32.totalorder %s32, 0
    %p199 = por %p197, %p198
    %p200 = scmp.ne.s32.totalorder %s192, %s194
    %p201 = scmp.eq.s32.totalorder %s37, 1
    %p202 = por %p200, %p201
    %p203 = scmp.ne.s32.totalorder %s194, %s195
    %p204 = scmp.eq.s32.totalorder %s37, 0
    %p205 = por %p203, %p204
    %p206 = scmp.ne.s32.totalorder %s194, %s195
    %p207 = scmp.eq.s32.totalorder %s38, 1
    %p208 = por %p206, %p207
    %p210 = scmp.ne.s32.totalorder %s195, %s209
    %p211 = scmp.eq.s32.totalorder %s38, 0
    %p212 = por %p210, %p211
    %s214 = sadd.s32 %s213, 1
    %p217 = scmp.eq.s32.totalorder %s32, 1
    %p218 = scmp.ne.s32.totalorder %s213, %s215
    %p219 = scmp.eq.s32.totalorder %s32, 0
    %p220 = por %p218, %p219
    %p221 = scmp.ne.s32.totalorder %s213, %s215
    %p222 = scmp.eq.s32.totalorder %s37, 1
    %p223 = por %p221, %p222
    %p224 = scmp.ne.s32.totalorder %s215, %s216
    %p225 = scmp.eq.s32.totalorder %s37, 0
    %p226 = por %p224, %p225
    %p227 = scmp.ne.s32.totalorder %s215, %s216
    %p228 = scmp.eq.s32.totalorder %s38, 1
    %p229 = por %p227, %p228
    %p231 = scmp.ne.s32.totalorder %s216, %s230
    %p232 = scmp.eq.s32.totalorder %s38, 0
    %p233 = por %p231, %p232
    %s235 = sadd.s32 %s234, 1
    %p238 = scmp.eq.s32.totalorder %s32, 1
    %p239 = scmp.ne.s32.totalorder %s234, %s236
    %p240 = scmp.eq.s32.totalorder %s32, 0
    %p241 = por %p239, %p240
    %p242 = scmp.ne.s32.totalorder %s234, %s236
    %p243 = scmp.eq.s32.totalorder %s37, 1
    %p244 = por %p242, %p243
    %p245 = scmp.ne.s32.totalorder %s236, %s237
    %p246 = scmp.eq.s32.totalorder %s37, 0
    %p247 = por %p245, %p246
    %p248 = scmp.ne.s32.totalorder %s236, %s237
    %p249 = scmp.eq.s32.totalorder %s38, 1
    %p250 = por %p248, %p249
    %p252 = scmp.ne.s32.totalorder %s237, %s251
    %p253 = scmp.eq.s32.totalorder %s38, 0
    %p254 = por %p252, %p253
    %s256 = sadd.s32 %s255, 1
    %p259 = scmp.eq.s32.totalorder %s32, 1
    %p260 = scmp.ne.s32.totalorder %s255, %s257
    %p261 = scmp.eq.s32.totalorder %s32, 0
    %p262 = por %p260, %p261
    %p263 = scmp.ne.s32.totalorder %s255, %s257
    %p264 = scmp.eq.s32.totalorder %s37, 1
    %p265 = por %p263, %p264
    %p266 = scmp.ne.s32.totalorder %s257, %s258
    %p267 = scmp.eq.s32.totalorder %s37, 0
    %p268 = por %p266, %p267
    %p269 = scmp.ne.s32.totalorder %s257, %s258
    %p270 = scmp.eq.s32.totalorder %s38, 1
    %p271 = por %p269, %p270
    %p273 = scmp.ne.s32.totalorder %s258, %s272
    %p274 = scmp.eq.s32.totalorder %s38, 0
    %p275 = por %p273, %p274
    %s277 = sadd.s32 %s276, 1
    %p280 = scmp.eq.s32.totalorder %s32, 1
    %p281 = scmp.ne.s32.totalorder %s276, %s278
    %p282 = scmp.eq.s32.totalorder %s32, 0
    %p283 = por %p281, %p282
    %p284 = scmp.ne.s32.totalorder %s276, %s278
    %p285 = scmp.eq.s32.totalorder %s37, 1
    %p286 = por %p284, %p285
    %p287 = scmp.ne.s32.totalorder %s278, %s279
    %p288 = scmp.eq.s32.totalorder %s37, 0
    %p289 = por %p287, %p288
    %p290 = scmp.ne.s32.totalorder %s278, %s279
    %p291 = scmp.eq.s32.totalorder %s38, 1
    %p292 = por %p290, %p291
    %p294 = scmp.ne.s32.totalorder %s279, %s293
    %p295 = scmp.eq.s32.totalorder %s38, 0
    %p296 = por %p294, %p295
    %s298 = sadd.s32 %s297, 1
    %p301 = scmp.eq.s32.totalorder %s32, 1
    %p302 = scmp.ne.s32.totalorder %s297, %s299
    %p303 = scmp.eq.s32.totalorder %s32, 0
    %p304 = por %p302, %p303
    %p305 = scmp.ne.s32.totalorder %s297, %s299
    %p306 = scmp.eq.s32.totalorder %s37, 1
    %p307 = por %p305, %p306
    %p308 = scmp.ne.s32.totalorder %s299, %s300
    %p309 = scmp.eq.s32.totalorder %s37, 0
    %p310 = por %p308, %p309
    %p311 = scmp.ne.s32.totalorder %s299, %s300
    %p312 = scmp.eq.s32.totalorder %s38, 1
    %p313 = por %p311, %p312
    %p315 = scmp.ne.s32.totalorder %s300, %s314
    %p316 = scmp.eq.s32.totalorder %s38, 0
    %p317 = por %p315, %p316
    %s319 = sadd.s32 %s318, 1
    %p322 = scmp.eq.s32.totalorder %s32, 1
    %p323 = scmp.ne.s32.totalorder %s318, %s320
    %p324 = scmp.eq.s32.totalorder %s32, 0
    %p325 = por %p323, %p324
    %p326 = scmp.ne.s32.totalorder %s318, %s320
    %p327 = scmp.eq.s32.totalorder %s37, 1
    %p328 = por %p326, %p327
    %p329 = scmp.ne.s32.totalorder %s320, %s321
    %p330 = scmp.eq.s32.totalorder %s37, 0
    %p331 = por %p329, %p330
    %p332 = scmp.ne.s32.totalorder %s320, %s321
    %p333 = scmp.eq.s32.totalorder %s38, 1
    %p334 = por %p332, %p333
    %p336 = scmp.ne.s32.totalorder %s321, %s335
    %p337 = scmp.eq.s32.totalorder %s38, 0
    %p338 = por %p336, %p337
    %s340 = sadd.s32 %s339, 1
    %p343 = scmp.eq.s32.totalorder %s32, 1
    %p344 = scmp.ne.s32.totalorder %s339, %s341
    %p345 = scmp.eq.s32.totalorder %s32, 0
    %p346 = por %p344, %p345
    %p347 = scmp.ne.s32.totalorder %s339, %s341
    %p348 = scmp.eq.s32.totalorder %s37, 1
    %p349 = por %p347, %p348
    %p350 = scmp.ne.s32.totalorder %s341, %s342
    %p351 = scmp.eq.s32.totalorder %s37, 0
    %p352 = por %p350, %p351
    %p353 = scmp.ne.s32.totalorder %s341, %s342
    %p354 = scmp.eq.s32.totalorder %s38, 1
    %p355 = por %p353, %p354
    %p357 = scmp.ne.s32.totalorder %s342, %s356
    %p358 = scmp.eq.s32.totalorder %s38, 0
    %p359 = por %p357, %p358
    %s361 = sadd.s32 %s360, 1
    %p364 = scmp.eq.s32.totalorder %s32, 1
    %p365 = scmp.ne.s32.totalorder %s360, %s362
    %p366 = scmp.eq.s32.totalorder %s32, 0
    %p367 = por %p365, %p366
    %p368 = scmp.ne.s32.totalorder %s360, %s362
    %p369 = scmp.eq.s32.totalorder %s37, 1
    %p370 = por %p368, %p369
    %p371 = scmp.ne.s32.totalorder %s362, %s363
    %p372 = scmp.eq.s32.totalorder %s37, 0
    %p373 = por %p371, %p372
    %p374 = scmp.ne.s32.totalorder %s362, %s363
    %p375 = scmp.eq.s32.totalorder %s38, 1
    %p376 = por %p374, %p375
    %p378 = scmp.ne.s32.totalorder %s363, %s377
    %p379 = scmp.eq.s32.totalorder %s38, 0
    %p380 = por %p378, %p379
    %s382 = sadd.s32 %s381, 1
    %p385 = scmp.eq.s32.totalorder %s32, 1
    %p386 = scmp.ne.s32.totalorder %s381, %s383
    %p387 = scmp.eq.s32.totalorder %s32, 0
    %p388 = por %p386, %p387
    %p389 = scmp.ne.s32.totalorder %s381, %s383
    %p390 = scmp.eq.s32.totalorder %s37, 1
    %p391 = por %p389, %p390
    %p392 = scmp.ne.s32.totalorder %s383, %s384
    %p393 = scmp.eq.s32.totalorder %s37, 0
    %p394 = por %p392, %p393
    %p395 = scmp.ne.s32.totalorder %s383, %s384
    %p396 = scmp.eq.s32.totalorder %s38, 1
    %p397 = por %p395, %p396
    %p399 = scmp.ne.s32.totalorder %s384, %s398
    %p400 = scmp.eq.s32.totalorder %s38, 0
    %p401 = por %p399, %p400
    %s403 = sadd.s32 %s402, 1
    %p406 = scmp.eq.s32.totalorder %s32, 1
    %p407 = scmp.ne.s32.totalorder %s402, %s404
    %p408 = scmp.eq.s32.totalorder %s32, 0
    %p409 = por %p407, %p408
    %p410 = scmp.ne.s32.totalorder %s402, %s404
    %p411 = scmp.eq.s32.totalorder %s37, 1
    %p412 = por %p410, %p411
    %p413 = scmp.ne.s32.totalorder %s404, %s405
    %p414 = scmp.eq.s32.totalorder %s37, 0
    %p415 = por %p413, %p414
    %p416 = scmp.ne.s32.totalorder %s404, %s405
    %p417 = scmp.eq.s32.totalorder %s38, 1
    %p418 = por %p416, %p417
    %p420 = scmp.ne.s32.totalorder %s405, %s419
    %p421 = scmp.eq.s32.totalorder %s38, 0
    %p422 = por %p420, %p421
    %s424 = sadd.s32 %s423, 1
    %p427 = scmp.eq.s32.totalorder %s32, 1
    %p428 = scmp.ne.s32.totalorder %s423, %s425
    %p429 = scmp.eq.s32.totalorder %s32, 0
    %p430 = por %p428, %p429
    %p431 = scmp.ne.s32.totalorder %s423, %s425
    %p432 = scmp.eq.s32.totalorder %s37, 1
    %p433 = por %p431, %p432
    %p434 = scmp.ne.s32.totalorder %s425, %s426
    %p435 = scmp.eq.s32.totalorder %s37, 0
    %p436 = por %p434, %p435
    %p437 = scmp.ne.s32.totalorder %s425, %s426
    %p438 = scmp.eq.s32.totalorder %s38, 1
    %p439 = por %p437, %p438
    %p441 = scmp.ne.s32.totalorder %s426, %s440
    %p442 = scmp.eq.s32.totalorder %s38, 0
    %p443 = por %p441, %p442
    %s445 = sadd.s32 %s444, 1
    %p448 = scmp.eq.s32.totalorder %s32, 1
    %p449 = scmp.ne.s32.totalorder %s444, %s446
    %p450 = scmp.eq.s32.totalorder %s32, 0
    %p451 = por %p449, %p450
    %p452 = scmp.ne.s32.totalorder %s444, %s446
    %p453 = scmp.eq.s32.totalorder %s37, 1
    %p454 = por %p452, %p453
    %p455 = scmp.ne.s32.totalorder %s446, %s447
    %p456 = scmp.eq.s32.totalorder %s37, 0
    %p457 = por %p455, %p456
    %p458 = scmp.ne.s32.totalorder %s446, %s447
    %p459 = scmp.eq.s32.totalorder %s38, 1
    %p460 = por %p458, %p459
    %p462 = scmp.ne.s32.totalorder %s447, %s461
    %p463 = scmp.eq.s32.totalorder %s38, 0
    %p464 = por %p462, %p463
    %s466 = sadd.s32 %s465, 1
    %p469 = scmp.eq.s32.totalorder %s32, 1
    %p470 = scmp.ne.s32.totalorder %s465, %s467
    %p471 = scmp.eq.s32.totalorder %s32, 0
    %p472 = por %p470, %p471
    %p473 = scmp.ne.s32.totalorder %s465, %s467
    %p474 = scmp.eq.s32.totalorder %s37, 1
    %p475 = por %p473, %p474
    %p476 = scmp.ne.s32.totalorder %s467, %s468
    %p477 = scmp.eq.s32.totalorder %s37, 0
    %p478 = por %p476, %p477
    %p479 = scmp.ne.s32.totalorder %s467, %s468
    %p480 = scmp.eq.s32.totalorder %s38, 1
    %p481 = por %p479, %p480
    %p483 = scmp.ne.s32.totalorder %s468, %s482
    %p484 = scmp.eq.s32.totalorder %s38, 0
    %p485 = por %p483, %p484
    %s487 = sadd.s32 %s486, 1
    %p490 = scmp.eq.s32.totalorder %s32, 1
    %p491 = scmp.ne.s32.totalorder %s486, %s488
    %p492 = scmp.eq.s32.totalorder %s32, 0
    %p493 = por %p491, %p492
    %p494 = scmp.ne.s32.totalorder %s486, %s488
    %p495 = scmp.eq.s32.totalorder %s37, 1
    %p496 = por %p494, %p495
    %p497 = scmp.ne.s32.totalorder %s488, %s489
    %p498 = scmp.eq.s32.totalorder %s37, 0
    %p499 = por %p497, %p498
    %p500 = scmp.ne.s32.totalorder %s488, %s489
    %p501 = scmp.eq.s32.totalorder %s38, 1
    %p502 = por %p500, %p501
    %p504 = scmp.ne.s32.totalorder %s489, %s503
    %p505 = scmp.eq.s32.totalorder %s38, 0
    %p506 = por %p504, %p505
    %s508 = sadd.s32 %s507, 1
    %p511 = scmp.eq.s32.totalorder %s32, 1
    %p512 = scmp.ne.s32.totalorder %s507, %s509
    %p513 = scmp.eq.s32.totalorder %s32, 0
    %p514 = por %p512, %p513
    %p515 = scmp.ne.s32.totalorder %s507, %s509
    %p516 = scmp.eq.s32.totalorder %s37, 1
    %p517 = por %p515, %p516
    %p518 = scmp.ne.s32.totalorder %s509, %s510
    %p519 = scmp.eq.s32.totalorder %s37, 0
    %p520 = por %p518, %p519
    %p521 = scmp.ne.s32.totalorder %s509, %s510
    %p522 = scmp.eq.s32.totalorder %s38, 1
    %p523 = por %p521, %p522
    %p525 = scmp.ne.s32.totalorder %s510, %s524
    %p526 = scmp.eq.s32.totalorder %s38, 0
    %p527 = por %p525, %p526
    %s529 = sadd.s32 %s528, 1
    %p532 = scmp.eq.s32.totalorder %s32, 1
    %p533 = scmp.ne.s32.totalorder %s528, %s530
    %p534 = scmp.eq.s32.totalorder %s32, 0
    %p535 = por %p533, %p534
    %p536 = scmp.ne.s32.totalorder %s528, %s530
    %p537 = scmp.eq.s32.totalorder %s37, 1
    %p538 = por %p536, %p537
    %p539 = scmp.ne.s32.totalorder %s530, %s531
    %p540 = scmp.eq.s32.totalorder %s37, 0
    %p541 = por %p539, %p540
    %p542 = scmp.ne.s32.totalorder %s530, %s531
    %p543 = scmp.eq.s32.totalorder %s38, 1
    %p544 = por %p542, %p543
    %p546 = scmp.ne.s32.totalorder %s531, %s545
    %p547 = scmp.eq.s32.totalorder %s38, 0
    %p548 = por %p546, %p547
    %s550 = sadd.s32 %s549, 1
    %p553 = scmp.eq.s32.totalorder %s32, 1
    %p554 = scmp.ne.s32.totalorder %s549, %s551
    %p555 = scmp.eq.s32.totalorder %s32, 0
    %p556 = por %p554, %p555
    %p557 = scmp.ne.s32.totalorder %s549, %s551
    %p558 = scmp.eq.s32.totalorder %s37, 1
    %p559 = por %p557, %p558
    %p560 = scmp.ne.s32.totalorder %s551, %s552
    %p561 = scmp.eq.s32.totalorder %s37, 0
    %p562 = por %p560, %p561
    %p563 = scmp.ne.s32.totalorder %s551, %s552
    %p564 = scmp.eq.s32.totalorder %s38, 1
    %p565 = por %p563, %p564
    %p567 = scmp.ne.s32.totalorder %s552, %s566
    %p568 = scmp.eq.s32.totalorder %s38, 0
    %p569 = por %p567, %p568
    %s571 = sadd.s32 %s570, 1
    %p574 = scmp.eq.s32.totalorder %s32, 1
    %p575 = scmp.ne.s32.totalorder %s570, %s572
    %p576 = scmp.eq.s32.totalorder %s32, 0
    %p577 = por %p575, %p576
    %p578 = scmp.ne.s32.totalorder %s570, %s572
    %p579 = scmp.eq.s32.totalorder %s37, 1
    %p580 = por %p578, %p579
    %p581 = scmp.ne.s32.totalorder %s572, %s573
    %p582 = scmp.eq.s32.totalorder %s37, 0
    %p583 = por %p581, %p582
    %p584 = scmp.ne.s32.totalorder %s572, %s573
    %p585 = scmp.eq.s32.totalorder %s38, 1
    %p586 = por %p584, %p585
    %p588 = scmp.ne.s32.totalorder %s573, %s587
    %p589 = scmp.eq.s32.totalorder %s38, 0
    %p590 = por %p588, %p589
    %s591 = ssub.s32 %s32, %s39
    %p592 = scmp.eq.s32.totalorder %s591, 0
    %s594 = sadd.s32 %s593, 1
    %s595 = scalar_select %p592, %s593, %s594
    %p598 = pneg %p592
    %p599 = scmp.eq.s32.totalorder %s32, 1
    %p600 = por %p598, %p599
    %p601 = scmp.ne.s32.totalorder %s593, %s596
    %p602 = scmp.eq.s32.totalorder %s32, 0
    %p603 = por %p601, %p602
    %p604 = scmp.ne.s32.totalorder %s593, %s596
    %p605 = scmp.eq.s32.totalorder %s37, 1
    %p606 = por %p604, %p605
    %p607 = scmp.ne.s32.totalorder %s596, %s597
    %p608 = scmp.eq.s32.totalorder %s37, 0
    %p609 = por %p607, %p608
    %p610 = scmp.ne.s32.totalorder %s596, %s597
    %p611 = scmp.eq.s32.totalorder %s38, 1
    %p612 = por %p610, %p611
    %p614 = scmp.ne.s32.totalorder %s597, %s613
    %p615 = scmp.eq.s32.totalorder %s38, 0
    %p616 = por %p614, %p615
    %p617 = scmp.le.s32.totalorder 1, %s32
    %p618 = scmp.lt.s32.totalorder %s32, 3
    %p619 = pnand %p617, %p618
    %p620 = pneg %p619
    // Predicated region
    $region9: #{deit_forward.1} parent=5 // pred_check
      _
    $region10: #{deit_forward.1} parent=5 // pred_check_branch
      %622 = sbr.rel (%p619) target = $region12
    $region11: #{deit_forward.1} parent=5 // pred_region
      %s623 = ssub.s32 %s32, 1
      // Predicated region
      $region13: #{deit_forward.1} parent=11 // pred_check
        %p624 = pneg %p79
      $region14: #{deit_forward.1} parent=11 // pred_check_branch
        %626 = sbr.rel (%p624) target = $region16
      $region15: #{deit_forward.1} parent=11 // pred_region
        _
      $region16: #{deit_forward.1} parent=11 // pred_fallthru
        _
      // Predicated region
      $region17: #{deit_forward.1} parent=11 // pred_check
        %p627 = pneg %p100
      $region18: #{deit_forward.1} parent=11 // pred_check_branch
        %629 = sbr.rel (%p627) target = $region20
      $region19: #{deit_forward.1} parent=11 // pred_region
        _
      $region20: #{deit_forward.1} parent=11 // pred_fallthru
        _
      // Predicated region
      $region21: #{deit_forward.1} parent=11 // pred_check
        %p630 = pneg %p121
      $region22: #{deit_forward.1} parent=11 // pred_check_branch
        %632 = sbr.rel (%p630) target = $region24
      $region23: #{deit_forward.1} parent=11 // pred_region
        _
      $region24: #{deit_forward.1} parent=11 // pred_fallthru
        _
      // Predicated region
      $region25: #{deit_forward.1} parent=11 // pred_check
        %p633 = pneg %p142
      $region26: #{deit_forward.1} parent=11 // pred_check_branch
        %635 = sbr.rel (%p633) target = $region28
      $region27: #{deit_forward.1} parent=11 // pred_region
        _
      $region28: #{deit_forward.1} parent=11 // pred_fallthru
        _
      // Predicated region
      $region29: #{deit_forward.1} parent=11 // pred_check
        %p636 = pneg %p163
      $region30: #{deit_forward.1} parent=11 // pred_check_branch
        %638 = sbr.rel (%p636) target = $region32
      $region31: #{deit_forward.1} parent=11 // pred_region
        _
      $region32: #{deit_forward.1} parent=11 // pred_fallthru
        _
      // Predicated region
      $region33: #{deit_forward.1} parent=11 // pred_check
        %p639 = pneg %p184
      $region34: #{deit_forward.1} parent=11 // pred_check_branch
        %641 = sbr.rel (%p639) target = $region36
      $region35: #{deit_forward.1} parent=11 // pred_region
        _
      $region36: #{deit_forward.1} parent=11 // pred_fallthru
        _
      // Predicated region
      $region37: #{deit_forward.1} parent=11 // pred_check
        %p642 = pneg %p205
      $region38: #{deit_forward.1} parent=11 // pred_check_branch
        %644 = sbr.rel (%p642) target = $region40
      $region39: #{deit_forward.1} parent=11 // pred_region
        _
      $region40: #{deit_forward.1} parent=11 // pred_fallthru
        _
      // Predicated region
      $region41: #{deit_forward.1} parent=11 // pred_check
        %p645 = pneg %p226
      $region42: #{deit_forward.1} parent=11 // pred_check_branch
        %647 = sbr.rel (%p645) target = $region44
      $region43: #{deit_forward.1} parent=11 // pred_region
        _
      $region44: #{deit_forward.1} parent=11 // pred_fallthru
        _
      // Predicated region
      $region45: #{deit_forward.1} parent=11 // pred_check
        %p648 = pneg %p247
      $region46: #{deit_forward.1} parent=11 // pred_check_branch
        %650 = sbr.rel (%p648) target = $region48
      $region47: #{deit_forward.1} parent=11 // pred_region
        _
      $region48: #{deit_forward.1} parent=11 // pred_fallthru
        _
      // Predicated region
      $region49: #{deit_forward.1} parent=11 // pred_check
        %p651 = pneg %p268
      $region50: #{deit_forward.1} parent=11 // pred_check_branch
        %653 = sbr.rel (%p651) target = $region52
      $region51: #{deit_forward.1} parent=11 // pred_region
        _
      $region52: #{deit_forward.1} parent=11 // pred_fallthru
        _
      // Predicated region
      $region53: #{deit_forward.1} parent=11 // pred_check
        %p654 = pneg %p289
      $region54: #{deit_forward.1} parent=11 // pred_check_branch
        %656 = sbr.rel (%p654) target = $region56
      $region55: #{deit_forward.1} parent=11 // pred_region
        _
      $region56: #{deit_forward.1} parent=11 // pred_fallthru
        _
      // Predicated region
      $region57: #{deit_forward.1} parent=11 // pred_check
        %p657 = pneg %p310
      $region58: #{deit_forward.1} parent=11 // pred_check_branch
        %659 = sbr.rel (%p657) target = $region60
      $region59: #{deit_forward.1} parent=11 // pred_region
        _
      $region60: #{deit_forward.1} parent=11 // pred_fallthru
        _
      // Predicated region
      $region61: #{deit_forward.1} parent=11 // pred_check
        %p660 = pneg %p331
      $region62: #{deit_forward.1} parent=11 // pred_check_branch
        %662 = sbr.rel (%p660) target = $region64
      $region63: #{deit_forward.1} parent=11 // pred_region
        _
      $region64: #{deit_forward.1} parent=11 // pred_fallthru
        _
      // Predicated region
      $region65: #{deit_forward.1} parent=11 // pred_check
        %p663 = pneg %p352
      $region66: #{deit_forward.1} parent=11 // pred_check_branch
        %665 = sbr.rel (%p663) target = $region68
      $region67: #{deit_forward.1} parent=11 // pred_region
        _
      $region68: #{deit_forward.1} parent=11 // pred_fallthru
        _
      // Predicated region
      $region69: #{deit_forward.1} parent=11 // pred_check
        %p666 = pneg %p373
      $region70: #{deit_forward.1} parent=11 // pred_check_branch
        %668 = sbr.rel (%p666) target = $region72
      $region71: #{deit_forward.1} parent=11 // pred_region
        _
      $region72: #{deit_forward.1} parent=11 // pred_fallthru
        _
      // Predicated region
      $region73: #{deit_forward.1} parent=11 // pred_check
        %p669 = pneg %p394
      $region74: #{deit_forward.1} parent=11 // pred_check_branch
        %671 = sbr.rel (%p669) target = $region76
      $region75: #{deit_forward.1} parent=11 // pred_region
        _
      $region76: #{deit_forward.1} parent=11 // pred_fallthru
        _
      // Predicated region
      $region77: #{deit_forward.1} parent=11 // pred_check
        %p672 = pneg %p415
      $region78: #{deit_forward.1} parent=11 // pred_check_branch
        %674 = sbr.rel (%p672) target = $region80
      $region79: #{deit_forward.1} parent=11 // pred_region
        _
      $region80: #{deit_forward.1} parent=11 // pred_fallthru
        _
      // Predicated region
      $region81: #{deit_forward.1} parent=11 // pred_check
        %p675 = pneg %p436
      $region82: #{deit_forward.1} parent=11 // pred_check_branch
        %677 = sbr.rel (%p675) target = $region84
      $region83: #{deit_forward.1} parent=11 // pred_region
        _
      $region84: #{deit_forward.1} parent=11 // pred_fallthru
        _
      // Predicated region
      $region85: #{deit_forward.1} parent=11 // pred_check
        %p678 = pneg %p457
      $region86: #{deit_forward.1} parent=11 // pred_check_branch
        %680 = sbr.rel (%p678) target = $region88
      $region87: #{deit_forward.1} parent=11 // pred_region
        _
      $region88: #{deit_forward.1} parent=11 // pred_fallthru
        _
      // Predicated region
      $region89: #{deit_forward.1} parent=11 // pred_check
        %p681 = pneg %p478
      $region90: #{deit_forward.1} parent=11 // pred_check_branch
        %683 = sbr.rel (%p681) target = $region92
      $region91: #{deit_forward.1} parent=11 // pred_region
        _
      $region92: #{deit_forward.1} parent=11 // pred_fallthru
        _
      // Predicated region
      $region93: #{deit_forward.1} parent=11 // pred_check
        %p684 = pneg %p499
      $region94: #{deit_forward.1} parent=11 // pred_check_branch
        %686 = sbr.rel (%p684) target = $region96
      $region95: #{deit_forward.1} parent=11 // pred_region
        _
      $region96: #{deit_forward.1} parent=11 // pred_fallthru
        _
      // Predicated region
      $region97: #{deit_forward.1} parent=11 // pred_check
        %p687 = pneg %p520
      $region98: #{deit_forward.1} parent=11 // pred_check_branch
        %689 = sbr.rel (%p687) target = $region100
      $region99: #{deit_forward.1} parent=11 // pred_region
        _
      $region100: #{deit_forward.1} parent=11 // pred_fallthru
        _
      // Predicated region
      $region101: #{deit_forward.1} parent=11 // pred_check
        %p690 = pneg %p541
      $region102: #{deit_forward.1} parent=11 // pred_check_branch
        %692 = sbr.rel (%p690) target = $region104
      $region103: #{deit_forward.1} parent=11 // pred_region
        _
      $region104: #{deit_forward.1} parent=11 // pred_fallthru
        _
      // Predicated region
      $region105: #{deit_forward.1} parent=11 // pred_check
        %p693 = pneg %p562
      $region106: #{deit_forward.1} parent=11 // pred_check_branch
        %695 = sbr.rel (%p693) target = $region108
      $region107: #{deit_forward.1} parent=11 // pred_region
        _
      $region108: #{deit_forward.1} parent=11 // pred_fallthru
        _
      // Predicated region
      $region109: #{deit_forward.1} parent=11 // pred_check
        %p696 = pneg %p583
      $region110: #{deit_forward.1} parent=11 // pred_check_branch
        %698 = sbr.rel (%p696) target = $region112
      $region111: #{deit_forward.1} parent=11 // pred_region
        _
      $region112: #{deit_forward.1} parent=11 // pred_fallthru
        _
    $region12: #{deit_forward.1} parent=5 // pred_fallthru
      _
    %p699 = scmp.lt.s32.totalorder %s32, 2
    // Predicated region
    $region113: #{deit_forward.1} parent=5 // pred_check
      %p700 = pneg %p699
    $region114: #{deit_forward.1} parent=5 // pred_check_branch
      %702 = sbr.rel (%p700) target = $region116
    $region115: #{deit_forward.1} parent=5 // pred_region
      // Predicated region
      $region117: #{deit_forward.1} parent=115 // pred_check
        %p703 = pneg %p52
      $region118: #{deit_forward.1} parent=115 // pred_check_branch
        %705 = sbr.rel (%p703) target = $region120
      $region119: #{deit_forward.1} parent=115 // pred_region
        %p706 = scmp.lt.s32.totalorder %s32, 1
        %s707 = scalar_select %p706, %s32, 1
        %s708 = smul.addr %s707, 12
        %s709 = smul.addr %s708, 8
        %s710 = scalar_lea.vmem %s0, %s709
      $region120: #{deit_forward.1} parent=115 // pred_fallthru
        _
    $region116: #{deit_forward.1} parent=5 // pred_fallthru
      _
    %p711 = scmp.le.s32.totalorder 1, %s32
    %p712 = scmp.lt.s32.totalorder %s32, 3
    %p713 = pnand %p711, %p712
    %p714 = pneg %p713
    // Predicated region
    $region121: #{deit_forward.1} parent=5 // pred_check
      _
    $region122: #{deit_forward.1} parent=5 // pred_check_branch
      %716 = sbr.rel (%p713) target = $region124
    $region123: #{deit_forward.1} parent=5 // pred_region
      %s717 = ssub.s32 %s32, 1
      %p718 = scmp.lt.s32.totalorder %s37, 1
      %s719 = scalar_select %p718, %s37, 1
      %s720 = smul.addr %s719, 12
      %s721 = smul.addr %s720, 8
      %s722 = scalar_lea.vmem %s0, %s721
      %p723 = pneg %p58
      %p724 = pneg %p55
      %p725 = pneg %p79
      %p726 = pneg %p76
      %p727 = pneg %p100
      %p728 = pneg %p97
      %p729 = pneg %p121
      %p730 = pneg %p118
      %p731 = pneg %p142
      %p732 = pneg %p139
      %p733 = pneg %p163
      %p734 = pneg %p160
      %p735 = pneg %p184
      %p736 = pneg %p181
      %p737 = pneg %p205
      %p738 = pneg %p202
      %p739 = pneg %p226
      %p740 = pneg %p223
      %p741 = pneg %p247
      %p742 = pneg %p244
      %p743 = pneg %p268
      %p744 = pneg %p265
      %p745 = pneg %p289
      %p746 = pneg %p286
      %p747 = pneg %p310
      %p748 = pneg %p307
      %p749 = pneg %p331
      %p750 = pneg %p328
      %p751 = pneg %p352
      %p752 = pneg %p349
      %p753 = pneg %p373
      %p754 = pneg %p370
      %p755 = pneg %p394
      %p756 = pneg %p391
      %p757 = pneg %p415
      %p758 = pneg %p412
      %p759 = pneg %p436
      %p760 = pneg %p433
      %p761 = pneg %p457
      %p762 = pneg %p454
      %p763 = pneg %p478
      %p764 = pneg %p475
      %p765 = pneg %p499
      %p766 = pneg %p496
      %p767 = pneg %p520
      %p768 = pneg %p517
      %p769 = pneg %p541
      %p770 = pneg %p538
      %p771 = pneg %p562
      %p772 = pneg %p559
      %p773 = pneg %p583
      %p774 = pneg %p580
      %p775 = pneg %p609
      %p776 = pneg %p606
      %p777 = scmp.lt.s32.totalorder %s37, 1
      %s778 = scalar_select %p777, %s37, 1
      %s779 = smul.addr %s778, 8
      %s780 = scalar_lea.vmem %s26, %s779
      %p781 = scmp.lt.s32.totalorder %s37, 1
      %s782 = scalar_select %p781, %s37, 1
      %s783 = smul.addr %s782, 12
      %s784 = smul.addr %s783, 8
      %s785 = scalar_lea.vmem %s0, %s784
      %p786 = scmp.lt.s32.totalorder %s37, 1
      %s787 = scalar_select %p786, %s37, 1
      %s788 = smul.addr %s787, 8
      %s789 = scalar_lea.vmem %s26, %s788
      %v791 = vld [vmem:[%s785] sm:$0xff]
      %v792 = vld [vmem:[%s785 + $0x8] sm:$0xff]
      %v793 = vld [vmem:[%s785 + $0x10] sm:$0xff]
      %v794 = vld [vmem:[%s785 + $0x18] sm:$0xff]
      %v795 = vld [vmem:[%s785 + $0x20] sm:$0xff]
      %v796 = vld [vmem:[%s785 + $0x28] sm:$0xff]
      %v797 = vld [vmem:[%s785 + $0x30] sm:$0xff]
      %v798 = vld [vmem:[%s785 + $0x38] sm:$0xff]
      %v799 = vld [vmem:[%s785 + $0x40] sm:$0xff]
      %v800 = vld [vmem:[%s785 + $0x48] sm:$0xff]
      %v801 = vld [vmem:[%s785 + $0x50] sm:$0xff]
      %v802 = vld [vmem:[%s785 + $0x58] sm:$0xff]
      %v803 = vld [vmem:[%s4] sm:$0xf]
      %v804 = vld [vmem:[%s4 + $0x4] sm:$0xf]
      %v805 = vld [vmem:[%s4 + $0x8] sm:$0xf]
      %v806 = vld [vmem:[%s4 + $0xc] sm:$0xf]
      %v807 = vld [vmem:[%s4 + $0x10] sm:$0xf]
      %v808 = vld [vmem:[%s4 + $0x14] sm:$0xf]
      %v809 = vld [vmem:[%s4 + $0x18] sm:$0xf]
      %v810 = vld [vmem:[%s4 + $0x1c] sm:$0xf]
      %v811 = vld [vmem:[%s4 + $0x20] sm:$0xf]
      %v812 = vld [vmem:[%s4 + $0x24] sm:$0xf]
      %v813 = vld [vmem:[%s4 + $0x28] sm:$0xf]
      %v814 = vld [vmem:[%s4 + $0x2c] sm:$0xf]
      %v815 = vld [vmem:[%s4 + $0x30] sm:$0xf]
      %v816 = vld [vmem:[%s4 + $0x34] sm:$0xf]
      %v817 = vld [vmem:[%s4 + $0x38] sm:$0xf]
      %v818 = vld [vmem:[%s4 + $0x3c] sm:$0xf]
      %v819 = vld [vmem:[%s4 + $0x40] sm:$0xf]
      %v820 = vld [vmem:[%s4 + $0x44] sm:$0xf]
      %v821 = vld [vmem:[%s4 + $0x48] sm:$0xf]
      %v822 = vld [vmem:[%s4 + $0x4c] sm:$0xf]
      %v823 = vld [vmem:[%s4 + $0x50] sm:$0xf]
      %v824 = vld [vmem:[%s4 + $0x54] sm:$0xf]
      %v825 = vld [vmem:[%s4 + $0x58] sm:$0xf]
      %v826 = vld [vmem:[%s4 + $0x5c] sm:$0xf]
      %v827 = vld [vmem:[%s4 + $0x60] sm:$0xf]
      %v828 = vld [vmem:[%s4 + $0x64] sm:$0xf]
      %v829 = vld [vmem:[%s4 + $0x68] sm:$0xf]
      %v830 = vld [vmem:[%s4 + $0x6c] sm:$0xf]
      %v831 = vld [vmem:[%s4 + $0x70] sm:$0xf]
      %v832 = vld [vmem:[%s4 + $0x74] sm:$0xf]
      %v833 = vld [vmem:[%s4 + $0x78] sm:$0xf]
      %v834 = vld [vmem:[%s4 + $0x7c] sm:$0xf]
      %v835 = vld [vmem:[%s4 + $0x80] sm:$0xf]
      %v836 = vld [vmem:[%s4 + $0x84] sm:$0xf]
      %v837 = vld [vmem:[%s4 + $0x88] sm:$0xf]
      %v838 = vld [vmem:[%s4 + $0x8c] sm:$0xf]
      %v839 = vld [vmem:[%s4 + $0x90] sm:$0xf]
      %v840 = vld [vmem:[%s4 + $0x94] sm:$0xf]
      %v841 = vld [vmem:[%s4 + $0x98] sm:$0xf]
      %v842 = vld [vmem:[%s4 + $0x9c] sm:$0xf]
      %v843 = vld [vmem:[%s4 + $0xa0] sm:$0xf]
      %v844 = vld [vmem:[%s4 + $0xa4] sm:$0xf]
      %v845 = vld [vmem:[%s4 + $0xa8] sm:$0xf]
      %v846 = vld [vmem:[%s4 + $0xac] sm:$0xf]
      %v847 = vld [vmem:[%s4 + $0xb0] sm:$0xf]
      %v848 = vld [vmem:[%s4 + $0xb4] sm:$0xf]
      %v849 = vld [vmem:[%s4 + $0xb8] sm:$0xf]
      %v850 = vld [vmem:[%s4 + $0xbc] sm:$0xf]
      %v851 = vld [vmem:[%s4 + $0xc0] sm:$0xf]
      %v852 = vld [vmem:[%s4 + $0xc4] sm:$0xf]
      %v853 = vld [vmem:[%s4 + $0xc8] sm:$0xf]
      %v854 = vld [vmem:[%s4 + $0xcc] sm:$0xf]
      %v855 = vld [vmem:[%s4 + $0xd0] sm:$0xf]
      %v856 = vld [vmem:[%s4 + $0xd4] sm:$0xf]
      %v857 = vld [vmem:[%s4 + $0xd8] sm:$0xf]
      %v858 = vld [vmem:[%s4 + $0xdc] sm:$0xf]
      %v859 = vld [vmem:[%s4 + $0xe0] sm:$0xf]
      %v860 = vld [vmem:[%s4 + $0xe4] sm:$0xf]
      %v861 = vld [vmem:[%s4 + $0xe8] sm:$0xf]
      %v862 = vld [vmem:[%s4 + $0xec] sm:$0xf]
      %v863 = vld [vmem:[%s4 + $0xf0] sm:$0xf]
      %v864 = vld [vmem:[%s4 + $0xf4] sm:$0xf]
      %v865 = vld [vmem:[%s4 + $0xf8] sm:$0xf]
      %v866 = vld [vmem:[%s4 + $0xfc] sm:$0xf]
      %v867 = vld [vmem:[%s4 + $0x100] sm:$0xf]
      %v868 = vld [vmem:[%s4 + $0x104] sm:$0xf]
      %v869 = vld [vmem:[%s4 + $0x108] sm:$0xf]
      %v870 = vld [vmem:[%s4 + $0x10c] sm:$0xf]
      %v871 = vld [vmem:[%s4 + $0x110] sm:$0xf]
      %v872 = vld [vmem:[%s4 + $0x114] sm:$0xf]
      %v873 = vld [vmem:[%s4 + $0x118] sm:$0xf]
      %v874 = vld [vmem:[%s4 + $0x11c] sm:$0xf]
      %v875 = vld [vmem:[%s4 + $0x120] sm:$0xf]
      %v876 = vld [vmem:[%s4 + $0x124] sm:$0xf]
      %v877 = vld [vmem:[%s4 + $0x128] sm:$0xf]
      %v878 = vld [vmem:[%s4 + $0x12c] sm:$0xf]
      %v879 = vld [vmem:[%s4 + $0x130] sm:$0xf]
      %v880 = vld [vmem:[%s4 + $0x134] sm:$0xf]
      %v881 = vld [vmem:[%s4 + $0x138] sm:$0xf]
      %v882 = vld [vmem:[%s4 + $0x13c] sm:$0xf]
      %v883 = vld [vmem:[%s4 + $0x140] sm:$0xf]
      %v884 = vld [vmem:[%s4 + $0x144] sm:$0xf]
      %v885 = vld [vmem:[%s4 + $0x148] sm:$0xf]
      %v886 = vld [vmem:[%s4 + $0x14c] sm:$0xf]
      %v887 = vld [vmem:[%s4 + $0x150] sm:$0xf]
      %v888 = vld [vmem:[%s4 + $0x154] sm:$0xf]
      %v889 = vld [vmem:[%s4 + $0x158] sm:$0xf]
      %v890 = vld [vmem:[%s4 + $0x15c] sm:$0xf]
      %v891 = vld [vmem:[%s4 + $0x160] sm:$0xf]
      %v892 = vld [vmem:[%s4 + $0x164] sm:$0xf]
      %v893 = vld [vmem:[%s4 + $0x168] sm:$0xf]
      %v894 = vld [vmem:[%s4 + $0x16c] sm:$0xf]
      %v895 = vld [vmem:[%s4 + $0x170] sm:$0xf]
      %v896 = vld [vmem:[%s4 + $0x174] sm:$0xf]
      %v897 = vld [vmem:[%s4 + $0x178] sm:$0xf]
      %v898 = vld [vmem:[%s4 + $0x17c] sm:$0xf]
      %v899 = vpack.c.bf16 %v797, %v791
      %v900 = vpack.c.bf16 %v798, %v792
      %v901 = vpack.c.bf16 %v799, %v793
      %v902 = vpack.c.bf16 %v800, %v794
      %v903 = vpack.c.bf16 %v801, %v795
      %v904 = vpack.c.bf16 %v802, %v796
      %v905 = vld [vmem:[%s5] sm:$0x1]
      %v907 = vperm.slane %v905, 0
      %v1005 = vunpack.c.l.b16 %v803
      %v1006 = vunpack.c.l.b16 %v804
      %v1007 = vunpack.c.l.b16 %v805
      %v1008 = vunpack.c.l.b16 %v806
      %v1009 = vunpack.c.l.b16 %v807
      %v1010 = vunpack.c.l.b16 %v808
      %v1011 = vunpack.c.l.b16 %v809
      %v1012 = vunpack.c.l.b16 %v810
      %v1013 = vunpack.c.l.b16 %v811
      %v1014 = vunpack.c.l.b16 %v812
      %v1015 = vunpack.c.l.b16 %v813
      %v1016 = vunpack.c.l.b16 %v814
      %v1017 = vunpack.c.l.b16 %v815
      %v1018 = vunpack.c.l.b16 %v816
      %v1019 = vunpack.c.l.b16 %v817
      %v1020 = vunpack.c.l.b16 %v818
      %v1021 = vunpack.c.l.b16 %v819
      %v1022 = vunpack.c.l.b16 %v820
      %v1023 = vunpack.c.l.b16 %v821
      %v1024 = vunpack.c.l.b16 %v822
      %v1025 = vunpack.c.l.b16 %v823
      %v1026 = vunpack.c.l.b16 %v824
      %v1027 = vunpack.c.l.b16 %v825
      %v1028 = vunpack.c.l.b16 %v826
      %v1029 = vunpack.c.l.b16 %v827
      %v1030 = vunpack.c.l.b16 %v828
      %v1031 = vunpack.c.l.b16 %v829
      %v1032 = vunpack.c.l.b16 %v830
      %v1033 = vunpack.c.l.b16 %v831
      %v1034 = vunpack.c.l.b16 %v832
      %v1035 = vunpack.c.l.b16 %v833
      %v1036 = vunpack.c.l.b16 %v834
      %v1037 = vunpack.c.l.b16 %v835
      %v1038 = vunpack.c.l.b16 %v836
      %v1039 = vunpack.c.l.b16 %v837
      %v1040 = vunpack.c.l.b16 %v838
      %v1041 = vunpack.c.l.b16 %v839
      %v1042 = vunpack.c.l.b16 %v840
      %v1043 = vunpack.c.l.b16 %v841
      %v1044 = vunpack.c.l.b16 %v842
      %v1045 = vunpack.c.l.b16 %v843
      %v1046 = vunpack.c.l.b16 %v844
      %v1047 = vunpack.c.l.b16 %v845
      %v1048 = vunpack.c.l.b16 %v846
      %v1049 = vunpack.c.l.b16 %v847
      %v1050 = vunpack.c.l.b16 %v848
      %v1051 = vunpack.c.l.b16 %v849
      %v1052 = vunpack.c.l.b16 %v850
      %v1053 = vunpack.c.l.b16 %v851
      %v1054 = vunpack.c.l.b16 %v852
      %v1055 = vunpack.c.l.b16 %v853
      %v1056 = vunpack.c.l.b16 %v854
      %v1057 = vunpack.c.l.b16 %v855
      %v1058 = vunpack.c.l.b16 %v856
      %v1059 = vunpack.c.l.b16 %v857
      %v1060 = vunpack.c.l.b16 %v858
      %v1061 = vunpack.c.l.b16 %v859
      %v1062 = vunpack.c.l.b16 %v860
      %v1063 = vunpack.c.l.b16 %v861
      %v1064 = vunpack.c.l.b16 %v862
      %v1065 = vunpack.c.l.b16 %v863
      %v1066 = vunpack.c.l.b16 %v864
      %v1067 = vunpack.c.l.b16 %v865
      %v1068 = vunpack.c.l.b16 %v866
      %v1069 = vunpack.c.l.b16 %v867
      %v1070 = vunpack.c.l.b16 %v868
      %v1071 = vunpack.c.l.b16 %v869
      %v1072 = vunpack.c.l.b16 %v870
      %v1073 = vunpack.c.l.b16 %v871
      %v1074 = vunpack.c.l.b16 %v872
      %v1075 = vunpack.c.l.b16 %v873
      %v1076 = vunpack.c.l.b16 %v874
      %v1077 = vunpack.c.l.b16 %v875
      %v1078 = vunpack.c.l.b16 %v876
      %v1079 = vunpack.c.l.b16 %v877
      %v1080 = vunpack.c.l.b16 %v878
      %v1081 = vunpack.c.l.b16 %v879
      %v1082 = vunpack.c.l.b16 %v880
      %v1083 = vunpack.c.l.b16 %v881
      %v1084 = vunpack.c.l.b16 %v882
      %v1085 = vunpack.c.l.b16 %v883
      %v1086 = vunpack.c.l.b16 %v884
      %v1087 = vunpack.c.l.b16 %v885
      %v1088 = vunpack.c.l.b16 %v886
      %v1089 = vunpack.c.l.b16 %v887
      %v1090 = vunpack.c.l.b16 %v888
      %v1091 = vunpack.c.l.b16 %v889
      %v1092 = vunpack.c.l.b16 %v890
      %v1093 = vunpack.c.l.b16 %v891
      %v1094 = vunpack.c.l.b16 %v892
      %v1095 = vunpack.c.l.b16 %v893
      %v1096 = vunpack.c.l.b16 %v894
      %v1097 = vunpack.c.l.b16 %v895
      %v1098 = vunpack.c.l.b16 %v896
      %v1099 = vunpack.c.l.b16 %v897
      %v1100 = vunpack.c.l.b16 %v898
      %v1101 = vpack.c.b16 %v1006, %v1005
      %v1102 = vpack.c.b16 %v1008, %v1007
      %v1103 = vpack.c.b16 %v1010, %v1009
      %v1104 = vpack.c.b16 %v1012, %v1011
      %v1105 = vpack.c.b16 %v1014, %v1013
      %v1106 = vpack.c.b16 %v1016, %v1015
      %v1107 = vpack.c.b16 %v1018, %v1017
      %v1108 = vpack.c.b16 %v1020, %v1019
      %v1109 = vpack.c.b16 %v1022, %v1021
      %v1110 = vpack.c.b16 %v1024, %v1023
      %v1111 = vpack.c.b16 %v1026, %v1025
      %v1112 = vpack.c.b16 %v1028, %v1027
      %v1113 = vpack.c.b16 %v1030, %v1029
      %v1114 = vpack.c.b16 %v1032, %v1031
      %v1115 = vpack.c.b16 %v1034, %v1033
      %v1116 = vpack.c.b16 %v1036, %v1035
      %v1117 = vpack.c.b16 %v1038, %v1037
      %v1118 = vpack.c.b16 %v1040, %v1039
      %v1119 = vpack.c.b16 %v1042, %v1041
      %v1120 = vpack.c.b16 %v1044, %v1043
      %v1121 = vpack.c.b16 %v1046, %v1045
      %v1122 = vpack.c.b16 %v1048, %v1047
      %v1123 = vpack.c.b16 %v1050, %v1049
      %v1124 = vpack.c.b16 %v1052, %v1051
      %v1125 = vpack.c.b16 %v1054, %v1053
      %v1126 = vpack.c.b16 %v1056, %v1055
      %v1127 = vpack.c.b16 %v1058, %v1057
      %v1128 = vpack.c.b16 %v1060, %v1059
      %v1129 = vpack.c.b16 %v1062, %v1061
      %v1130 = vpack.c.b16 %v1064, %v1063
      %v1131 = vpack.c.b16 %v1066, %v1065
      %v1132 = vpack.c.b16 %v1068, %v1067
      %v1133 = vpack.c.b16 %v1070, %v1069
      %v1134 = vpack.c.b16 %v1072, %v1071
      %v1135 = vpack.c.b16 %v1074, %v1073
      %v1136 = vpack.c.b16 %v1076, %v1075
      %v1137 = vpack.c.b16 %v1078, %v1077
      %v1138 = vpack.c.b16 %v1080, %v1079
      %v1139 = vpack.c.b16 %v1082, %v1081
      %v1140 = vpack.c.b16 %v1084, %v1083
      %v1141 = vpack.c.b16 %v1086, %v1085
      %v1142 = vpack.c.b16 %v1088, %v1087
      %v1143 = vpack.c.b16 %v1090, %v1089
      %v1144 = vpack.c.b16 %v1092, %v1091
      %v1145 = vpack.c.b16 %v1094, %v1093
      %v1146 = vpack.c.b16 %v1096, %v1095
      %v1147 = vpack.c.b16 %v1098, %v1097
      %v1148 = vpack.c.b16 %v1100, %v1099
      %1197 = vmatpush.bf16.msra.mxu0 %v1108
      %1198 = vmatpush.bf16.msra.mxu0 %v1107
      %1199 = vmatpush.bf16.msra.mxu0 %v1106
      %1200 = vmatpush.bf16.msra.mxu0 %v1105
      %1201 = vmatpush.bf16.msra.mxu0 %v1104
      %1202 = vmatpush.bf16.msra.mxu0 %v1103
      %1203 = vmatpush.bf16.msra.mxu0 %v1102
      %1204 = vmatpush.bf16.msra.mxu0 %v1101
      %1205 = vmatmul.bf16.gmra.mxu0 %v899
      %v1206 = vpop.f32.mrf.mxu0
      %v1207 = vadd.f32 %v907, %v1206
      %v1208 = vpop.f32.mrf.mxu0
      %v1209 = vadd.f32 %v907, %v1208
      %1210 = vdwg.mxu0
      %1211 = vmatpush.bf16.msra.mxu0 %v1116
      %1212 = vmatpush.bf16.msra.mxu0 %v1115
      %1213 = vmatpush.bf16.msra.mxu0 %v1114
      %1214 = vmatpush.bf16.msra.mxu0 %v1113
      %1215 = vmatpush.bf16.msra.mxu0 %v1112
      %1216 = vmatpush.bf16.msra.mxu0 %v1111
      %1217 = vmatpush.bf16.msra.mxu0 %v1110
      %1218 = vmatpush.bf16.msra.mxu0 %v1109
      %1219 = vmatmul.bf16.gmra.mxu0 %v900
      %v1220 = vpop.f32.mrf.mxu0
      %v1221 = vadd.f32 %v1207, %v1220
      %v1222 = vpop.f32.mrf.mxu0
      %v1223 = vadd.f32 %v1209, %v1222
      %1224 = vdwg.mxu0
      %1225 = vmatpush.bf16.msra.mxu0 %v1124
      %1226 = vmatpush.bf16.msra.mxu0 %v1123
      %1227 = vmatpush.bf16.msra.mxu0 %v1122
      %1228 = vmatpush.bf16.msra.mxu0 %v1121
      %1229 = vmatpush.bf16.msra.mxu0 %v1120
      %1230 = vmatpush.bf16.msra.mxu0 %v1119
      %1231 = vmatpush.bf16.msra.mxu0 %v1118
      %1232 = vmatpush.bf16.msra.mxu0 %v1117
      %1233 = vmatmul.bf16.gmra.mxu0 %v901
      %v1234 = vpop.f32.mrf.mxu0
      %v1235 = vadd.f32 %v1221, %v1234
      %v1236 = vpop.f32.mrf.mxu0
      %v1237 = vadd.f32 %v1223, %v1236
      %1238 = vdwg.mxu0
      %1239 = vmatpush.bf16.msra.mxu0 %v1132
      %1240 = vmatpush.bf16.msra.mxu0 %v1131
      %1241 = vmatpush.bf16.msra.mxu0 %v1130
      %1242 = vmatpush.bf16.msra.mxu0 %v1129
      %1243 = vmatpush.bf16.msra.mxu0 %v1128
      %1244 = vmatpush.bf16.msra.mxu0 %v1127
      %1245 = vmatpush.bf16.msra.mxu0 %v1126
      %1246 = vmatpush.bf16.msra.mxu0 %v1125
      %1247 = vmatmul.bf16.gmra.mxu0 %v902
      %v1248 = vpop.f32.mrf.mxu0
      %v1249 = vadd.f32 %v1235, %v1248
      %v1250 = vpop.f32.mrf.mxu0
      %v1251 = vadd.f32 %v1237, %v1250
      %1252 = vdwg.mxu0
      %1253 = vmatpush.bf16.msra.mxu0 %v1140
      %1254 = vmatpush.bf16.msra.mxu0 %v1139
      %1255 = vmatpush.bf16.msra.mxu0 %v1138
      %1256 = vmatpush.bf16.msra.mxu0 %v1137
      %1257 = vmatpush.bf16.msra.mxu0 %v1136
      %1258 = vmatpush.bf16.msra.mxu0 %v1135
      %1259 = vmatpush.bf16.msra.mxu0 %v1134
      %1260 = vmatpush.bf16.msra.mxu0 %v1133
      %1261 = vmatmul.bf16.gmra.mxu0 %v903
      %v1262 = vpop.f32.mrf.mxu0
      %v1263 = vadd.f32 %v1249, %v1262
      %v1264 = vpop.f32.mrf.mxu0
      %v1265 = vadd.f32 %v1251, %v1264
      %1266 = vdwg.mxu0
      %1267 = vmatpush.bf16.msra.mxu0 %v1148
      %1268 = vmatpush.bf16.msra.mxu0 %v1147
      %1269 = vmatpush.bf16.msra.mxu0 %v1146
      %1270 = vmatpush.bf16.msra.mxu0 %v1145
      %1271 = vmatpush.bf16.msra.mxu0 %v1144
      %1272 = vmatpush.bf16.msra.mxu0 %v1143
      %1273 = vmatpush.bf16.msra.mxu0 %v1142
      %1274 = vmatpush.bf16.msra.mxu0 %v1141
      %1275 = vmatmul.bf16.gmra.mxu0 %v904
      %v1276 = vpop.f32.mrf.mxu0
      %v1277 = vadd.f32 %v1263, %v1276
      %v1278 = vpop.f32.mrf.mxu0
      %v1279 = vadd.f32 %v1265, %v1278
      %1280 = vdwg.mxu0
      %v1281 = vld [vmem:[%s2] sm:$0xff]
      %v1282 = vld [vmem:[%s2 + $0x8] sm:$0xff]
      %v1283 = vadd.f32 %v1277, %v1281
      %v1284 = vadd.f32 %v1279, %v1282
      %v1285 = vld [vmem:[%s1] sm:$0xff]
      %v1286 = vld [vmem:[%s3] sm:$0xff]
      %v1287 = vld [vmem:[%s3 + $0x8] sm:$0xff]
      %v1288 = vld [vmem:[%s3 + $0x10] sm:$0xff]
      %v1289 = vld [vmem:[%s6] sm:$0x1]
      %v1290 = vld [vmem:[%s7] sm:$0x1]
      %vm1291 = vcmask 523264
      %v1292 = vsel %vm1291, %v1285, 0.0
      %1293 = vadd.xlane.f32.xlu0 %v1292
      %v1294 = vpop.xlane.xlu0 %1293
      %v1295 = vsel %vm1291, %v1283, 0.0
      %1296 = vadd.xlane.f32.xlu0 %v1295
      %v1297 = vpop.xlane.xlu0 %1296
      %v1298 = vsel %vm1291, %v1284, 0.0
      %1299 = vadd.xlane.f32.xlu0 %v1298
      %v1300 = vpop.xlane.xlu0 %1299
      %v1301 = vrcp.pop 64.0
      %v1302 = vmul.f32 64.0, %v1301
      %v1303 = vsub.f32 1.0, %v1302
      %v1304 = vmul.f32 %v1301, %v1303
      %v1305 = vadd.f32 %v1301, %v1304
      %vm1306 = vweird.f32 %v1301
      %v1307 = vsel %vm1306, %v1301, %v1305
      %v1308 = vmul.f32 %v1294, %v1307
      %v1309 = vmul.f32 %v1297, %v1307
      %v1310 = vmul.f32 %v1300, %v1307
      %v1311 = vsub.f32 %v1285, %v1308
      %v1312 = vsub.f32 %v1283, %v1309
      %v1313 = vsub.f32 %v1284, %v1310
      %v1314 = vmul.f32 %v1311, %v1311
      %v1315 = vmul.f32 %v1312, %v1312
      %v1316 = vmul.f32 %v1313, %v1313
      %v1317 = vsel %vm1291, %v1314, 0.0
      %1318 = vadd.xlane.f32.xlu0 %v1317
      %v1319 = vpop.xlane.xlu0 %1318
      %v1320 = vsel %vm1291, %v1315, 0.0
      %1321 = vadd.xlane.f32.xlu0 %v1320
      %v1322 = vpop.xlane.xlu0 %1321
      %v1323 = vsel %vm1291, %v1316, 0.0
      %1324 = vadd.xlane.f32.xlu0 %v1323
      %v1325 = vpop.xlane.xlu0 %1324
      %v1326 = vmul.f32 %v1319, %v1307
      %v1327 = vmul.f32 %v1322, %v1307
      %v1328 = vmul.f32 %v1325, %v1307
      %v1329 = vadd.f32 %v1326, 1e-06
      %v1330 = vadd.f32 %v1327, 1e-06
      %v1331 = vadd.f32 %v1328, 1e-06
      %v1332 = vrsqrt.pop %v1329
      %v1333 = vmul.f32 %v1332, %v1329
      %v1334 = vmul.f32 %v1333, %v1332
      %v1335 = vmul.f32 0.5, %v1334
      %v1336 = vsub.f32 1.5, %v1335
      %v1337 = vmul.f32 %v1332, %v1336
      %vm1338 = vweird.f32 %v1329
      %vm1339 = vweird.f32 %v1332
      %vm1340 = vmor %vm1338, %vm1339
      %v1341 = vsel %vm1340, %v1332, %v1337
      %v1342 = vrsqrt.pop %v1330
      %v1343 = vmul.f32 %v1342, %v1330
      %v1344 = vmul.f32 %v1343, %v1342
      %v1345 = vmul.f32 0.5, %v1344
      %v1346 = vsub.f32 1.5, %v1345
      %v1347 = vmul.f32 %v1342, %v1346
      %vm1348 = vweird.f32 %v1330
      %vm1349 = vweird.f32 %v1342
      %vm1350 = vmor %vm1348, %vm1349
      %v1351 = vsel %vm1350, %v1342, %v1347
      %v1352 = vrsqrt.pop %v1331
      %v1353 = vmul.f32 %v1352, %v1331
      %v1354 = vmul.f32 %v1353, %v1352
      %v1355 = vmul.f32 0.5, %v1354
      %v1356 = vsub.f32 1.5, %v1355
      %v1357 = vmul.f32 %v1352, %v1356
      %vm1358 = vweird.f32 %v1331
      %vm1359 = vweird.f32 %v1352
      %vm1360 = vmor %vm1358, %vm1359
      %v1361 = vsel %vm1360, %v1352, %v1357
      %v1362 = vmul.f32 %v1311, %v1341
      %v1363 = vmul.f32 %v1312, %v1351
      %v1364 = vmul.f32 %v1313, %v1361
      %v1366 = vperm.slane %v1289, 0
      %v1368 = vmul.f32 %v1362, %v1366
      %v1369 = vmul.f32 %v1363, %v1366
      %v1370 = vmul.f32 %v1364, %v1366
      %v1372 = vperm.slane %v1290, 0
      %v1374 = vadd.f32 %v1368, %v1372
      %v1375 = vadd.f32 %v1369, %v1372
      %v1376 = vadd.f32 %v1370, %v1372
      %v1377 = vld [vmem:[%s8] sm:$0xf]
      %v1378 = vld [vmem:[%s8 + $0x4] sm:$0xf]
      %v1379 = vld [vmem:[%s8 + $0x8] sm:$0xf]
      %v1380 = vld [vmem:[%s8 + $0xc] sm:$0xf]
      %v1381 = vld [vmem:[%s8 + $0x10] sm:$0xf]
      %v1382 = vld [vmem:[%s8 + $0x14] sm:$0xf]
      %v1383 = vld [vmem:[%s8 + $0x18] sm:$0xf]
      %v1384 = vld [vmem:[%s8 + $0x1c] sm:$0xf]
      %v1385 = vpack.c.bf16 %v1375, %v1374
      %v1386 = vpack.c.bf16 %v1376, %v1376
      %v1387 = vld [vmem:[%s9] sm:$0x1]
      %v1389 = vperm.slane %v1387, 0
      %v1399 = vunpack.c.l.b16 %v1377
      %v1400 = vunpack.c.l.b16 %v1378
      %v1401 = vunpack.c.l.b16 %v1379
      %v1402 = vunpack.c.l.b16 %v1380
      %v1403 = vunpack.c.l.b16 %v1381
      %v1404 = vunpack.c.l.b16 %v1382
      %v1405 = vunpack.c.l.b16 %v1383
      %v1406 = vunpack.c.l.b16 %v1384
      %v1407 = vpack.c.b16 %v1400, %v1399
      %v1408 = vpack.c.b16 %v1402, %v1401
      %v1409 = vpack.c.b16 %v1404, %v1403
      %v1410 = vpack.c.b16 %v1406, %v1405
      %v1416 = vsel %vm1291, %v1385, 0
      %v1419 = vsel %vm1291, %v1386, 0
      %1421 = vmatpush.bf16.msra.mxu0 0
      %1422 = vmatpush.bf16.msra.mxu0 0
      %1423 = vmatpush.bf16.msra.mxu0 0
      %1424 = vmatpush.bf16.msra.mxu0 0
      %1425 = vmatpush.bf16.msra.mxu0 %v1410
      %1426 = vmatpush.bf16.msra.mxu0 %v1409
      %1427 = vmatpush.bf16.msra.mxu0 %v1408
      %1428 = vmatpush.bf16.msra.mxu0 %v1407
      %1429 = vmatmul.bf16.gmra.mxu0 %v1416
      %v1430 = vpop.f32.mrf.mxu0
      %v1431 = vadd.f32 %v1389, %v1430
      %v1432 = vpop.f32.mrf.mxu0
      %v1433 = vadd.f32 %v1389, %v1432
      %1434 = vmatmul.bf16.gmra.mxu0 %v1419
      %v1435 = vpop.f32.mrf.mxu0
      %v1436 = vadd.f32 %v1389, %v1435
      %v1437 = vpop.f32.mrf.mxu0
      %1438 = vdwg.mxu0
      %v1439 = vld [vmem:[%s10] sm:$0xf]
      %v1440 = vld [vmem:[%s10 + $0x4] sm:$0xf]
      %v1441 = vld [vmem:[%s10 + $0x8] sm:$0xf]
      %v1442 = vld [vmem:[%s10 + $0xc] sm:$0xf]
      %v1443 = vld [vmem:[%s10 + $0x10] sm:$0xf]
      %v1444 = vld [vmem:[%s10 + $0x14] sm:$0xf]
      %v1445 = vld [vmem:[%s10 + $0x18] sm:$0xf]
      %v1446 = vld [vmem:[%s10 + $0x1c] sm:$0xf]
      %v1447 = vld [vmem:[%s11] sm:$0x1]
      %v1449 = vperm.slane %v1447, 0
      %v1459 = vunpack.c.l.b16 %v1439
      %v1460 = vunpack.c.l.b16 %v1440
      %v1461 = vunpack.c.l.b16 %v1441
      %v1462 = vunpack.c.l.b16 %v1442
      %v1463 = vunpack.c.l.b16 %v1443
      %v1464 = vunpack.c.l.b16 %v1444
      %v1465 = vunpack.c.l.b16 %v1445
      %v1466 = vunpack.c.l.b16 %v1446
      %v1467 = vpack.c.b16 %v1460, %v1459
      %v1468 = vpack.c.b16 %v1462, %v1461
      %v1469 = vpack.c.b16 %v1464, %v1463
      %v1470 = vpack.c.b16 %v1466, %v1465
      %1475 = vmatpush.bf16.msra.mxu0 0
      %1476 = vmatpush.bf16.msra.mxu0 0
      %1477 = vmatpush.bf16.msra.mxu0 0
      %1478 = vmatpush.bf16.msra.mxu0 0
      %1479 = vmatpush.bf16.msra.mxu0 %v1470
      %1480 = vmatpush.bf16.msra.mxu0 %v1469
      %1481 = vmatpush.bf16.msra.mxu0 %v1468
      %1482 = vmatpush.bf16.msra.mxu0 %v1467
      %1483 = vmatmul.bf16.gmra.mxu0 %v1416
      %v1484 = vpop.f32.mrf.mxu0
      %v1485 = vadd.f32 %v1449, %v1484
      %v1486 = vpop.f32.mrf.mxu0
      %v1487 = vadd.f32 %v1449, %v1486
      %1488 = vmatmul.bf16.gmra.mxu0 %v1419
      %v1489 = vpop.f32.mrf.mxu0
      %v1490 = vadd.f32 %v1449, %v1489
      %v1491 = vpop.f32.mrf.mxu0
      %1492 = vdwg.mxu0
      %v1493 = vld [vmem:[%s12] sm:$0xf]
      %v1494 = vld [vmem:[%s12 + $0x4] sm:$0xf]
      %v1495 = vld [vmem:[%s12 + $0x8] sm:$0xf]
      %v1496 = vld [vmem:[%s12 + $0xc] sm:$0xf]
      %v1497 = vld [vmem:[%s12 + $0x10] sm:$0xf]
      %v1498 = vld [vmem:[%s12 + $0x14] sm:$0xf]
      %v1499 = vld [vmem:[%s12 + $0x18] sm:$0xf]
      %v1500 = vld [vmem:[%s12 + $0x1c] sm:$0xf]
      %v1501 = vld [vmem:[%s13] sm:$0x1]
      %v1503 = vperm.slane %v1501, 0
      %v1513 = vunpack.c.l.b16 %v1493
      %v1514 = vunpack.c.l.b16 %v1494
      %v1515 = vunpack.c.l.b16 %v1495
      %v1516 = vunpack.c.l.b16 %v1496
      %v1517 = vunpack.c.l.b16 %v1497
      %v1518 = vunpack.c.l.b16 %v1498
      %v1519 = vunpack.c.l.b16 %v1499
      %v1520 = vunpack.c.l.b16 %v1500
      %v1521 = vpack.c.b16 %v1514, %v1513
      %v1522 = vpack.c.b16 %v1516, %v1515
      %v1523 = vpack.c.b16 %v1518, %v1517
      %v1524 = vpack.c.b16 %v1520, %v1519
      %1529 = vmatpush.bf16.msra.mxu0 0
      %1530 = vmatpush.bf16.msra.mxu0 0
      %1531 = vmatpush.bf16.msra.mxu0 0
      %1532 = vmatpush.bf16.msra.mxu0 0
      %1533 = vmatpush.bf16.msra.mxu0 %v1524
      %1534 = vmatpush.bf16.msra.mxu0 %v1523
      %1535 = vmatpush.bf16.msra.mxu0 %v1522
      %1536 = vmatpush.bf16.msra.mxu0 %v1521
      %1537 = vmatmul.bf16.gmra.mxu0 %v1416
      %v1538 = vpop.f32.mrf.mxu0
      %v1539 = vadd.f32 %v1503, %v1538
      %v1540 = vpop.f32.mrf.mxu0
      %v1541 = vadd.f32 %v1503, %v1540
      %1542 = vmatmul.bf16.gmra.mxu0 %v1419
      %v1543 = vpop.f32.mrf.mxu0
      %v1544 = vadd.f32 %v1503, %v1543
      %v1545 = vpop.f32.mrf.mxu0
      %1546 = vdwg.mxu0
      %v1547 = vpack.c.bf16 %v1433, %v1431
      %v1548 = vpack.c.bf16 %v1436, %v1436
      %v1549 = vpack.c.bf16 %v1487, %v1485
      %v1550 = vpack.c.bf16 %v1490, %v1490
      %vm1551 = vcmask 261120
      %v1553 = vsel %vm1551, %v1547, 0
      %v1556 = vsel %vm1551, %v1548, 0
      %v1559 = vsel %vm1551, %v1549, 0
      %v1562 = vsel %vm1551, %v1550, 0
      %1564 = vmatpush.bf16.xpose.msra.mxu0 0
      %1565 = vmatpush.bf16.xpose.msra.mxu0 0
      %1566 = vmatpush.bf16.xpose.msra.mxu0 0
      %1567 = vmatpush.bf16.xpose.msra.mxu0 0
      %1568 = vmatpush.bf16.xpose.msra.mxu0 0
      %1569 = vmatpush.bf16.xpose.msra.mxu0 0
      %1570 = vmatpush.bf16.xpose.msra.mxu0 %v1562
      %1571 = vmatpush.bf16.xpose.msra.mxu0 %v1559
      %1572 = vmatmul.bf16.gmra.mxu0 %v1553
      %v1573 = vpop.f32.mrf.mxu0
      %v1574 = vadd.f32 %v1286, %v1573
      %v1575 = vpop.f32.mrf.mxu0
      %v1576 = vadd.f32 %v1287, %v1575
      %1577 = vmatmul.bf16.gmra.mxu0 %v1556
      %v1578 = vpop.f32.mrf.mxu0
      %v1579 = vadd.f32 %v1288, %v1578
      %v1580 = vpop.f32.mrf.mxu0
      %1581 = vdwg.mxu0
      %vm1582 = vcmask 195584
      %v1583 = vsel %vm1582, %v1574, -inf
      %1584 = vmax.xlane.f32.xlu0 %v1583
      %v1585 = vpop.xlane.xlu0 %1584
      %v1586 = vsel %vm1582, %v1576, -inf
      %1587 = vmax.xlane.f32.xlu0 %v1586
      %v1588 = vpop.xlane.xlu0 %1587
      %v1589 = vsel %vm1582, %v1579, -inf
      %1590 = vmax.xlane.f32.xlu0 %v1589
      %v1591 = vpop.xlane.xlu0 %1590
      %v1592 = vsub.f32 %v1574, %v1585
      %v1593 = vsub.f32 %v1576, %v1588
      %v1594 = vsub.f32 %v1579, %v1591
      %v1595 = vmul.f32 %v1592, 1.442695
      %v1596 = vpow.pop %v1595
      %v1597 = vmul.f32 %v1593, 1.442695
      %v1598 = vpow.pop %v1597
      %v1599 = vmul.f32 %v1594, 1.442695
      %v1600 = vpow.pop %v1599
      %v1601 = vsel %vm1582, %v1596, 0.0
      %1602 = vadd.xlane.f32.xlu0 %v1601
      %v1603 = vpop.xlane.xlu0 %1602
      %v1604 = vsel %vm1582, %v1598, 0.0
      %1605 = vadd.xlane.f32.xlu0 %v1604
      %v1606 = vpop.xlane.xlu0 %1605
      %v1607 = vsel %vm1582, %v1600, 0.0
      %1608 = vadd.xlane.f32.xlu0 %v1607
      %v1609 = vpop.xlane.xlu0 %1608
      %v1610 = vrcp.pop %v1603
      %v1611 = vrcp.pop %v1606
      %v1612 = vrcp.pop %v1609
      %v1613 = vmul.f32 %v1596, %v1610
      %v1614 = vmul.f32 %v1598, %v1611
      %v1615 = vmul.f32 %v1600, %v1612
      %v1616 = vpack.c.bf16 %v1614, %v1613
      %v1617 = vpack.c.bf16 %v1615, %v1615
      %v1618 = vpack.c.bf16 %v1541, %v1539
      %v1619 = vpack.c.bf16 %v1544, %v1544
      %v1621 = vsel %vm1582, %v1616, 0
      %v1624 = vsel %vm1582, %v1617, 0
      %vm1626 = vcmask 1043456
      %v1628 = vsel %vm1626, %v1619, 0
      %1630 = vmatpush.bf16.msra.mxu0 0
      %1631 = vmatpush.bf16.msra.mxu0 0
      %1632 = vmatpush.bf16.msra.mxu0 0
      %1633 = vmatpush.bf16.msra.mxu0 0
      %1634 = vmatpush.bf16.msra.mxu0 0
      %1635 = vmatpush.bf16.msra.mxu0 0
      %1636 = vmatpush.bf16.msra.mxu0 %v1628
      %1637 = vmatpush.bf16.msra.mxu0 %v1618
      %1638 = vmatmul.bf16.gmra.mxu0 %v1621
      %v1639 = vpop.f32.mrf.mxu0
      %v1640 = vadd.f32 0.0, %v1639
      %v1641 = vpop.f32.mrf.mxu0
      %v1642 = vadd.f32 0.0, %v1641
      %1643 = vmatmul.bf16.gmra.mxu0 %v1624
      %v1644 = vpop.f32.mrf.mxu0
      %v1645 = vadd.f32 0.0, %v1644
      %v1646 = vpop.f32.mrf.mxu0
      %1647 = vdwg.mxu0
      %s1648 = scalar_lea.vmem %s8, 32
      %v1649 = vld [vmem:[%s1648] sm:$0xf]
      %v1650 = vld [vmem:[%s1648 + $0x4] sm:$0xf]
      %v1651 = vld [vmem:[%s1648 + $0x8] sm:$0xf]
      %v1652 = vld [vmem:[%s1648 + $0xc] sm:$0xf]
      %v1653 = vld [vmem:[%s1648 + $0x10] sm:$0xf]
      %v1654 = vld [vmem:[%s1648 + $0x14] sm:$0xf]
      %v1655 = vld [vmem:[%s1648 + $0x18] sm:$0xf]
      %v1656 = vld [vmem:[%s1648 + $0x1c] sm:$0xf]
      %s1657 = scalar_lea.vmem %s9, 1
      %v1658 = vld [vmem:[%s1657] sm:$0x1]
      %v1660 = vperm.slane %v1658, 0
      %v1670 = vunpack.c.l.b16 %v1649
      %v1671 = vunpack.c.l.b16 %v1650
      %v1672 = vunpack.c.l.b16 %v1651
      %v1673 = vunpack.c.l.b16 %v1652
      %v1674 = vunpack.c.l.b16 %v1653
      %v1675 = vunpack.c.l.b16 %v1654
      %v1676 = vunpack.c.l.b16 %v1655
      %v1677 = vunpack.c.l.b16 %v1656
      %v1678 = vpack.c.b16 %v1671, %v1670
      %v1679 = vpack.c.b16 %v1673, %v1672
      %v1680 = vpack.c.b16 %v1675, %v1674
      %v1681 = vpack.c.b16 %v1677, %v1676
      %1686 = vmatpush.bf16.msra.mxu0 0
      %1687 = vmatpush.bf16.msra.mxu0 0
      %1688 = vmatpush.bf16.msra.mxu0 0
      %1689 = vmatpush.bf16.msra.mxu0 0
      %1690 = vmatpush.bf16.msra.mxu0 %v1681
      %1691 = vmatpush.bf16.msra.mxu0 %v1680
      %1692 = vmatpush.bf16.msra.mxu0 %v1679
      %1693 = vmatpush.bf16.msra.mxu0 %v1678
      %1694 = vmatmul.bf16.gmra.mxu0 %v1416
      %v1695 = vpop.f32.mrf.mxu0
      %v1696 = vadd.f32 %v1660, %v1695
      %v1697 = vpop.f32.mrf.mxu0
      %v1698 = vadd.f32 %v1660, %v1697
      %1699 = vmatmul.bf16.gmra.mxu0 %v1419
      %v1700 = vpop.f32.mrf.mxu0
      %v1701 = vadd.f32 %v1660, %v1700
      %v1702 = vpop.f32.mrf.mxu0
      %1703 = vdwg.mxu0
      %s1704 = scalar_lea.vmem %s10, 32
      %v1705 = vld [vmem:[%s1704] sm:$0xf]
      %v1706 = vld [vmem:[%s1704 + $0x4] sm:$0xf]
      %v1707 = vld [vmem:[%s1704 + $0x8] sm:$0xf]
      %v1708 = vld [vmem:[%s1704 + $0xc] sm:$0xf]
      %v1709 = vld [vmem:[%s1704 + $0x10] sm:$0xf]
      %v1710 = vld [vmem:[%s1704 + $0x14] sm:$0xf]
      %v1711 = vld [vmem:[%s1704 + $0x18] sm:$0xf]
      %v1712 = vld [vmem:[%s1704 + $0x1c] sm:$0xf]
      %s1713 = scalar_lea.vmem %s11, 1
      %v1714 = vld [vmem:[%s1713] sm:$0x1]
      %v1716 = vperm.slane %v1714, 0
      %v1726 = vunpack.c.l.b16 %v1705
      %v1727 = vunpack.c.l.b16 %v1706
      %v1728 = vunpack.c.l.b16 %v1707
      %v1729 = vunpack.c.l.b16 %v1708
      %v1730 = vunpack.c.l.b16 %v1709
      %v1731 = vunpack.c.l.b16 %v1710
      %v1732 = vunpack.c.l.b16 %v1711
      %v1733 = vunpack.c.l.b16 %v1712
      %v1734 = vpack.c.b16 %v1727, %v1726
      %v1735 = vpack.c.b16 %v1729, %v1728
      %v1736 = vpack.c.b16 %v1731, %v1730
      %v1737 = vpack.c.b16 %v1733, %v1732
      %1742 = vmatpush.bf16.msra.mxu0 0
      %1743 = vmatpush.bf16.msra.mxu0 0
      %1744 = vmatpush.bf16.msra.mxu0 0
      %1745 = vmatpush.bf16.msra.mxu0 0
      %1746 = vmatpush.bf16.msra.mxu0 %v1737
      %1747 = vmatpush.bf16.msra.mxu0 %v1736
      %1748 = vmatpush.bf16.msra.mxu0 %v1735
      %1749 = vmatpush.bf16.msra.mxu0 %v1734
      %1750 = vmatmul.bf16.gmra.mxu0 %v1416
      %v1751 = vpop.f32.mrf.mxu0
      %v1752 = vadd.f32 %v1716, %v1751
      %v1753 = vpop.f32.mrf.mxu0
      %v1754 = vadd.f32 %v1716, %v1753
      %1755 = vmatmul.bf16.gmra.mxu0 %v1419
      %v1756 = vpop.f32.mrf.mxu0
      %v1757 = vadd.f32 %v1716, %v1756
      %v1758 = vpop.f32.mrf.mxu0
      %1759 = vdwg.mxu0
      %s1760 = scalar_lea.vmem %s12, 32
      %v1761 = vld [vmem:[%s1760] sm:$0xf]
      %v1762 = vld [vmem:[%s1760 + $0x4] sm:$0xf]
      %v1763 = vld [vmem:[%s1760 + $0x8] sm:$0xf]
      %v1764 = vld [vmem:[%s1760 + $0xc] sm:$0xf]
      %v1765 = vld [vmem:[%s1760 + $0x10] sm:$0xf]
      %v1766 = vld [vmem:[%s1760 + $0x14] sm:$0xf]
      %v1767 = vld [vmem:[%s1760 + $0x18] sm:$0xf]
      %v1768 = vld [vmem:[%s1760 + $0x1c] sm:$0xf]
      %s1769 = scalar_lea.vmem %s13, 1
      %v1770 = vld [vmem:[%s1769] sm:$0x1]
      %v1772 = vperm.slane %v1770, 0
      %v1782 = vunpack.c.l.b16 %v1761
      %v1783 = vunpack.c.l.b16 %v1762
      %v1784 = vunpack.c.l.b16 %v1763
      %v1785 = vunpack.c.l.b16 %v1764
      %v1786 = vunpack.c.l.b16 %v1765
      %v1787 = vunpack.c.l.b16 %v1766
      %v1788 = vunpack.c.l.b16 %v1767
      %v1789 = vunpack.c.l.b16 %v1768
      %v1790 = vpack.c.b16 %v1783, %v1782
      %v1791 = vpack.c.b16 %v1785, %v1784
      %v1792 = vpack.c.b16 %v1787, %v1786
      %v1793 = vpack.c.b16 %v1789, %v1788
      %1798 = vmatpush.bf16.msra.mxu0 0
      %1799 = vmatpush.bf16.msra.mxu0 0
      %1800 = vmatpush.bf16.msra.mxu0 0
      %1801 = vmatpush.bf16.msra.mxu0 0
      %1802 = vmatpush.bf16.msra.mxu0 %v1793
      %1803 = vmatpush.bf16.msra.mxu0 %v1792
      %1804 = vmatpush.bf16.msra.mxu0 %v1791
      %1805 = vmatpush.bf16.msra.mxu0 %v1790
      %1806 = vmatmul.bf16.gmra.mxu0 %v1416
      %v1807 = vpop.f32.mrf.mxu0
      %v1808 = vadd.f32 %v1772, %v1807
      %v1809 = vpop.f32.mrf.mxu0
      %v1810 = vadd.f32 %v1772, %v1809
      %1811 = vmatmul.bf16.gmra.mxu0 %v1419
      %v1812 = vpop.f32.mrf.mxu0
      %v1813 = vadd.f32 %v1772, %v1812
      %v1814 = vpop.f32.mrf.mxu0
      %1815 = vdwg.mxu0
      %v1816 = vpack.c.bf16 %v1698, %v1696
      %v1817 = vpack.c.bf16 %v1701, %v1701
      %v1818 = vpack.c.bf16 %v1754, %v1752
      %v1819 = vpack.c.bf16 %v1757, %v1757
      %v1821 = vsel %vm1551, %v1816, 0
      %v1824 = vsel %vm1551, %v1817, 0
      %v1827 = vsel %vm1551, %v1818, 0
      %v1830 = vsel %vm1551, %v1819, 0
      %1832 = vmatpush.bf16.xpose.msra.mxu0 0
      %1833 = vmatpush.bf16.xpose.msra.mxu0 0
      %1834 = vmatpush.bf16.xpose.msra.mxu0 0
      %1835 = vmatpush.bf16.xpose.msra.mxu0 0
      %1836 = vmatpush.bf16.xpose.msra.mxu0 0
      %1837 = vmatpush.bf16.xpose.msra.mxu0 0
      %1838 = vmatpush.bf16.xpose.msra.mxu0 %v1830
      %1839 = vmatpush.bf16.xpose.msra.mxu0 %v1827
      %1840 = vmatmul.bf16.gmra.mxu0 %v1821
      %v1841 = vpop.f32.mrf.mxu0
      %v1842 = vadd.f32 %v1286, %v1841
      %v1843 = vpop.f32.mrf.mxu0
      %v1844 = vadd.f32 %v1287, %v1843
      %1845 = vmatmul.bf16.gmra.mxu0 %v1824
      %v1846 = vpop.f32.mrf.mxu0
      %v1847 = vadd.f32 %v1288, %v1846
      %v1848 = vpop.f32.mrf.mxu0
      %1849 = vdwg.mxu0
      %v1850 = vsel %vm1582, %v1842, -inf
      %1851 = vmax.xlane.f32.xlu0 %v1850
      %v1852 = vpop.xlane.xlu0 %1851
      %v1853 = vsel %vm1582, %v1844, -inf
      %1854 = vmax.xlane.f32.xlu0 %v1853
      %v1855 = vpop.xlane.xlu0 %1854
      %v1856 = vsel %vm1582, %v1847, -inf
      %1857 = vmax.xlane.f32.xlu0 %v1856
      %v1858 = vpop.xlane.xlu0 %1857
      %v1859 = vsub.f32 %v1842, %v1852
      %v1860 = vsub.f32 %v1844, %v1855
      %v1861 = vsub.f32 %v1847, %v1858
      %v1862 = vmul.f32 %v1859, 1.442695
      %v1863 = vpow.pop %v1862
      %v1864 = vmul.f32 %v1860, 1.442695
      %v1865 = vpow.pop %v1864
      %v1866 = vmul.f32 %v1861, 1.442695
      %v1867 = vpow.pop %v1866
      %v1868 = vsel %vm1582, %v1863, 0.0
      %1869 = vadd.xlane.f32.xlu0 %v1868
      %v1870 = vpop.xlane.xlu0 %1869
      %v1871 = vsel %vm1582, %v1865, 0.0
      %1872 = vadd.xlane.f32.xlu0 %v1871
      %v1873 = vpop.xlane.xlu0 %1872
      %v1874 = vsel %vm1582, %v1867, 0.0
      %1875 = vadd.xlane.f32.xlu0 %v1874
      %v1876 = vpop.xlane.xlu0 %1875
      %v1877 = vrcp.pop %v1870
      %v1878 = vrcp.pop %v1873
      %v1879 = vrcp.pop %v1876
      %v1880 = vmul.f32 %v1863, %v1877
      %v1881 = vmul.f32 %v1865, %v1878
      %v1882 = vmul.f32 %v1867, %v1879
      %v1883 = vpack.c.bf16 %v1881, %v1880
      %v1884 = vpack.c.bf16 %v1882, %v1882
      %v1885 = vpack.c.bf16 %v1810, %v1808
      %v1886 = vpack.c.bf16 %v1813, %v1813
      %v1888 = vsel %vm1582, %v1883, 0
      %v1891 = vsel %vm1582, %v1884, 0
      %v1894 = vsel %vm1626, %v1886, 0
      %1896 = vmatpush.bf16.msra.mxu0 0
      %1897 = vmatpush.bf16.msra.mxu0 0
      %1898 = vmatpush.bf16.msra.mxu0 0
      %1899 = vmatpush.bf16.msra.mxu0 0
      %1900 = vmatpush.bf16.msra.mxu0 0
      %1901 = vmatpush.bf16.msra.mxu0 0
      %1902 = vmatpush.bf16.msra.mxu0 %v1894
      %1903 = vmatpush.bf16.msra.mxu0 %v1885
      %1904 = vmatmul.bf16.gmra.mxu0 %v1888
      %v1905 = vpop.f32.mrf.mxu0
      %v1906 = vadd.f32 0.0, %v1905
      %v1907 = vpop.f32.mrf.mxu0
      %v1908 = vadd.f32 0.0, %v1907
      %1909 = vmatmul.bf16.gmra.mxu0 %v1891
      %v1910 = vpop.f32.mrf.mxu0
      %v1911 = vadd.f32 0.0, %v1910
      %v1912 = vpop.f32.mrf.mxu0
      %1913 = vdwg.mxu0
      %1917 = vrot.lane.b32.xlu0 %v1906, 32
      %v1918 = vpop.permute.xlu0 %1917
      %1919 = vrot.lane.b32.xlu0 %v1908, 32
      %v1920 = vpop.permute.xlu0 %1919
      %1921 = vrot.lane.b32.xlu0 %v1911, 32
      %v1922 = vpop.permute.xlu0 %1921
      %v1926 = vsel %vm1551, %v1640, %v1918
      %v1927 = vsel %vm1551, %v1642, %v1920
      %v1928 = vsel %vm1551, %v1645, %v1922
      %v1929 = vld [vmem:[%s14] sm:$0xf]
      %v1930 = vld [vmem:[%s14 + $0x4] sm:$0xf]
      %v1931 = vld [vmem:[%s14 + $0x8] sm:$0xf]
      %v1932 = vld [vmem:[%s14 + $0xc] sm:$0xf]
      %v1933 = vld [vmem:[%s14 + $0x10] sm:$0xf]
      %v1934 = vld [vmem:[%s14 + $0x14] sm:$0xf]
      %v1935 = vld [vmem:[%s14 + $0x18] sm:$0xf]
      %v1936 = vld [vmem:[%s14 + $0x1c] sm:$0xf]
      %v1937 = vpack.c.bf16 %v1927, %v1926
      %v1938 = vpack.c.bf16 %v1928, %v1928
      %v1947 = vunpack.c.l.b16 %v1929
      %v1948 = vunpack.c.l.b16 %v1930
      %v1949 = vunpack.c.l.b16 %v1931
      %v1950 = vunpack.c.l.b16 %v1932
      %v1951 = vunpack.c.l.b16 %v1933
      %v1952 = vunpack.c.l.b16 %v1934
      %v1953 = vunpack.c.l.b16 %v1935
      %v1954 = vunpack.c.l.b16 %v1936
      %v1955 = vpack.c.b16 %v1948, %v1947
      %v1956 = vpack.c.b16 %v1950, %v1949
      %v1957 = vpack.c.b16 %v1952, %v1951
      %v1958 = vpack.c.b16 %v1954, %v1953
      %v1964 = vsel %vm1291, %v1937, 0
      %v1967 = vsel %vm1291, %v1938, 0
      %1969 = vmatpush.bf16.msra.mxu0 0
      %1970 = vmatpush.bf16.msra.mxu0 0
      %1971 = vmatpush.bf16.msra.mxu0 0
      %1972 = vmatpush.bf16.msra.mxu0 0
      %1973 = vmatpush.bf16.msra.mxu0 %v1958
      %1974 = vmatpush.bf16.msra.mxu0 %v1957
      %1975 = vmatpush.bf16.msra.mxu0 %v1956
      %1976 = vmatpush.bf16.msra.mxu0 %v1955
      %1977 = vmatmul.bf16.gmra.mxu0 %v1964
      %v1978 = vpop.f32.mrf.mxu0
      %v1979 = vadd.f32 0.0, %v1978
      %v1980 = vpop.f32.mrf.mxu0
      %v1981 = vadd.f32 0.0, %v1980
      %1982 = vmatmul.bf16.gmra.mxu0 %v1967
      %v1983 = vpop.f32.mrf.mxu0
      %v1984 = vadd.f32 0.0, %v1983
      %v1985 = vpop.f32.mrf.mxu0
      %1986 = vdwg.mxu0
      %v1987 = vadd.f32 %v1285, %v1979
      %v1988 = vadd.f32 %v1283, %v1981
      %v1989 = vadd.f32 %v1284, %v1984
      %v1990 = vld [vmem:[%s15] sm:$0x1]
      %v1992 = vperm.slane %v1990, 0
      %v1994 = vadd.f32 %v1987, %v1992
      %v1995 = vadd.f32 %v1988, %v1992
      %v1996 = vadd.f32 %v1989, %v1992
      %v1997 = vld [vmem:[%s16] sm:$0x1]
      %v1998 = vld [vmem:[%s17] sm:$0x1]
      %v1999 = vsel %vm1291, %v1994, 0.0
      %2000 = vadd.xlane.f32.xlu0 %v1999
      %v2001 = vpop.xlane.xlu0 %2000
      %v2002 = vsel %vm1291, %v1995, 0.0
      %2003 = vadd.xlane.f32.xlu0 %v2002
      %v2004 = vpop.xlane.xlu0 %2003
      %v2005 = vsel %vm1291, %v1996, 0.0
      %2006 = vadd.xlane.f32.xlu0 %v2005
      %v2007 = vpop.xlane.xlu0 %2006
      %v2008 = vmul.f32 %v2001, %v1307
      %v2009 = vmul.f32 %v2004, %v1307
      %v2010 = vmul.f32 %v2007, %v1307
      %v2011 = vsub.f32 %v1994, %v2008
      %v2012 = vsub.f32 %v1995, %v2009
      %v2013 = vsub.f32 %v1996, %v2010
      %v2014 = vmul.f32 %v2011, %v2011
      %v2015 = vmul.f32 %v2012, %v2012
      %v2016 = vmul.f32 %v2013, %v2013
      %v2017 = vsel %vm1291, %v2014, 0.0
      %2018 = vadd.xlane.f32.xlu0 %v2017
      %v2019 = vpop.xlane.xlu0 %2018
      %v2020 = vsel %vm1291, %v2015, 0.0
      %2021 = vadd.xlane.f32.xlu0 %v2020
      %v2022 = vpop.xlane.xlu0 %2021
      %v2023 = vsel %vm1291, %v2016, 0.0
      %2024 = vadd.xlane.f32.xlu0 %v2023
      %v2025 = vpop.xlane.xlu0 %2024
      %v2026 = vmul.f32 %v2019, %v1307
      %v2027 = vmul.f32 %v2022, %v1307
      %v2028 = vmul.f32 %v2025, %v1307
      %v2029 = vadd.f32 %v2026, 1e-06
      %v2030 = vadd.f32 %v2027, 1e-06
      %v2031 = vadd.f32 %v2028, 1e-06
      %v2032 = vrsqrt.pop %v2029
      %v2033 = vmul.f32 %v2032, %v2029
      %v2034 = vmul.f32 %v2033, %v2032
      %v2035 = vmul.f32 0.5, %v2034
      %v2036 = vsub.f32 1.5, %v2035
      %v2037 = vmul.f32 %v2032, %v2036
      %vm2038 = vweird.f32 %v2029
      %vm2039 = vweird.f32 %v2032
      %vm2040 = vmor %vm2038, %vm2039
      %v2041 = vsel %vm2040, %v2032, %v2037
      %v2042 = vrsqrt.pop %v2030
      %v2043 = vmul.f32 %v2042, %v2030
      %v2044 = vmul.f32 %v2043, %v2042
      %v2045 = vmul.f32 0.5, %v2044
      %v2046 = vsub.f32 1.5, %v2045
      %v2047 = vmul.f32 %v2042, %v2046
      %vm2048 = vweird.f32 %v2030
      %vm2049 = vweird.f32 %v2042
      %vm2050 = vmor %vm2048, %vm2049
      %v2051 = vsel %vm2050, %v2042, %v2047
      %v2052 = vrsqrt.pop %v2031
      %v2053 = vmul.f32 %v2052, %v2031
      %v2054 = vmul.f32 %v2053, %v2052
      %v2055 = vmul.f32 0.5, %v2054
      %v2056 = vsub.f32 1.5, %v2055
      %v2057 = vmul.f32 %v2052, %v2056
      %vm2058 = vweird.f32 %v2031
      %vm2059 = vweird.f32 %v2052
      %vm2060 = vmor %vm2058, %vm2059
      %v2061 = vsel %vm2060, %v2052, %v2057
      %v2062 = vmul.f32 %v2011, %v2041
      %v2063 = vmul.f32 %v2012, %v2051
      %v2064 = vmul.f32 %v2013, %v2061
      %v2066 = vperm.slane %v1997, 0
      %v2068 = vmul.f32 %v2062, %v2066
      %v2069 = vmul.f32 %v2063, %v2066
      %v2070 = vmul.f32 %v2064, %v2066
      %v2072 = vperm.slane %v1998, 0
      %v2074 = vadd.f32 %v2068, %v2072
      %v2075 = vadd.f32 %v2069, %v2072
      %v2076 = vadd.f32 %v2070, %v2072
      %v2077 = vld [vmem:[%s18] sm:$0xff]
      %v2078 = vld [vmem:[%s18 + $0x8] sm:$0xff]
      %v2079 = vld [vmem:[%s18 + $0x10] sm:$0xff]
      %v2080 = vld [vmem:[%s18 + $0x18] sm:$0xff]
      %v2081 = vld [vmem:[%s18 + $0x20] sm:$0xff]
      %v2082 = vld [vmem:[%s18 + $0x28] sm:$0xff]
      %v2083 = vld [vmem:[%s18 + $0x30] sm:$0xff]
      %v2084 = vld [vmem:[%s18 + $0x38] sm:$0xff]
      %v2085 = vpack.c.bf16 %v2075, %v2074
      %v2086 = vpack.c.bf16 %v2076, %v2076
      %v2087 = vld [vmem:[%s19] sm:$0x3]
      %v2089 = vperm.slane %v2087, 0
      %v2090 = vperm.slane %v2087, 1
      %v2101 = vunpack.c.l.b16 %v2077
      %v2102 = vunpack.c.h.b16 %v2077
      %v2103 = vunpack.c.l.b16 %v2078
      %v2104 = vunpack.c.h.b16 %v2078
      %v2105 = vunpack.c.l.b16 %v2079
      %v2106 = vunpack.c.h.b16 %v2079
      %v2107 = vunpack.c.l.b16 %v2080
      %v2108 = vunpack.c.h.b16 %v2080
      %v2109 = vunpack.c.l.b16 %v2081
      %v2110 = vunpack.c.h.b16 %v2081
      %v2111 = vunpack.c.l.b16 %v2082
      %v2112 = vunpack.c.h.b16 %v2082
      %v2113 = vunpack.c.l.b16 %v2083
      %v2114 = vunpack.c.h.b16 %v2083
      %v2115 = vunpack.c.l.b16 %v2084
      %v2116 = vunpack.c.h.b16 %v2084
      %v2117 = vpack.c.b16 %v2103, %v2101
      %v2118 = vpack.c.b16 %v2104, %v2102
      %v2119 = vpack.c.b16 %v2107, %v2105
      %v2120 = vpack.c.b16 %v2108, %v2106
      %v2121 = vpack.c.b16 %v2111, %v2109
      %v2122 = vpack.c.b16 %v2112, %v2110
      %v2123 = vpack.c.b16 %v2115, %v2113
      %v2124 = vpack.c.b16 %v2116, %v2114
      %v2134 = vsel %vm1291, %v2085, 0
      %v2137 = vsel %vm1291, %v2086, 0
      %2139 = vmatpush.bf16.msra.mxu0 0
      %2140 = vmatpush.bf16.msra.mxu0 0
      %2141 = vmatpush.bf16.msra.mxu0 0
      %2142 = vmatpush.bf16.msra.mxu0 0
      %2143 = vmatpush.bf16.msra.mxu0 %v2123
      %2144 = vmatpush.bf16.msra.mxu0 %v2121
      %2145 = vmatpush.bf16.msra.mxu0 %v2119
      %2146 = vmatpush.bf16.msra.mxu0 %v2117
      %2147 = vmatmul.bf16.gmra.mxu0 %v2134
      %v2148 = vpop.f32.mrf.mxu0
      %v2149 = vadd.f32 %v2089, %v2148
      %v2150 = vpop.f32.mrf.mxu0
      %v2151 = vadd.f32 %v2089, %v2150
      %2152 = vmatmul.bf16.gmra.mxu0 %v2137
      %v2153 = vpop.f32.mrf.mxu0
      %v2154 = vadd.f32 %v2089, %v2153
      %v2155 = vpop.f32.mrf.mxu0
      %2156 = vdwg.mxu0
      %2157 = vmatpush.bf16.msra.mxu0 0
      %2158 = vmatpush.bf16.msra.mxu0 0
      %2159 = vmatpush.bf16.msra.mxu0 0
      %2160 = vmatpush.bf16.msra.mxu0 0
      %2161 = vmatpush.bf16.msra.mxu0 %v2124
      %2162 = vmatpush.bf16.msra.mxu0 %v2122
      %2163 = vmatpush.bf16.msra.mxu0 %v2120
      %2164 = vmatpush.bf16.msra.mxu0 %v2118
      %2165 = vmatmul.bf16.gmra.mxu0 %v2134
      %v2166 = vpop.f32.mrf.mxu0
      %v2167 = vadd.f32 %v2090, %v2166
      %v2168 = vpop.f32.mrf.mxu0
      %v2169 = vadd.f32 %v2090, %v2168
      %2170 = vmatmul.bf16.gmra.mxu0 %v2137
      %v2171 = vpop.f32.mrf.mxu0
      %v2172 = vadd.f32 %v2090, %v2171
      %v2173 = vpop.f32.mrf.mxu0
      %2174 = vdwg.mxu0
      %v2175 = vmul.f32 %v2149, %v2149
      %v2176 = vmul.f32 %v2167, %v2167
      %v2177 = vmul.f32 %v2151, %v2151
      %v2178 = vmul.f32 %v2169, %v2169
      %v2179 = vmul.f32 %v2154, %v2154
      %v2180 = vmul.f32 %v2172, %v2172
      %v2181 = vmul.f32 %v2149, %v2175
      %v2182 = vmul.f32 %v2167, %v2176
      %v2183 = vmul.f32 %v2151, %v2177
      %v2184 = vmul.f32 %v2169, %v2178
      %v2185 = vmul.f32 %v2154, %v2179
      %v2186 = vmul.f32 %v2172, %v2180
      %v2187 = vmul.f32 %v2181, 0.044715
      %v2188 = vmul.f32 %v2182, 0.044715
      %v2189 = vmul.f32 %v2183, 0.044715
      %v2190 = vmul.f32 %v2184, 0.044715
      %v2191 = vmul.f32 %v2185, 0.044715
      %v2192 = vmul.f32 %v2186, 0.044715
      %v2193 = vadd.f32 %v2149, %v2187
      %v2194 = vadd.f32 %v2167, %v2188
      %v2195 = vadd.f32 %v2151, %v2189
      %v2196 = vadd.f32 %v2169, %v2190
      %v2197 = vadd.f32 %v2154, %v2191
      %v2198 = vadd.f32 %v2172, %v2192
      %v2199 = vmul.f32 %v2193, 0.7978846
      %v2200 = vmul.f32 %v2194, 0.7978846
      %v2201 = vmul.f32 %v2195, 0.7978846
      %v2202 = vmul.f32 %v2196, 0.7978846
      %v2203 = vmul.f32 %v2197, 0.7978846
      %v2204 = vmul.f32 %v2198, 0.7978846
      %v2205 = vtanh.pop %v2199
      %v2206 = vtanh.pop %v2200
      %v2207 = vtanh.pop %v2201
      %v2208 = vtanh.pop %v2202
      %v2209 = vtanh.pop %v2203
      %v2210 = vtanh.pop %v2204
      %v2211 = vadd.f32 %v2205, 1.0
      %v2212 = vadd.f32 %v2206, 1.0
      %v2213 = vadd.f32 %v2207, 1.0
      %v2214 = vadd.f32 %v2208, 1.0
      %v2215 = vadd.f32 %v2209, 1.0
      %v2216 = vadd.f32 %v2210, 1.0
      %v2217 = vmul.f32 %v2211, 0.5
      %v2218 = vmul.f32 %v2212, 0.5
      %v2219 = vmul.f32 %v2213, 0.5
      %v2220 = vmul.f32 %v2214, 0.5
      %v2221 = vmul.f32 %v2215, 0.5
      %v2222 = vmul.f32 %v2216, 0.5
      %v2223 = vmul.f32 %v2149, %v2217
      %v2224 = vmul.f32 %v2167, %v2218
      %v2225 = vmul.f32 %v2151, %v2219
      %v2226 = vmul.f32 %v2169, %v2220
      %v2227 = vmul.f32 %v2154, %v2221
      %v2228 = vmul.f32 %v2172, %v2222
      %v2229 = vld [vmem:[%s20] sm:$0xf]
      %v2230 = vld [vmem:[%s20 + $0x4] sm:$0xf]
      %v2231 = vld [vmem:[%s20 + $0x8] sm:$0xf]
      %v2232 = vld [vmem:[%s20 + $0xc] sm:$0xf]
      %v2233 = vld [vmem:[%s20 + $0x10] sm:$0xf]
      %v2234 = vld [vmem:[%s20 + $0x14] sm:$0xf]
      %v2235 = vld [vmem:[%s20 + $0x18] sm:$0xf]
      %v2236 = vld [vmem:[%s20 + $0x1c] sm:$0xf]
      %v2237 = vld [vmem:[%s20 + $0x20] sm:$0xf]
      %v2238 = vld [vmem:[%s20 + $0x24] sm:$0xf]
      %v2239 = vld [vmem:[%s20 + $0x28] sm:$0xf]
      %v2240 = vld [vmem:[%s20 + $0x2c] sm:$0xf]
      %v2241 = vld [vmem:[%s20 + $0x30] sm:$0xf]
      %v2242 = vld [vmem:[%s20 + $0x34] sm:$0xf]
      %v2243 = vld [vmem:[%s20 + $0x38] sm:$0xf]
      %v2244 = vld [vmem:[%s20 + $0x3c] sm:$0xf]
      %v2245 = vld [vmem:[%s20 + $0x40] sm:$0xf]
      %v2246 = vld [vmem:[%s20 + $0x44] sm:$0xf]
      %v2247 = vld [vmem:[%s20 + $0x48] sm:$0xf]
      %v2248 = vld [vmem:[%s20 + $0x4c] sm:$0xf]
      %v2249 = vld [vmem:[%s20 + $0x50] sm:$0xf]
      %v2250 = vld [vmem:[%s20 + $0x54] sm:$0xf]
      %v2251 = vld [vmem:[%s20 + $0x58] sm:$0xf]
      %v2252 = vld [vmem:[%s20 + $0x5c] sm:$0xf]
      %v2253 = vld [vmem:[%s20 + $0x60] sm:$0xf]
      %v2254 = vld [vmem:[%s20 + $0x64] sm:$0xf]
      %v2255 = vld [vmem:[%s20 + $0x68] sm:$0xf]
      %v2256 = vld [vmem:[%s20 + $0x6c] sm:$0xf]
      %v2257 = vld [vmem:[%s20 + $0x70] sm:$0xf]
      %v2258 = vld [vmem:[%s20 + $0x74] sm:$0xf]
      %v2259 = vld [vmem:[%s20 + $0x78] sm:$0xf]
      %v2260 = vld [vmem:[%s20 + $0x7c] sm:$0xf]
      %v2261 = vpack.c.bf16 %v2225, %v2223
      %v2262 = vpack.c.bf16 %v2226, %v2224
      %v2263 = vpack.c.bf16 %v2227, %v2227
      %v2264 = vpack.c.bf16 %v2228, %v2228
      %v2265 = vld [vmem:[%s21] sm:$0x1]
      %v2267 = vperm.slane %v2265, 0
      %v2301 = vunpack.c.l.b16 %v2229
      %v2302 = vunpack.c.l.b16 %v2230
      %v2303 = vunpack.c.l.b16 %v2231
      %v2304 = vunpack.c.l.b16 %v2232
      %v2305 = vunpack.c.l.b16 %v2233
      %v2306 = vunpack.c.l.b16 %v2234
      %v2307 = vunpack.c.l.b16 %v2235
      %v2308 = vunpack.c.l.b16 %v2236
      %v2309 = vunpack.c.l.b16 %v2237
      %v2310 = vunpack.c.l.b16 %v2238
      %v2311 = vunpack.c.l.b16 %v2239
      %v2312 = vunpack.c.l.b16 %v2240
      %v2313 = vunpack.c.l.b16 %v2241
      %v2314 = vunpack.c.l.b16 %v2242
      %v2315 = vunpack.c.l.b16 %v2243
      %v2316 = vunpack.c.l.b16 %v2244
      %v2317 = vunpack.c.l.b16 %v2245
      %v2318 = vunpack.c.l.b16 %v2246
      %v2319 = vunpack.c.l.b16 %v2247
      %v2320 = vunpack.c.l.b16 %v2248
      %v2321 = vunpack.c.l.b16 %v2249
      %v2322 = vunpack.c.l.b16 %v2250
      %v2323 = vunpack.c.l.b16 %v2251
      %v2324 = vunpack.c.l.b16 %v2252
      %v2325 = vunpack.c.l.b16 %v2253
      %v2326 = vunpack.c.l.b16 %v2254
      %v2327 = vunpack.c.l.b16 %v2255
      %v2328 = vunpack.c.l.b16 %v2256
      %v2329 = vunpack.c.l.b16 %v2257
      %v2330 = vunpack.c.l.b16 %v2258
      %v2331 = vunpack.c.l.b16 %v2259
      %v2332 = vunpack.c.l.b16 %v2260
      %v2333 = vpack.c.b16 %v2302, %v2301
      %v2334 = vpack.c.b16 %v2304, %v2303
      %v2335 = vpack.c.b16 %v2306, %v2305
      %v2336 = vpack.c.b16 %v2308, %v2307
      %v2337 = vpack.c.b16 %v2310, %v2309
      %v2338 = vpack.c.b16 %v2312, %v2311
      %v2339 = vpack.c.b16 %v2314, %v2313
      %v2340 = vpack.c.b16 %v2316, %v2315
      %v2341 = vpack.c.b16 %v2318, %v2317
      %v2342 = vpack.c.b16 %v2320, %v2319
      %v2343 = vpack.c.b16 %v2322, %v2321
      %v2344 = vpack.c.b16 %v2324, %v2323
      %v2345 = vpack.c.b16 %v2326, %v2325
      %v2346 = vpack.c.b16 %v2328, %v2327
      %v2347 = vpack.c.b16 %v2330, %v2329
      %v2348 = vpack.c.b16 %v2332, %v2331
      %2365 = vmatpush.bf16.msra.mxu0 %v2340
      %2366 = vmatpush.bf16.msra.mxu0 %v2339
      %2367 = vmatpush.bf16.msra.mxu0 %v2338
      %2368 = vmatpush.bf16.msra.mxu0 %v2337
      %2369 = vmatpush.bf16.msra.mxu0 %v2336
      %2370 = vmatpush.bf16.msra.mxu0 %v2335
      %2371 = vmatpush.bf16.msra.mxu0 %v2334
      %2372 = vmatpush.bf16.msra.mxu0 %v2333
      %2373 = vmatmul.bf16.gmra.mxu0 %v2261
      %v2374 = vpop.f32.mrf.mxu0
      %v2375 = vadd.f32 %v2267, %v2374
      %v2376 = vpop.f32.mrf.mxu0
      %v2377 = vadd.f32 %v2267, %v2376
      %2378 = vmatmul.bf16.gmra.mxu0 %v2263
      %v2379 = vpop.f32.mrf.mxu0
      %v2380 = vadd.f32 %v2267, %v2379
      %v2381 = vpop.f32.mrf.mxu0
      %2382 = vdwg.mxu0
      %2383 = vmatpush.bf16.msra.mxu0 %v2348
      %2384 = vmatpush.bf16.msra.mxu0 %v2347
      %2385 = vmatpush.bf16.msra.mxu0 %v2346
      %2386 = vmatpush.bf16.msra.mxu0 %v2345
      %2387 = vmatpush.bf16.msra.mxu0 %v2344
      %2388 = vmatpush.bf16.msra.mxu0 %v2343
      %2389 = vmatpush.bf16.msra.mxu0 %v2342
      %2390 = vmatpush.bf16.msra.mxu0 %v2341
      %2391 = vmatmul.bf16.gmra.mxu0 %v2262
      %v2392 = vpop.f32.mrf.mxu0
      %v2393 = vadd.f32 %v2375, %v2392
      %v2394 = vpop.f32.mrf.mxu0
      %v2395 = vadd.f32 %v2377, %v2394
      %2396 = vmatmul.bf16.gmra.mxu0 %v2264
      %v2397 = vpop.f32.mrf.mxu0
      %v2398 = vadd.f32 %v2380, %v2397
      %v2399 = vpop.f32.mrf.mxu0
      %2400 = vdwg.mxu0
      %v2401 = vadd.f32 %v1994, %v2393
      %v2402 = vadd.f32 %v1995, %v2395
      %v2403 = vadd.f32 %v1996, %v2398
      %s2404 = scalar_lea.vmem %s6, 1
      %v2405 = vld [vmem:[%s2404] sm:$0x1]
      %s2406 = scalar_lea.vmem %s7, 1
      %v2407 = vld [vmem:[%s2406] sm:$0x1]
      %v2408 = vsel %vm1291, %v2401, 0.0
      %2409 = vadd.xlane.f32.xlu0 %v2408
      %v2410 = vpop.xlane.xlu0 %2409
      %v2411 = vsel %vm1291, %v2402, 0.0
      %2412 = vadd.xlane.f32.xlu0 %v2411
      %v2413 = vpop.xlane.xlu0 %2412
      %v2414 = vsel %vm1291, %v2403, 0.0
      %2415 = vadd.xlane.f32.xlu0 %v2414
      %v2416 = vpop.xlane.xlu0 %2415
      %v2417 = vmul.f32 %v2410, %v1307
      %v2418 = vmul.f32 %v2413, %v1307
      %v2419 = vmul.f32 %v2416, %v1307
      %v2420 = vsub.f32 %v2401, %v2417
      %v2421 = vsub.f32 %v2402, %v2418
      %v2422 = vsub.f32 %v2403, %v2419
      %v2423 = vmul.f32 %v2420, %v2420
      %v2424 = vmul.f32 %v2421, %v2421
      %v2425 = vmul.f32 %v2422, %v2422
      %v2426 = vsel %vm1291, %v2423, 0.0
      %2427 = vadd.xlane.f32.xlu0 %v2426
      %v2428 = vpop.xlane.xlu0 %2427
      %v2429 = vsel %vm1291, %v2424, 0.0
      %2430 = vadd.xlane.f32.xlu0 %v2429
      %v2431 = vpop.xlane.xlu0 %2430
      %v2432 = vsel %vm1291, %v2425, 0.0
      %2433 = vadd.xlane.f32.xlu0 %v2432
      %v2434 = vpop.xlane.xlu0 %2433
      %v2435 = vmul.f32 %v2428, %v1307
      %v2436 = vmul.f32 %v2431, %v1307
      %v2437 = vmul.f32 %v2434, %v1307
      %v2438 = vadd.f32 %v2435, 1e-06
      %v2439 = vadd.f32 %v2436, 1e-06
      %v2440 = vadd.f32 %v2437, 1e-06
      %v2441 = vrsqrt.pop %v2438
      %v2442 = vmul.f32 %v2441, %v2438
      %v2443 = vmul.f32 %v2442, %v2441
      %v2444 = vmul.f32 0.5, %v2443
      %v2445 = vsub.f32 1.5, %v2444
      %v2446 = vmul.f32 %v2441, %v2445
      %vm2447 = vweird.f32 %v2438
      %vm2448 = vweird.f32 %v2441
      %vm2449 = vmor %vm2447, %vm2448
      %v2450 = vsel %vm2449, %v2441, %v2446
      %v2451 = vrsqrt.pop %v2439
      %v2452 = vmul.f32 %v2451, %v2439
      %v2453 = vmul.f32 %v2452, %v2451
      %v2454 = vmul.f32 0.5, %v2453
      %v2455 = vsub.f32 1.5, %v2454
      %v2456 = vmul.f32 %v2451, %v2455
      %vm2457 = vweird.f32 %v2439
      %vm2458 = vweird.f32 %v2451
      %vm2459 = vmor %vm2457, %vm2458
      %v2460 = vsel %vm2459, %v2451, %v2456
      %v2461 = vrsqrt.pop %v2440
      %v2462 = vmul.f32 %v2461, %v2440
      %v2463 = vmul.f32 %v2462, %v2461
      %v2464 = vmul.f32 0.5, %v2463
      %v2465 = vsub.f32 1.5, %v2464
      %v2466 = vmul.f32 %v2461, %v2465
      %vm2467 = vweird.f32 %v2440
      %vm2468 = vweird.f32 %v2461
      %vm2469 = vmor %vm2467, %vm2468
      %v2470 = vsel %vm2469, %v2461, %v2466
      %v2471 = vmul.f32 %v2420, %v2450
      %v2472 = vmul.f32 %v2421, %v2460
      %v2473 = vmul.f32 %v2422, %v2470
      %v2475 = vperm.slane %v2405, 0
      %v2477 = vmul.f32 %v2471, %v2475
      %v2478 = vmul.f32 %v2472, %v2475
      %v2479 = vmul.f32 %v2473, %v2475
      %v2481 = vperm.slane %v2407, 0
      %v2483 = vadd.f32 %v2477, %v2481
      %v2484 = vadd.f32 %v2478, %v2481
      %v2485 = vadd.f32 %v2479, %v2481
      %s2486 = scalar_lea.vmem %s8, 64
      %v2487 = vld [vmem:[%s2486] sm:$0xf]
      %v2488 = vld [vmem:[%s2486 + $0x4] sm:$0xf]
      %v2489 = vld [vmem:[%s2486 + $0x8] sm:$0xf]
      %v2490 = vld [vmem:[%s2486 + $0xc] sm:$0xf]
      %v2491 = vld [vmem:[%s2486 + $0x10] sm:$0xf]
      %v2492 = vld [vmem:[%s2486 + $0x14] sm:$0xf]
      %v2493 = vld [vmem:[%s2486 + $0x18] sm:$0xf]
      %v2494 = vld [vmem:[%s2486 + $0x1c] sm:$0xf]
      %v2495 = vpack.c.bf16 %v2484, %v2483
      %v2496 = vpack.c.bf16 %v2485, %v2485
      %s2497 = scalar_lea.vmem %s9, 2
      %v2498 = vld [vmem:[%s2497] sm:$0x1]
      %v2500 = vperm.slane %v2498, 0
      %v2510 = vunpack.c.l.b16 %v2487
      %v2511 = vunpack.c.l.b16 %v2488
      %v2512 = vunpack.c.l.b16 %v2489
      %v2513 = vunpack.c.l.b16 %v2490
      %v2514 = vunpack.c.l.b16 %v2491
      %v2515 = vunpack.c.l.b16 %v2492
      %v2516 = vunpack.c.l.b16 %v2493
      %v2517 = vunpack.c.l.b16 %v2494
      %v2518 = vpack.c.b16 %v2511, %v2510
      %v2519 = vpack.c.b16 %v2513, %v2512
      %v2520 = vpack.c.b16 %v2515, %v2514
      %v2521 = vpack.c.b16 %v2517, %v2516
      %v2527 = vsel %vm1291, %v2495, 0
      %v2530 = vsel %vm1291, %v2496, 0
      %2532 = vmatpush.bf16.msra.mxu0 0
      %2533 = vmatpush.bf16.msra.mxu0 0
      %2534 = vmatpush.bf16.msra.mxu0 0
      %2535 = vmatpush.bf16.msra.mxu0 0
      %2536 = vmatpush.bf16.msra.mxu0 %v2521
      %2537 = vmatpush.bf16.msra.mxu0 %v2520
      %2538 = vmatpush.bf16.msra.mxu0 %v2519
      %2539 = vmatpush.bf16.msra.mxu0 %v2518
      %2540 = vmatmul.bf16.gmra.mxu0 %v2527
      %v2541 = vpop.f32.mrf.mxu0
      %v2542 = vadd.f32 %v2500, %v2541
      %v2543 = vpop.f32.mrf.mxu0
      %v2544 = vadd.f32 %v2500, %v2543
      %2545 = vmatmul.bf16.gmra.mxu0 %v2530
      %v2546 = vpop.f32.mrf.mxu0
      %v2547 = vadd.f32 %v2500, %v2546
      %v2548 = vpop.f32.mrf.mxu0
      %2549 = vdwg.mxu0
      %s2550 = scalar_lea.vmem %s10, 64
      %v2551 = vld [vmem:[%s2550] sm:$0xf]
      %v2552 = vld [vmem:[%s2550 + $0x4] sm:$0xf]
      %v2553 = vld [vmem:[%s2550 + $0x8] sm:$0xf]
      %v2554 = vld [vmem:[%s2550 + $0xc] sm:$0xf]
      %v2555 = vld [vmem:[%s2550 + $0x10] sm:$0xf]
      %v2556 = vld [vmem:[%s2550 + $0x14] sm:$0xf]
      %v2557 = vld [vmem:[%s2550 + $0x18] sm:$0xf]
      %v2558 = vld [vmem:[%s2550 + $0x1c] sm:$0xf]
      %s2559 = scalar_lea.vmem %s11, 2
      %v2560 = vld [vmem:[%s2559] sm:$0x1]
      %v2562 = vperm.slane %v2560, 0
      %v2572 = vunpack.c.l.b16 %v2551
      %v2573 = vunpack.c.l.b16 %v2552
      %v2574 = vunpack.c.l.b16 %v2553
      %v2575 = vunpack.c.l.b16 %v2554
      %v2576 = vunpack.c.l.b16 %v2555
      %v2577 = vunpack.c.l.b16 %v2556
      %v2578 = vunpack.c.l.b16 %v2557
      %v2579 = vunpack.c.l.b16 %v2558
      %v2580 = vpack.c.b16 %v2573, %v2572
      %v2581 = vpack.c.b16 %v2575, %v2574
      %v2582 = vpack.c.b16 %v2577, %v2576
      %v2583 = vpack.c.b16 %v2579, %v2578
      %2588 = vmatpush.bf16.msra.mxu0 0
      %2589 = vmatpush.bf16.msra.mxu0 0
      %2590 = vmatpush.bf16.msra.mxu0 0
      %2591 = vmatpush.bf16.msra.mxu0 0
      %2592 = vmatpush.bf16.msra.mxu0 %v2583
      %2593 = vmatpush.bf16.msra.mxu0 %v2582
      %2594 = vmatpush.bf16.msra.mxu0 %v2581
      %2595 = vmatpush.bf16.msra.mxu0 %v2580
      %2596 = vmatmul.bf16.gmra.mxu0 %v2527
      %v2597 = vpop.f32.mrf.mxu0
      %v2598 = vadd.f32 %v2562, %v2597
      %v2599 = vpop.f32.mrf.mxu0
      %v2600 = vadd.f32 %v2562, %v2599
      %2601 = vmatmul.bf16.gmra.mxu0 %v2530
      %v2602 = vpop.f32.mrf.mxu0
      %v2603 = vadd.f32 %v2562, %v2602
      %v2604 = vpop.f32.mrf.mxu0
      %2605 = vdwg.mxu0
      %s2606 = scalar_lea.vmem %s12, 64
      %v2607 = vld [vmem:[%s2606] sm:$0xf]
      %v2608 = vld [vmem:[%s2606 + $0x4] sm:$0xf]
      %v2609 = vld [vmem:[%s2606 + $0x8] sm:$0xf]
      %v2610 = vld [vmem:[%s2606 + $0xc] sm:$0xf]
      %v2611 = vld [vmem:[%s2606 + $0x10] sm:$0xf]
      %v2612 = vld [vmem:[%s2606 + $0x14] sm:$0xf]
      %v2613 = vld [vmem:[%s2606 + $0x18] sm:$0xf]
      %v2614 = vld [vmem:[%s2606 + $0x1c] sm:$0xf]
      %s2615 = scalar_lea.vmem %s13, 2
      %v2616 = vld [vmem:[%s2615] sm:$0x1]
      %v2618 = vperm.slane %v2616, 0
      %v2628 = vunpack.c.l.b16 %v2607
      %v2629 = vunpack.c.l.b16 %v2608
      %v2630 = vunpack.c.l.b16 %v2609
      %v2631 = vunpack.c.l.b16 %v2610
      %v2632 = vunpack.c.l.b16 %v2611
      %v2633 = vunpack.c.l.b16 %v2612
      %v2634 = vunpack.c.l.b16 %v2613
      %v2635 = vunpack.c.l.b16 %v2614
      %v2636 = vpack.c.b16 %v2629, %v2628
      %v2637 = vpack.c.b16 %v2631, %v2630
      %v2638 = vpack.c.b16 %v2633, %v2632
      %v2639 = vpack.c.b16 %v2635, %v2634
      %2644 = vmatpush.bf16.msra.mxu0 0
      %2645 = vmatpush.bf16.msra.mxu0 0
      %2646 = vmatpush.bf16.msra.mxu0 0
      %2647 = vmatpush.bf16.msra.mxu0 0
      %2648 = vmatpush.bf16.msra.mxu0 %v2639
      %2649 = vmatpush.bf16.msra.mxu0 %v2638
      %2650 = vmatpush.bf16.msra.mxu0 %v2637
      %2651 = vmatpush.bf16.msra.mxu0 %v2636
      %2652 = vmatmul.bf16.gmra.mxu0 %v2527
      %v2653 = vpop.f32.mrf.mxu0
      %v2654 = vadd.f32 %v2618, %v2653
      %v2655 = vpop.f32.mrf.mxu0
      %v2656 = vadd.f32 %v2618, %v2655
      %2657 = vmatmul.bf16.gmra.mxu0 %v2530
      %v2658 = vpop.f32.mrf.mxu0
      %v2659 = vadd.f32 %v2618, %v2658
      %v2660 = vpop.f32.mrf.mxu0
      %2661 = vdwg.mxu0
      %v2662 = vpack.c.bf16 %v2544, %v2542
      %v2663 = vpack.c.bf16 %v2547, %v2547
      %v2664 = vpack.c.bf16 %v2600, %v2598
      %v2665 = vpack.c.bf16 %v2603, %v2603
      %v2667 = vsel %vm1551, %v2662, 0
      %v2670 = vsel %vm1551, %v2663, 0
      %v2673 = vsel %vm1551, %v2664, 0
      %v2676 = vsel %vm1551, %v2665, 0
      %2678 = vmatpush.bf16.xpose.msra.mxu0 0
      %2679 = vmatpush.bf16.xpose.msra.mxu0 0
      %2680 = vmatpush.bf16.xpose.msra.mxu0 0
      %2681 = vmatpush.bf16.xpose.msra.mxu0 0
      %2682 = vmatpush.bf16.xpose.msra.mxu0 0
      %2683 = vmatpush.bf16.xpose.msra.mxu0 0
      %2684 = vmatpush.bf16.xpose.msra.mxu0 %v2676
      %2685 = vmatpush.bf16.xpose.msra.mxu0 %v2673
      %2686 = vmatmul.bf16.gmra.mxu0 %v2667
      %v2687 = vpop.f32.mrf.mxu0
      %v2688 = vadd.f32 %v1286, %v2687
      %v2689 = vpop.f32.mrf.mxu0
      %v2690 = vadd.f32 %v1287, %v2689
      %2691 = vmatmul.bf16.gmra.mxu0 %v2670
      %v2692 = vpop.f32.mrf.mxu0
      %v2693 = vadd.f32 %v1288, %v2692
      %v2694 = vpop.f32.mrf.mxu0
      %2695 = vdwg.mxu0
      %v2696 = vsel %vm1582, %v2688, -inf
      %2697 = vmax.xlane.f32.xlu0 %v2696
      %v2698 = vpop.xlane.xlu0 %2697
      %v2699 = vsel %vm1582, %v2690, -inf
      %2700 = vmax.xlane.f32.xlu0 %v2699
      %v2701 = vpop.xlane.xlu0 %2700
      %v2702 = vsel %vm1582, %v2693, -inf
      %2703 = vmax.xlane.f32.xlu0 %v2702
      %v2704 = vpop.xlane.xlu0 %2703
      %v2705 = vsub.f32 %v2688, %v2698
      %v2706 = vsub.f32 %v2690, %v2701
      %v2707 = vsub.f32 %v2693, %v2704
      %v2708 = vmul.f32 %v2705, 1.442695
      %v2709 = vpow.pop %v2708
      %v2710 = vmul.f32 %v2706, 1.442695
      %v2711 = vpow.pop %v2710
      %v2712 = vmul.f32 %v2707, 1.442695
      %v2713 = vpow.pop %v2712
      %v2714 = vsel %vm1582, %v2709, 0.0
      %2715 = vadd.xlane.f32.xlu0 %v2714
      %v2716 = vpop.xlane.xlu0 %2715
      %v2717 = vsel %vm1582, %v2711, 0.0
      %2718 = vadd.xlane.f32.xlu0 %v2717
      %v2719 = vpop.xlane.xlu0 %2718
      %v2720 = vsel %vm1582, %v2713, 0.0
      %2721 = vadd.xlane.f32.xlu0 %v2720
      %v2722 = vpop.xlane.xlu0 %2721
      %v2723 = vrcp.pop %v2716
      %v2724 = vrcp.pop %v2719
      %v2725 = vrcp.pop %v2722
      %v2726 = vmul.f32 %v2709, %v2723
      %v2727 = vmul.f32 %v2711, %v2724
      %v2728 = vmul.f32 %v2713, %v2725
      %v2729 = vpack.c.bf16 %v2727, %v2726
      %v2730 = vpack.c.bf16 %v2728, %v2728
      %v2731 = vpack.c.bf16 %v2656, %v2654
      %v2732 = vpack.c.bf16 %v2659, %v2659
      %v2734 = vsel %vm1582, %v2729, 0
      %v2737 = vsel %vm1582, %v2730, 0
      %v2740 = vsel %vm1626, %v2732, 0
      %2742 = vmatpush.bf16.msra.mxu0 0
      %2743 = vmatpush.bf16.msra.mxu0 0
      %2744 = vmatpush.bf16.msra.mxu0 0
      %2745 = vmatpush.bf16.msra.mxu0 0
      %2746 = vmatpush.bf16.msra.mxu0 0
      %2747 = vmatpush.bf16.msra.mxu0 0
      %2748 = vmatpush.bf16.msra.mxu0 %v2740
      %2749 = vmatpush.bf16.msra.mxu0 %v2731
      %2750 = vmatmul.bf16.gmra.mxu0 %v2734
      %v2751 = vpop.f32.mrf.mxu0
      %v2752 = vadd.f32 0.0, %v2751
      %v2753 = vpop.f32.mrf.mxu0
      %v2754 = vadd.f32 0.0, %v2753
      %2755 = vmatmul.bf16.gmra.mxu0 %v2737
      %v2756 = vpop.f32.mrf.mxu0
      %v2757 = vadd.f32 0.0, %v2756
      %v2758 = vpop.f32.mrf.mxu0
      %2759 = vdwg.mxu0
      %s2760 = scalar_lea.vmem %s8, 96
      %v2761 = vld [vmem:[%s2760] sm:$0xf]
      %v2762 = vld [vmem:[%s2760 + $0x4] sm:$0xf]
      %v2763 = vld [vmem:[%s2760 + $0x8] sm:$0xf]
      %v2764 = vld [vmem:[%s2760 + $0xc] sm:$0xf]
      %v2765 = vld [vmem:[%s2760 + $0x10] sm:$0xf]
      %v2766 = vld [vmem:[%s2760 + $0x14] sm:$0xf]
      %v2767 = vld [vmem:[%s2760 + $0x18] sm:$0xf]
      %v2768 = vld [vmem:[%s2760 + $0x1c] sm:$0xf]
      %s2769 = scalar_lea.vmem %s9, 3
      %v2770 = vld [vmem:[%s2769] sm:$0x1]
      %v2772 = vperm.slane %v2770, 0
      %v2782 = vunpack.c.l.b16 %v2761
      %v2783 = vunpack.c.l.b16 %v2762
      %v2784 = vunpack.c.l.b16 %v2763
      %v2785 = vunpack.c.l.b16 %v2764
      %v2786 = vunpack.c.l.b16 %v2765
      %v2787 = vunpack.c.l.b16 %v2766
      %v2788 = vunpack.c.l.b16 %v2767
      %v2789 = vunpack.c.l.b16 %v2768
      %v2790 = vpack.c.b16 %v2783, %v2782
      %v2791 = vpack.c.b16 %v2785, %v2784
      %v2792 = vpack.c.b16 %v2787, %v2786
      %v2793 = vpack.c.b16 %v2789, %v2788
      %2798 = vmatpush.bf16.msra.mxu0 0
      %2799 = vmatpush.bf16.msra.mxu0 0
      %2800 = vmatpush.bf16.msra.mxu0 0
      %2801 = vmatpush.bf16.msra.mxu0 0
      %2802 = vmatpush.bf16.msra.mxu0 %v2793
      %2803 = vmatpush.bf16.msra.mxu0 %v2792
      %2804 = vmatpush.bf16.msra.mxu0 %v2791
      %2805 = vmatpush.bf16.msra.mxu0 %v2790
      %2806 = vmatmul.bf16.gmra.mxu0 %v2527
      %v2807 = vpop.f32.mrf.mxu0
      %v2808 = vadd.f32 %v2772, %v2807
      %v2809 = vpop.f32.mrf.mxu0
      %v2810 = vadd.f32 %v2772, %v2809
      %2811 = vmatmul.bf16.gmra.mxu0 %v2530
      %v2812 = vpop.f32.mrf.mxu0
      %v2813 = vadd.f32 %v2772, %v2812
      %v2814 = vpop.f32.mrf.mxu0
      %2815 = vdwg.mxu0
      %s2816 = scalar_lea.vmem %s10, 96
      %v2817 = vld [vmem:[%s2816] sm:$0xf]
      %v2818 = vld [vmem:[%s2816 + $0x4] sm:$0xf]
      %v2819 = vld [vmem:[%s2816 + $0x8] sm:$0xf]
      %v2820 = vld [vmem:[%s2816 + $0xc] sm:$0xf]
      %v2821 = vld [vmem:[%s2816 + $0x10] sm:$0xf]
      %v2822 = vld [vmem:[%s2816 + $0x14] sm:$0xf]
      %v2823 = vld [vmem:[%s2816 + $0x18] sm:$0xf]
      %v2824 = vld [vmem:[%s2816 + $0x1c] sm:$0xf]
      %s2825 = scalar_lea.vmem %s11, 3
      %v2826 = vld [vmem:[%s2825] sm:$0x1]
      %v2828 = vperm.slane %v2826, 0
      %v2838 = vunpack.c.l.b16 %v2817
      %v2839 = vunpack.c.l.b16 %v2818
      %v2840 = vunpack.c.l.b16 %v2819
      %v2841 = vunpack.c.l.b16 %v2820
      %v2842 = vunpack.c.l.b16 %v2821
      %v2843 = vunpack.c.l.b16 %v2822
      %v2844 = vunpack.c.l.b16 %v2823
      %v2845 = vunpack.c.l.b16 %v2824
      %v2846 = vpack.c.b16 %v2839, %v2838
      %v2847 = vpack.c.b16 %v2841, %v2840
      %v2848 = vpack.c.b16 %v2843, %v2842
      %v2849 = vpack.c.b16 %v2845, %v2844
      %2854 = vmatpush.bf16.msra.mxu0 0
      %2855 = vmatpush.bf16.msra.mxu0 0
      %2856 = vmatpush.bf16.msra.mxu0 0
      %2857 = vmatpush.bf16.msra.mxu0 0
      %2858 = vmatpush.bf16.msra.mxu0 %v2849
      %2859 = vmatpush.bf16.msra.mxu0 %v2848
      %2860 = vmatpush.bf16.msra.mxu0 %v2847
      %2861 = vmatpush.bf16.msra.mxu0 %v2846
      %2862 = vmatmul.bf16.gmra.mxu0 %v2527
      %v2863 = vpop.f32.mrf.mxu0
      %v2864 = vadd.f32 %v2828, %v2863
      %v2865 = vpop.f32.mrf.mxu0
      %v2866 = vadd.f32 %v2828, %v2865
      %2867 = vmatmul.bf16.gmra.mxu0 %v2530
      %v2868 = vpop.f32.mrf.mxu0
      %v2869 = vadd.f32 %v2828, %v2868
      %v2870 = vpop.f32.mrf.mxu0
      %2871 = vdwg.mxu0
      %s2872 = scalar_lea.vmem %s12, 96
      %v2873 = vld [vmem:[%s2872] sm:$0xf]
      %v2874 = vld [vmem:[%s2872 + $0x4] sm:$0xf]
      %v2875 = vld [vmem:[%s2872 + $0x8] sm:$0xf]
      %v2876 = vld [vmem:[%s2872 + $0xc] sm:$0xf]
      %v2877 = vld [vmem:[%s2872 + $0x10] sm:$0xf]
      %v2878 = vld [vmem:[%s2872 + $0x14] sm:$0xf]
      %v2879 = vld [vmem:[%s2872 + $0x18] sm:$0xf]
      %v2880 = vld [vmem:[%s2872 + $0x1c] sm:$0xf]
      %s2881 = scalar_lea.vmem %s13, 3
      %v2882 = vld [vmem:[%s2881] sm:$0x1]
      %v2884 = vperm.slane %v2882, 0
      %v2894 = vunpack.c.l.b16 %v2873
      %v2895 = vunpack.c.l.b16 %v2874
      %v2896 = vunpack.c.l.b16 %v2875
      %v2897 = vunpack.c.l.b16 %v2876
      %v2898 = vunpack.c.l.b16 %v2877
      %v2899 = vunpack.c.l.b16 %v2878
      %v2900 = vunpack.c.l.b16 %v2879
      %v2901 = vunpack.c.l.b16 %v2880
      %v2902 = vpack.c.b16 %v2895, %v2894
      %v2903 = vpack.c.b16 %v2897, %v2896
      %v2904 = vpack.c.b16 %v2899, %v2898
      %v2905 = vpack.c.b16 %v2901, %v2900
      %2910 = vmatpush.bf16.msra.mxu0 0
      %2911 = vmatpush.bf16.msra.mxu0 0
      %2912 = vmatpush.bf16.msra.mxu0 0
      %2913 = vmatpush.bf16.msra.mxu0 0
      %2914 = vmatpush.bf16.msra.mxu0 %v2905
      %2915 = vmatpush.bf16.msra.mxu0 %v2904
      %2916 = vmatpush.bf16.msra.mxu0 %v2903
      %2917 = vmatpush.bf16.msra.mxu0 %v2902
      %2918 = vmatmul.bf16.gmra.mxu0 %v2527
      %v2919 = vpop.f32.mrf.mxu0
      %v2920 = vadd.f32 %v2884, %v2919
      %v2921 = vpop.f32.mrf.mxu0
      %v2922 = vadd.f32 %v2884, %v2921
      %2923 = vmatmul.bf16.gmra.mxu0 %v2530
      %v2924 = vpop.f32.mrf.mxu0
      %v2925 = vadd.f32 %v2884, %v2924
      %v2926 = vpop.f32.mrf.mxu0
      %2927 = vdwg.mxu0
      %v2928 = vpack.c.bf16 %v2810, %v2808
      %v2929 = vpack.c.bf16 %v2813, %v2813
      %v2930 = vpack.c.bf16 %v2866, %v2864
      %v2931 = vpack.c.bf16 %v2869, %v2869
      %v2933 = vsel %vm1551, %v2928, 0
      %v2936 = vsel %vm1551, %v2929, 0
      %v2939 = vsel %vm1551, %v2930, 0
      %v2942 = vsel %vm1551, %v2931, 0
      %2944 = vmatpush.bf16.xpose.msra.mxu0 0
      %2945 = vmatpush.bf16.xpose.msra.mxu0 0
      %2946 = vmatpush.bf16.xpose.msra.mxu0 0
      %2947 = vmatpush.bf16.xpose.msra.mxu0 0
      %2948 = vmatpush.bf16.xpose.msra.mxu0 0
      %2949 = vmatpush.bf16.xpose.msra.mxu0 0
      %2950 = vmatpush.bf16.xpose.msra.mxu0 %v2942
      %2951 = vmatpush.bf16.xpose.msra.mxu0 %v2939
      %2952 = vmatmul.bf16.gmra.mxu0 %v2933
      %v2953 = vpop.f32.mrf.mxu0
      %v2954 = vadd.f32 %v1286, %v2953
      %v2955 = vpop.f32.mrf.mxu0
      %v2956 = vadd.f32 %v1287, %v2955
      %2957 = vmatmul.bf16.gmra.mxu0 %v2936
      %v2958 = vpop.f32.mrf.mxu0
      %v2959 = vadd.f32 %v1288, %v2958
      %v2960 = vpop.f32.mrf.mxu0
      %2961 = vdwg.mxu0
      %v2962 = vsel %vm1582, %v2954, -inf
      %2963 = vmax.xlane.f32.xlu0 %v2962
      %v2964 = vpop.xlane.xlu0 %2963
      %v2965 = vsel %vm1582, %v2956, -inf
      %2966 = vmax.xlane.f32.xlu0 %v2965
      %v2967 = vpop.xlane.xlu0 %2966
      %v2968 = vsel %vm1582, %v2959, -inf
      %2969 = vmax.xlane.f32.xlu0 %v2968
      %v2970 = vpop.xlane.xlu0 %2969
      %v2971 = vsub.f32 %v2954, %v2964
      %v2972 = vsub.f32 %v2956, %v2967
      %v2973 = vsub.f32 %v2959, %v2970
      %v2974 = vmul.f32 %v2971, 1.442695
      %v2975 = vpow.pop %v2974
      %v2976 = vmul.f32 %v2972, 1.442695
      %v2977 = vpow.pop %v2976
      %v2978 = vmul.f32 %v2973, 1.442695
      %v2979 = vpow.pop %v2978
      %v2980 = vsel %vm1582, %v2975, 0.0
      %2981 = vadd.xlane.f32.xlu0 %v2980
      %v2982 = vpop.xlane.xlu0 %2981
      %v2983 = vsel %vm1582, %v2977, 0.0
      %2984 = vadd.xlane.f32.xlu0 %v2983
      %v2985 = vpop.xlane.xlu0 %2984
      %v2986 = vsel %vm1582, %v2979, 0.0
      %2987 = vadd.xlane.f32.xlu0 %v2986
      %v2988 = vpop.xlane.xlu0 %2987
      %v2989 = vrcp.pop %v2982
      %v2990 = vrcp.pop %v2985
      %v2991 = vrcp.pop %v2988
      %v2992 = vmul.f32 %v2975, %v2989
      %v2993 = vmul.f32 %v2977, %v2990
      %v2994 = vmul.f32 %v2979, %v2991
      %v2995 = vpack.c.bf16 %v2993, %v2992
      %v2996 = vpack.c.bf16 %v2994, %v2994
      %v2997 = vpack.c.bf16 %v2922, %v2920
      %v2998 = vpack.c.bf16 %v2925, %v2925
      %v3000 = vsel %vm1582, %v2995, 0
      %v3003 = vsel %vm1582, %v2996, 0
      %v3006 = vsel %vm1626, %v2998, 0
      %3008 = vmatpush.bf16.msra.mxu0 0
      %3009 = vmatpush.bf16.msra.mxu0 0
      %3010 = vmatpush.bf16.msra.mxu0 0
      %3011 = vmatpush.bf16.msra.mxu0 0
      %3012 = vmatpush.bf16.msra.mxu0 0
      %3013 = vmatpush.bf16.msra.mxu0 0
      %3014 = vmatpush.bf16.msra.mxu0 %v3006
      %3015 = vmatpush.bf16.msra.mxu0 %v2997
      %3016 = vmatmul.bf16.gmra.mxu0 %v3000
      %v3017 = vpop.f32.mrf.mxu0
      %v3018 = vadd.f32 0.0, %v3017
      %v3019 = vpop.f32.mrf.mxu0
      %v3020 = vadd.f32 0.0, %v3019
      %3021 = vmatmul.bf16.gmra.mxu0 %v3003
      %v3022 = vpop.f32.mrf.mxu0
      %v3023 = vadd.f32 0.0, %v3022
      %v3024 = vpop.f32.mrf.mxu0
      %3025 = vdwg.mxu0
      %3029 = vrot.lane.b32.xlu0 %v3018, 32
      %v3030 = vpop.permute.xlu0 %3029
      %3031 = vrot.lane.b32.xlu0 %v3020, 32
      %v3032 = vpop.permute.xlu0 %3031
      %3033 = vrot.lane.b32.xlu0 %v3023, 32
      %v3034 = vpop.permute.xlu0 %3033
      %v3038 = vsel %vm1551, %v2752, %v3030
      %v3039 = vsel %vm1551, %v2754, %v3032
      %v3040 = vsel %vm1551, %v2757, %v3034
      %s3041 = scalar_lea.vmem %s14, 32
      %v3042 = vld [vmem:[%s3041] sm:$0xf]
      %v3043 = vld [vmem:[%s3041 + $0x4] sm:$0xf]
      %v3044 = vld [vmem:[%s3041 + $0x8] sm:$0xf]
      %v3045 = vld [vmem:[%s3041 + $0xc] sm:$0xf]
      %v3046 = vld [vmem:[%s3041 + $0x10] sm:$0xf]
      %v3047 = vld [vmem:[%s3041 + $0x14] sm:$0xf]
      %v3048 = vld [vmem:[%s3041 + $0x18] sm:$0xf]
      %v3049 = vld [vmem:[%s3041 + $0x1c] sm:$0xf]
      %v3050 = vpack.c.bf16 %v3039, %v3038
      %v3051 = vpack.c.bf16 %v3040, %v3040
      %v3060 = vunpack.c.l.b16 %v3042
      %v3061 = vunpack.c.l.b16 %v3043
      %v3062 = vunpack.c.l.b16 %v3044
      %v3063 = vunpack.c.l.b16 %v3045
      %v3064 = vunpack.c.l.b16 %v3046
      %v3065 = vunpack.c.l.b16 %v3047
      %v3066 = vunpack.c.l.b16 %v3048
      %v3067 = vunpack.c.l.b16 %v3049
      %v3068 = vpack.c.b16 %v3061, %v3060
      %v3069 = vpack.c.b16 %v3063, %v3062
      %v3070 = vpack.c.b16 %v3065, %v3064
      %v3071 = vpack.c.b16 %v3067, %v3066
      %v3077 = vsel %vm1291, %v3050, 0
      %v3080 = vsel %vm1291, %v3051, 0
      %3082 = vmatpush.bf16.msra.mxu0 0
      %3083 = vmatpush.bf16.msra.mxu0 0
      %3084 = vmatpush.bf16.msra.mxu0 0
      %3085 = vmatpush.bf16.msra.mxu0 0
      %3086 = vmatpush.bf16.msra.mxu0 %v3071
      %3087 = vmatpush.bf16.msra.mxu0 %v3070
      %3088 = vmatpush.bf16.msra.mxu0 %v3069
      %3089 = vmatpush.bf16.msra.mxu0 %v3068
      %3090 = vmatmul.bf16.gmra.mxu0 %v3077
      %v3091 = vpop.f32.mrf.mxu0
      %v3092 = vadd.f32 0.0, %v3091
      %v3093 = vpop.f32.mrf.mxu0
      %v3094 = vadd.f32 0.0, %v3093
      %3095 = vmatmul.bf16.gmra.mxu0 %v3080
      %v3096 = vpop.f32.mrf.mxu0
      %v3097 = vadd.f32 0.0, %v3096
      %v3098 = vpop.f32.mrf.mxu0
      %3099 = vdwg.mxu0
      %v3100 = vadd.f32 %v2401, %v3092
      %v3101 = vadd.f32 %v2402, %v3094
      %v3102 = vadd.f32 %v2403, %v3097
      %s3103 = scalar_lea.vmem %s15, 1
      %v3104 = vld [vmem:[%s3103] sm:$0x1]
      %v3106 = vperm.slane %v3104, 0
      %v3108 = vadd.f32 %v3100, %v3106
      %v3109 = vadd.f32 %v3101, %v3106
      %v3110 = vadd.f32 %v3102, %v3106
      %s3111 = scalar_lea.vmem %s16, 1
      %v3112 = vld [vmem:[%s3111] sm:$0x1]
      %s3113 = scalar_lea.vmem %s17, 1
      %v3114 = vld [vmem:[%s3113] sm:$0x1]
      %v3115 = vsel %vm1291, %v3108, 0.0
      %3116 = vadd.xlane.f32.xlu0 %v3115
      %v3117 = vpop.xlane.xlu0 %3116
      %v3118 = vsel %vm1291, %v3109, 0.0
      %3119 = vadd.xlane.f32.xlu0 %v3118
      %v3120 = vpop.xlane.xlu0 %3119
      %v3121 = vsel %vm1291, %v3110, 0.0
      %3122 = vadd.xlane.f32.xlu0 %v3121
      %v3123 = vpop.xlane.xlu0 %3122
      %v3124 = vmul.f32 %v3117, %v1307
      %v3125 = vmul.f32 %v3120, %v1307
      %v3126 = vmul.f32 %v3123, %v1307
      %v3127 = vsub.f32 %v3108, %v3124
      %v3128 = vsub.f32 %v3109, %v3125
      %v3129 = vsub.f32 %v3110, %v3126
      %v3130 = vmul.f32 %v3127, %v3127
      %v3131 = vmul.f32 %v3128, %v3128
      %v3132 = vmul.f32 %v3129, %v3129
      %v3133 = vsel %vm1291, %v3130, 0.0
      %3134 = vadd.xlane.f32.xlu0 %v3133
      %v3135 = vpop.xlane.xlu0 %3134
      %v3136 = vsel %vm1291, %v3131, 0.0
      %3137 = vadd.xlane.f32.xlu0 %v3136
      %v3138 = vpop.xlane.xlu0 %3137
      %v3139 = vsel %vm1291, %v3132, 0.0
      %3140 = vadd.xlane.f32.xlu0 %v3139
      %v3141 = vpop.xlane.xlu0 %3140
      %v3142 = vmul.f32 %v3135, %v1307
      %v3143 = vmul.f32 %v3138, %v1307
      %v3144 = vmul.f32 %v3141, %v1307
      %v3145 = vadd.f32 %v3142, 1e-06
      %v3146 = vadd.f32 %v3143, 1e-06
      %v3147 = vadd.f32 %v3144, 1e-06
      %v3148 = vrsqrt.pop %v3145
      %v3149 = vmul.f32 %v3148, %v3145
      %v3150 = vmul.f32 %v3149, %v3148
      %v3151 = vmul.f32 0.5, %v3150
      %v3152 = vsub.f32 1.5, %v3151
      %v3153 = vmul.f32 %v3148, %v3152
      %vm3154 = vweird.f32 %v3145
      %vm3155 = vweird.f32 %v3148
      %vm3156 = vmor %vm3154, %vm3155
      %v3157 = vsel %vm3156, %v3148, %v3153
      %v3158 = vrsqrt.pop %v3146
      %v3159 = vmul.f32 %v3158, %v3146
      %v3160 = vmul.f32 %v3159, %v3158
      %v3161 = vmul.f32 0.5, %v3160
      %v3162 = vsub.f32 1.5, %v3161
      %v3163 = vmul.f32 %v3158, %v3162
      %vm3164 = vweird.f32 %v3146
      %vm3165 = vweird.f32 %v3158
      %vm3166 = vmor %vm3164, %vm3165
      %v3167 = vsel %vm3166, %v3158, %v3163
      %v3168 = vrsqrt.pop %v3147
      %v3169 = vmul.f32 %v3168, %v3147
      %v3170 = vmul.f32 %v3169, %v3168
      %v3171 = vmul.f32 0.5, %v3170
      %v3172 = vsub.f32 1.5, %v3171
      %v3173 = vmul.f32 %v3168, %v3172
      %vm3174 = vweird.f32 %v3147
      %vm3175 = vweird.f32 %v3168
      %vm3176 = vmor %vm3174, %vm3175
      %v3177 = vsel %vm3176, %v3168, %v3173
      %v3178 = vmul.f32 %v3127, %v3157
      %v3179 = vmul.f32 %v3128, %v3167
      %v3180 = vmul.f32 %v3129, %v3177
      %v3182 = vperm.slane %v3112, 0
      %v3184 = vmul.f32 %v3178, %v3182
      %v3185 = vmul.f32 %v3179, %v3182
      %v3186 = vmul.f32 %v3180, %v3182
      %v3188 = vperm.slane %v3114, 0
      %v3190 = vadd.f32 %v3184, %v3188
      %v3191 = vadd.f32 %v3185, %v3188
      %v3192 = vadd.f32 %v3186, %v3188
      %s3193 = scalar_lea.vmem %s18, 64
      %v3194 = vld [vmem:[%s3193] sm:$0xff]
      %v3195 = vld [vmem:[%s3193 + $0x8] sm:$0xff]
      %v3196 = vld [vmem:[%s3193 + $0x10] sm:$0xff]
      %v3197 = vld [vmem:[%s3193 + $0x18] sm:$0xff]
      %v3198 = vld [vmem:[%s3193 + $0x20] sm:$0xff]
      %v3199 = vld [vmem:[%s3193 + $0x28] sm:$0xff]
      %v3200 = vld [vmem:[%s3193 + $0x30] sm:$0xff]
      %v3201 = vld [vmem:[%s3193 + $0x38] sm:$0xff]
      %v3202 = vpack.c.bf16 %v3191, %v3190
      %v3203 = vpack.c.bf16 %v3192, %v3192
      %s3204 = scalar_lea.vmem %s19, 2
      %v3205 = vld [vmem:[%s3204] sm:$0x3]
      %v3207 = vperm.slane %v3205, 0
      %v3208 = vperm.slane %v3205, 1
      %v3219 = vunpack.c.l.b16 %v3194
      %v3220 = vunpack.c.h.b16 %v3194
      %v3221 = vunpack.c.l.b16 %v3195
      %v3222 = vunpack.c.h.b16 %v3195
      %v3223 = vunpack.c.l.b16 %v3196
      %v3224 = vunpack.c.h.b16 %v3196
      %v3225 = vunpack.c.l.b16 %v3197
      %v3226 = vunpack.c.h.b16 %v3197
      %v3227 = vunpack.c.l.b16 %v3198
      %v3228 = vunpack.c.h.b16 %v3198
      %v3229 = vunpack.c.l.b16 %v3199
      %v3230 = vunpack.c.h.b16 %v3199
      %v3231 = vunpack.c.l.b16 %v3200
      %v3232 = vunpack.c.h.b16 %v3200
      %v3233 = vunpack.c.l.b16 %v3201
      %v3234 = vunpack.c.h.b16 %v3201
      %v3235 = vpack.c.b16 %v3221, %v3219
      %v3236 = vpack.c.b16 %v3222, %v3220
      %v3237 = vpack.c.b16 %v3225, %v3223
      %v3238 = vpack.c.b16 %v3226, %v3224
      %v3239 = vpack.c.b16 %v3229, %v3227
      %v3240 = vpack.c.b16 %v3230, %v3228
      %v3241 = vpack.c.b16 %v3233, %v3231
      %v3242 = vpack.c.b16 %v3234, %v3232
      %v3252 = vsel %vm1291, %v3202, 0
      %v3255 = vsel %vm1291, %v3203, 0
      %3257 = vmatpush.bf16.msra.mxu0 0
      %3258 = vmatpush.bf16.msra.mxu0 0
      %3259 = vmatpush.bf16.msra.mxu0 0
      %3260 = vmatpush.bf16.msra.mxu0 0
      %3261 = vmatpush.bf16.msra.mxu0 %v3241
      %3262 = vmatpush.bf16.msra.mxu0 %v3239
      %3263 = vmatpush.bf16.msra.mxu0 %v3237
      %3264 = vmatpush.bf16.msra.mxu0 %v3235
      %3265 = vmatmul.bf16.gmra.mxu0 %v3252
      %v3266 = vpop.f32.mrf.mxu0
      %v3267 = vadd.f32 %v3207, %v3266
      %v3268 = vpop.f32.mrf.mxu0
      %v3269 = vadd.f32 %v3207, %v3268
      %3270 = vmatmul.bf16.gmra.mxu0 %v3255
      %v3271 = vpop.f32.mrf.mxu0
      %v3272 = vadd.f32 %v3207, %v3271
      %v3273 = vpop.f32.mrf.mxu0
      %3274 = vdwg.mxu0
      %3275 = vmatpush.bf16.msra.mxu0 0
      %3276 = vmatpush.bf16.msra.mxu0 0
      %3277 = vmatpush.bf16.msra.mxu0 0
      %3278 = vmatpush.bf16.msra.mxu0 0
      %3279 = vmatpush.bf16.msra.mxu0 %v3242
      %3280 = vmatpush.bf16.msra.mxu0 %v3240
      %3281 = vmatpush.bf16.msra.mxu0 %v3238
      %3282 = vmatpush.bf16.msra.mxu0 %v3236
      %3283 = vmatmul.bf16.gmra.mxu0 %v3252
      %v3284 = vpop.f32.mrf.mxu0
      %v3285 = vadd.f32 %v3208, %v3284
      %v3286 = vpop.f32.mrf.mxu0
      %v3287 = vadd.f32 %v3208, %v3286
      %3288 = vmatmul.bf16.gmra.mxu0 %v3255
      %v3289 = vpop.f32.mrf.mxu0
      %v3290 = vadd.f32 %v3208, %v3289
      %v3291 = vpop.f32.mrf.mxu0
      %3292 = vdwg.mxu0
      %v3293 = vmul.f32 %v3267, %v3267
      %v3294 = vmul.f32 %v3285, %v3285
      %v3295 = vmul.f32 %v3269, %v3269
      %v3296 = vmul.f32 %v3287, %v3287
      %v3297 = vmul.f32 %v3272, %v3272
      %v3298 = vmul.f32 %v3290, %v3290
      %v3299 = vmul.f32 %v3267, %v3293
      %v3300 = vmul.f32 %v3285, %v3294
      %v3301 = vmul.f32 %v3269, %v3295
      %v3302 = vmul.f32 %v3287, %v3296
      %v3303 = vmul.f32 %v3272, %v3297
      %v3304 = vmul.f32 %v3290, %v3298
      %v3305 = vmul.f32 %v3299, 0.044715
      %v3306 = vmul.f32 %v3300, 0.044715
      %v3307 = vmul.f32 %v3301, 0.044715
      %v3308 = vmul.f32 %v3302, 0.044715
      %v3309 = vmul.f32 %v3303, 0.044715
      %v3310 = vmul.f32 %v3304, 0.044715
      %v3311 = vadd.f32 %v3267, %v3305
      %v3312 = vadd.f32 %v3285, %v3306
      %v3313 = vadd.f32 %v3269, %v3307
      %v3314 = vadd.f32 %v3287, %v3308
      %v3315 = vadd.f32 %v3272, %v3309
      %v3316 = vadd.f32 %v3290, %v3310
      %v3317 = vmul.f32 %v3311, 0.7978846
      %v3318 = vmul.f32 %v3312, 0.7978846
      %v3319 = vmul.f32 %v3313, 0.7978846
      %v3320 = vmul.f32 %v3314, 0.7978846
      %v3321 = vmul.f32 %v3315, 0.7978846
      %v3322 = vmul.f32 %v3316, 0.7978846
      %v3323 = vtanh.pop %v3317
      %v3324 = vtanh.pop %v3318
      %v3325 = vtanh.pop %v3319
      %v3326 = vtanh.pop %v3320
      %v3327 = vtanh.pop %v3321
      %v3328 = vtanh.pop %v3322
      %v3329 = vadd.f32 %v3323, 1.0
      %v3330 = vadd.f32 %v3324, 1.0
      %v3331 = vadd.f32 %v3325, 1.0
      %v3332 = vadd.f32 %v3326, 1.0
      %v3333 = vadd.f32 %v3327, 1.0
      %v3334 = vadd.f32 %v3328, 1.0
      %v3335 = vmul.f32 %v3329, 0.5
      %v3336 = vmul.f32 %v3330, 0.5
      %v3337 = vmul.f32 %v3331, 0.5
      %v3338 = vmul.f32 %v3332, 0.5
      %v3339 = vmul.f32 %v3333, 0.5
      %v3340 = vmul.f32 %v3334, 0.5
      %v3341 = vmul.f32 %v3267, %v3335
      %v3342 = vmul.f32 %v3285, %v3336
      %v3343 = vmul.f32 %v3269, %v3337
      %v3344 = vmul.f32 %v3287, %v3338
      %v3345 = vmul.f32 %v3272, %v3339
      %v3346 = vmul.f32 %v3290, %v3340
      %s3347 = scalar_lea.vmem %s20, 128
      %v3348 = vld [vmem:[%s3347] sm:$0xf]
      %v3349 = vld [vmem:[%s3347 + $0x4] sm:$0xf]
      %v3350 = vld [vmem:[%s3347 + $0x8] sm:$0xf]
      %v3351 = vld [vmem:[%s3347 + $0xc] sm:$0xf]
      %v3352 = vld [vmem:[%s3347 + $0x10] sm:$0xf]
      %v3353 = vld [vmem:[%s3347 + $0x14] sm:$0xf]
      %v3354 = vld [vmem:[%s3347 + $0x18] sm:$0xf]
      %v3355 = vld [vmem:[%s3347 + $0x1c] sm:$0xf]
      %v3356 = vld [vmem:[%s3347 + $0x20] sm:$0xf]
      %v3357 = vld [vmem:[%s3347 + $0x24] sm:$0xf]
      %v3358 = vld [vmem:[%s3347 + $0x28] sm:$0xf]
      %v3359 = vld [vmem:[%s3347 + $0x2c] sm:$0xf]
      %v3360 = vld [vmem:[%s3347 + $0x30] sm:$0xf]
      %v3361 = vld [vmem:[%s3347 + $0x34] sm:$0xf]
      %v3362 = vld [vmem:[%s3347 + $0x38] sm:$0xf]
      %v3363 = vld [vmem:[%s3347 + $0x3c] sm:$0xf]
      %v3364 = vld [vmem:[%s3347 + $0x40] sm:$0xf]
      %v3365 = vld [vmem:[%s3347 + $0x44] sm:$0xf]
      %v3366 = vld [vmem:[%s3347 + $0x48] sm:$0xf]
      %v3367 = vld [vmem:[%s3347 + $0x4c] sm:$0xf]
      %v3368 = vld [vmem:[%s3347 + $0x50] sm:$0xf]
      %v3369 = vld [vmem:[%s3347 + $0x54] sm:$0xf]
      %v3370 = vld [vmem:[%s3347 + $0x58] sm:$0xf]
      %v3371 = vld [vmem:[%s3347 + $0x5c] sm:$0xf]
      %v3372 = vld [vmem:[%s3347 + $0x60] sm:$0xf]
      %v3373 = vld [vmem:[%s3347 + $0x64] sm:$0xf]
      %v3374 = vld [vmem:[%s3347 + $0x68] sm:$0xf]
      %v3375 = vld [vmem:[%s3347 + $0x6c] sm:$0xf]
      %v3376 = vld [vmem:[%s3347 + $0x70] sm:$0xf]
      %v3377 = vld [vmem:[%s3347 + $0x74] sm:$0xf]
      %v3378 = vld [vmem:[%s3347 + $0x78] sm:$0xf]
      %v3379 = vld [vmem:[%s3347 + $0x7c] sm:$0xf]
      %v3380 = vpack.c.bf16 %v3343, %v3341
      %v3381 = vpack.c.bf16 %v3344, %v3342
      %v3382 = vpack.c.bf16 %v3345, %v3345
      %v3383 = vpack.c.bf16 %v3346, %v3346
      %s3384 = scalar_lea.vmem %s21, 1
      %v3385 = vld [vmem:[%s3384] sm:$0x1]
      %v3387 = vperm.slane %v3385, 0
      %v3421 = vunpack.c.l.b16 %v3348
      %v3422 = vunpack.c.l.b16 %v3349
      %v3423 = vunpack.c.l.b16 %v3350
      %v3424 = vunpack.c.l.b16 %v3351
      %v3425 = vunpack.c.l.b16 %v3352
      %v3426 = vunpack.c.l.b16 %v3353
      %v3427 = vunpack.c.l.b16 %v3354
      %v3428 = vunpack.c.l.b16 %v3355
      %v3429 = vunpack.c.l.b16 %v3356
      %v3430 = vunpack.c.l.b16 %v3357
      %v3431 = vunpack.c.l.b16 %v3358
      %v3432 = vunpack.c.l.b16 %v3359
      %v3433 = vunpack.c.l.b16 %v3360
      %v3434 = vunpack.c.l.b16 %v3361
      %v3435 = vunpack.c.l.b16 %v3362
      %v3436 = vunpack.c.l.b16 %v3363
      %v3437 = vunpack.c.l.b16 %v3364
      %v3438 = vunpack.c.l.b16 %v3365
      %v3439 = vunpack.c.l.b16 %v3366
      %v3440 = vunpack.c.l.b16 %v3367
      %v3441 = vunpack.c.l.b16 %v3368
      %v3442 = vunpack.c.l.b16 %v3369
      %v3443 = vunpack.c.l.b16 %v3370
      %v3444 = vunpack.c.l.b16 %v3371
      %v3445 = vunpack.c.l.b16 %v3372
      %v3446 = vunpack.c.l.b16 %v3373
      %v3447 = vunpack.c.l.b16 %v3374
      %v3448 = vunpack.c.l.b16 %v3375
      %v3449 = vunpack.c.l.b16 %v3376
      %v3450 = vunpack.c.l.b16 %v3377
      %v3451 = vunpack.c.l.b16 %v3378
      %v3452 = vunpack.c.l.b16 %v3379
      %v3453 = vpack.c.b16 %v3422, %v3421
      %v3454 = vpack.c.b16 %v3424, %v3423
      %v3455 = vpack.c.b16 %v3426, %v3425
      %v3456 = vpack.c.b16 %v3428, %v3427
      %v3457 = vpack.c.b16 %v3430, %v3429
      %v3458 = vpack.c.b16 %v3432, %v3431
      %v3459 = vpack.c.b16 %v3434, %v3433
      %v3460 = vpack.c.b16 %v3436, %v3435
      %v3461 = vpack.c.b16 %v3438, %v3437
      %v3462 = vpack.c.b16 %v3440, %v3439
      %v3463 = vpack.c.b16 %v3442, %v3441
      %v3464 = vpack.c.b16 %v3444, %v3443
      %v3465 = vpack.c.b16 %v3446, %v3445
      %v3466 = vpack.c.b16 %v3448, %v3447
      %v3467 = vpack.c.b16 %v3450, %v3449
      %v3468 = vpack.c.b16 %v3452, %v3451
      %3485 = vmatpush.bf16.msra.mxu0 %v3460
      %3486 = vmatpush.bf16.msra.mxu0 %v3459
      %3487 = vmatpush.bf16.msra.mxu0 %v3458
      %3488 = vmatpush.bf16.msra.mxu0 %v3457
      %3489 = vmatpush.bf16.msra.mxu0 %v3456
      %3490 = vmatpush.bf16.msra.mxu0 %v3455
      %3491 = vmatpush.bf16.msra.mxu0 %v3454
      %3492 = vmatpush.bf16.msra.mxu0 %v3453
      %3493 = vmatmul.bf16.gmra.mxu0 %v3380
      %v3494 = vpop.f32.mrf.mxu0
      %v3495 = vadd.f32 %v3387, %v3494
      %v3496 = vpop.f32.mrf.mxu0
      %3497 = vmatmul.bf16.gmra.mxu0 %v3382
      %v3498 = vpop.f32.mrf.mxu0
      %v3499 = vpop.f32.mrf.mxu0
      %3500 = vdwg.mxu0
      %3501 = vmatpush.bf16.msra.mxu0 %v3468
      %3502 = vmatpush.bf16.msra.mxu0 %v3467
      %3503 = vmatpush.bf16.msra.mxu0 %v3466
      %3504 = vmatpush.bf16.msra.mxu0 %v3465
      %3505 = vmatpush.bf16.msra.mxu0 %v3464
      %3506 = vmatpush.bf16.msra.mxu0 %v3463
      %3507 = vmatpush.bf16.msra.mxu0 %v3462
      %3508 = vmatpush.bf16.msra.mxu0 %v3461
      %3509 = vmatmul.bf16.gmra.mxu0 %v3381
      %v3510 = vpop.f32.mrf.mxu0
      %v3511 = vadd.f32 %v3495, %v3510
      %v3512 = vpop.f32.mrf.mxu0
      %3513 = vmatmul.bf16.gmra.mxu0 %v3383
      %v3514 = vpop.f32.mrf.mxu0
      %v3515 = vpop.f32.mrf.mxu0
      %3516 = vdwg.mxu0
      %v3517 = vadd.f32 %v3108, %v3511
      %v3518 = vld [vmem:[%s22] sm:$0x1]
      %v3519 = vld [vmem:[%s23] sm:$0x1]
      %v3520 = vsel %vm1291, %v3517, 0.0
      %3521 = vadd.xlane.f32.xlu0 %v3520
      %v3522 = vpop.xlane.xlu0 %3521
      %v3523 = vmul.f32 %v3522, %v1307
      %v3524 = vsub.f32 %v3517, %v3523
      %v3525 = vmul.f32 %v3524, %v3524
      %v3526 = vsel %vm1291, %v3525, 0.0
      %3527 = vadd.xlane.f32.xlu0 %v3526
      %v3528 = vpop.xlane.xlu0 %3527
      %v3529 = vmul.f32 %v3528, %v1307
      %v3530 = vadd.f32 %v3529, 1e-06
      %v3531 = vrsqrt.pop %v3530
      %v3532 = vmul.f32 %v3531, %v3530
      %v3533 = vmul.f32 %v3532, %v3531
      %v3534 = vmul.f32 0.5, %v3533
      %v3535 = vsub.f32 1.5, %v3534
      %v3536 = vmul.f32 %v3531, %v3535
      %vm3537 = vweird.f32 %v3530
      %vm3538 = vweird.f32 %v3531
      %vm3539 = vmor %vm3537, %vm3538
      %v3540 = vsel %vm3539, %v3531, %v3536
      %v3541 = vmul.f32 %v3524, %v3540
      %v3543 = vperm.slane %v3518, 0
      %v3545 = vmul.f32 %v3541, %v3543
      %v3547 = vperm.slane %v3519, 0
      %v3549 = vadd.f32 %v3545, %v3547
      %v3550 = vld [vmem:[%s24] sm:$0xf]
      %v3551 = vld [vmem:[%s24 + $0x4] sm:$0xf]
      %v3552 = vld [vmem:[%s24 + $0x8] sm:$0xf]
      %v3553 = vld [vmem:[%s24 + $0xc] sm:$0xf]
      %v3554 = vld [vmem:[%s24 + $0x10] sm:$0xf]
      %v3555 = vld [vmem:[%s24 + $0x14] sm:$0xf]
      %v3556 = vld [vmem:[%s24 + $0x18] sm:$0xf]
      %v3557 = vld [vmem:[%s24 + $0x1c] sm:$0xf]
      %v3558 = vpack.c.bf16 %v3549, %v3549
      %v3559 = vld [vmem:[%s25] sm:$0x1]
      %v3561 = vperm.slane %v3559, 0
      %v3571 = vunpack.c.l.b16 %v3550
      %v3572 = vunpack.c.l.b16 %v3551
      %v3573 = vunpack.c.l.b16 %v3552
      %v3574 = vunpack.c.l.b16 %v3553
      %v3575 = vunpack.c.l.b16 %v3554
      %v3576 = vunpack.c.l.b16 %v3555
      %v3577 = vunpack.c.l.b16 %v3556
      %v3578 = vunpack.c.l.b16 %v3557
      %v3579 = vpack.c.b16 %v3572, %v3571
      %v3580 = vpack.c.b16 %v3574, %v3573
      %v3581 = vpack.c.b16 %v3576, %v3575
      %v3582 = vpack.c.b16 %v3578, %v3577
      %v3588 = vsel %vm1291, %v3558, 0
      %3590 = vmatpush.bf16.msra.mxu0 0
      %3591 = vmatpush.bf16.msra.mxu0 0
      %3592 = vmatpush.bf16.msra.mxu0 0
      %3593 = vmatpush.bf16.msra.mxu0 0
      %3594 = vmatpush.bf16.msra.mxu0 %v3582
      %3595 = vmatpush.bf16.msra.mxu0 %v3581
      %3596 = vmatpush.bf16.msra.mxu0 %v3580
      %3597 = vmatpush.bf16.msra.mxu0 %v3579
      %3598 = vmatmul.bf16.gmra.mxu0 %v3588
      %v3599 = vpop.f32.mrf.mxu0
      %v3600 = vadd.f32 %v3561, %v3599
      %v3601 = vpop.f32.mrf.mxu0
      %3602 = vdwg.mxu0
      %3603 = vst [vmem:[%s789] sm:$0xff] %v3600
      %p3604 = scmp.lt.s32.totalorder %s37, 1
      %s3605 = scalar_select %p3604, %s37, 1
      %s3606 = smul.addr %s3605, 8
      %s3607 = scalar_lea.vmem %s26, %s3606
      // Predicated region
      $region125: #{deit_forward.1} parent=123 // pred_check
        %p3608 = pneg %p606
      $region126: #{deit_forward.1} parent=123 // pred_check_branch
        %3610 = sbr.rel (%p3608) target = $region128
      $region127: #{deit_forward.1} parent=123 // pred_region
        _
      $region128: #{deit_forward.1} parent=123 // pred_fallthru
        _
    $region124: #{deit_forward.1} parent=5 // pred_fallthru
      _
    %p3611 = scmp.le.s32.totalorder 2, %s32
    // Predicated region
    $region129: #{deit_forward.1} parent=5 // pred_check
      %p3612 = pneg %p3611
    $region130: #{deit_forward.1} parent=5 // pred_check_branch
      %3614 = sbr.rel (%p3612) target = $region132
    $region131: #{deit_forward.1} parent=5 // pred_region
      %s3615 = ssub.s32 %s32, 2
      // Predicated region
      $region133: #{deit_forward.1} parent=131 // pred_check
        %p3616 = pneg %p612
      $region134: #{deit_forward.1} parent=131 // pred_check_branch
        %3618 = sbr.rel (%p3616) target = $region136
      $region135: #{deit_forward.1} parent=131 // pred_region
        %p3619 = scmp.lt.s32.totalorder %s38, 1
        %s3620 = scalar_select %p3619, %s38, 1
        %s3621 = smul.addr %s3620, 8
        %s3622 = scalar_lea.vmem %s26, %s3621
      $region136: #{deit_forward.1} parent=131 // pred_fallthru
        _
    $region132: #{deit_forward.1} parent=5 // pred_fallthru
      _
  $region6: #{deit_forward.1} parent=0 // loop_footer
    %s36 = sadd.s32 1, %s32
  $region7: #{deit_forward.1} parent=0 // loop_footer_branch
    %31 = sbr.rel target = $region3
  $region8: #{deit_forward.1} parent=0 // loop_exit
    _

</llo_original>
